<compile_context>
chip_gen: v5e
topology: v5e:2x2
jax: 0.10.0
libtpu: 0.0.40
codegen_flags: <defaults>
</compile_context>

<pallas_src>
from functools import partial

import numpy as np
import jax
import jax.numpy as jnp
from jax.experimental import pallas as pl
from jax.experimental.pallas import tpu as pltpu


def _pick_tile(n, candidates):
    for c in candidates:
        if c <= n and n % c == 0:
            return c
    return n


# ---------------------------------------------------------------------------
# Fused kernel: phase 0 = GCN layer 1 + ReLU, phase 1 = GCN layer 2 + ReLU,
# then (at the very last grid step) gmp/gap pooling + Linear.
# ---------------------------------------------------------------------------
def make_fused_gcn_kernel(hidden, TM, TK, R, K):
    def kernel(a_ref, x_ref, w1_ref, b1_ref, w2_ref, b2_ref,
               mask_ref, batch_ref, cntinv_ref, fcw_ref, fcb_ref,
               o_ref, xw_s, h1_s, h2_s, acc_s, mx_s):
        phase = pl.program_id(0)   # 0: conv1, 1: conv2
        i = pl.program_id(1)       # output row tile of A_norm
        k = pl.program_id(2)       # reduction (column) tile of A_norm

        koff = pl.multiple_of(k * TK, TK)
        ioff = pl.multiple_of(i * TM, TM)

        # ---- XW hoisted out of the k loop: computed once per k block (i == 0) ----
        @pl.when(i == 0)
        def _():
            @pl.when(phase == 0)
            def _():
                xw = jnp.dot(x_ref[...], w1_ref[...],
                             preferred_element_type=jnp.float32)        # [TK, H]
                xw_s[pl.ds(koff, TK), :] = xw.astype(jnp.bfloat16)

            @pl.when(phase == 1)
            def _():
                xw = jnp.dot(h1_s[pl.ds(koff, TK), :], w2_ref[...],
                             preferred_element_type=jnp.float32)        # [TK, H]
                xw_s[pl.ds(koff, TK), :] = xw.astype(jnp.bfloat16)

        # ---- tiled aggregation: acc += A_norm[i, k] @ XW[k]  (bf16 MXU, f32 acc) ----
        @pl.when(k == 0)
        def _():
            acc_s[...] = jnp.zeros_like(acc_s)

        acc_s[...] += jnp.dot(a_ref[...], xw_s[pl.ds(koff, TK), :],
                              preferred_element_type=jnp.float32)

        # ---- finalize row tile: + bias, ReLU, store into this layer's hidden ----
        @pl.when(k == K - 1)
        def _():
            @pl.when(phase == 0)
            def _():
                h1_s[pl.ds(ioff, TM), :] = jnp.maximum(acc_s[...] + b1_ref[...], 0.0)

            @pl.when(phase == 1)
            def _():
                h2_s[pl.ds(ioff, TM), :] = jnp.maximum(acc_s[...] + b2_ref[...], 0.0)

        # ---- very last grid step: [gmp | gap] pooling + Linear(2H -> out) ----
        @pl.when((phase == 1) & (i == R - 1) & (k == K - 1))
        def _():
            h2 = h2_s[...]                                    # [N, H], >= 0 (post-ReLU)
            G = mask_ref.shape[0]

            # mean pool on the MXU; per-graph 1/count precomputed in the wrapper.
            sums = jnp.dot(mask_ref[...], h2, preferred_element_type=jnp.float32)
            mean = sums * cntinv_ref[...]                     # empty graph -> 0

            # max pool: loop over graphs; only one [N, H] slab live (no [G, N, H]).
            # h2 >= 0 post-ReLU, so 0 is a valid identity for non-member nodes.
            bcol = batch_ref[...]                             # [N, 1] int32

            @pl.loop(0, G)
            def _(g):
                vals = jnp.where(bcol == g, h2, 0.0)          # [N, H]
                mx_s[pl.ds(g, 1), :] = jnp.max(vals, axis=0, keepdims=True)

            # Linear(2H -> out) without a lane concatenate: split fc weight halves.
            fcw = fcw_ref[...]                                # [2H, out]
            o_ref[...] = (
                jnp.dot(mx_s[...], fcw[:hidden, :], preferred_element_type=jnp.float32)
                + jnp.dot(mean, fcw[hidden:, :], preferred_element_type=jnp.float32)
                + fcb_ref[...]
            )

    return kernel


def fused_gcn_forward_call(a, x, w1, b1, w2, b2, mask_gn, batch_col, cnt_inv,
                           fc_w_t, fc_b):
    N, F = x.shape
    H = w1.shape[1]
    G = mask_gn.shape[0]
    out_dim = fc_w_t.shape[1]

    # Tile sizes for the A_norm (row, k) sweep; fall back to full dims for tiny N.
    TM = _pick_tile(N, (256, 128, 64, 32, 16, 8))
    TK = _pick_tile(N, (512, 256, 128))
    R = N // TM
    K = N // TK

    b1r = b1.reshape(1, H).astype(jnp.float32)
    b2r = b2.reshape(1, H).astype(jnp.float32)
    fcbr = fc_b.reshape(1, out_dim).astype(jnp.float32)

    return pl.pallas_call(
        make_fused_gcn_kernel(H, TM, TK, R, K),
        out_shape=jax.ShapeDtypeStruct((G, out_dim), jnp.float32),
        grid_spec=pltpu.PrefetchScalarGridSpec(
            num_scalar_prefetch=0,
            grid=(2, R, K),   # (layer phase, output row tile, reduction tile)
            in_specs=[
                pl.BlockSpec((TM, TK), lambda p, i, k: (i, k)),          # A_norm (bf16)
                pl.BlockSpec((TK, F), lambda p, i, k: (k, 0)),           # X (k block)
                pl.BlockSpec(w1.shape, lambda p, i, k: (0, 0)),
                pl.BlockSpec(b1r.shape, lambda p, i, k: (0, 0)),
                pl.BlockSpec(w2.shape, lambda p, i, k: (0, 0)),
                pl.BlockSpec(b2r.shape, lambda p, i, k: (0, 0)),
                pl.BlockSpec(mask_gn.shape, lambda p, i, k: (0, 0)),     # [G, N]
                pl.BlockSpec(batch_col.shape, lambda p, i, k: (0, 0)),   # [N, 1] int32
                pl.BlockSpec(cnt_inv.shape, lambda p, i, k: (0, 0)),     # [G, 1]
                pl.BlockSpec(fc_w_t.shape, lambda p, i, k: (0, 0)),
                pl.BlockSpec(fcbr.shape, lambda p, i, k: (0, 0)),
            ],
            out_specs=pl.BlockSpec((G, out_dim), lambda p, i, k: (0, 0)),
            scratch_shapes=[
                pltpu.VMEM((N, H), jnp.bfloat16),   # xw_s : cached (X W) / (h1 W2)
                pltpu.VMEM((N, H), jnp.float32),    # h1_s : conv1 output (post-ReLU)
                pltpu.VMEM((N, H), jnp.float32),    # h2_s : conv2 output (post-ReLU)
                pltpu.VMEM((TM, H), jnp.float32),   # acc_s: row-tile accumulator
                pltpu.VMEM((G, H), jnp.float32),    # mx_s : per-graph max pool
            ],
        ),
        compiler_params=pltpu.CompilerParams(
            # Row tiles feed cross-row VMEM scratch (h1_s/h2_s) consumed by the next
            # phase and by pooling, so all axes must stay sequential in this fused
            # design (see TODO at top about per-layer "parallel" rows for v7x).
            dimension_semantics=("arbitrary", "arbitrary", "arbitrary"),
            # Explicit scoped-VMEM budget (v5e default is only 16 MiB); safe on
            # v5e/v6e (128 MiB) and below v7x's 64 MiB physical VMEM.
            vmem_limit_bytes=32 * 1024 * 1024,
        ),
    )(a, x, w1, b1r, w2, b2r, mask_gn, batch_col, cnt_inv, fc_w_t, fcbr)


# ---------------------------------------------------------------------------
# Glue (all O(E)/O(N) and jit-fused): edge-weight replication, normalized dense
# adjacency scatter, graph-membership mask, per-graph counts.
# ---------------------------------------------------------------------------
@partial(jax.jit, static_argnames=("num_graphs",))
def gcn_learn_forward(params, x, edge_index, batch, num_graphs):
    N = x.shape[0]
    E = edge_index.shape[-1]

    # Replicate edge_weight exactly as the PyTorch forward does
    # (assumes E is an integer multiple of len(edge_weight), like the reference).
    ew = params["edge_weight"]
    _ew = params["edge_weight"]
    for _ in range(E // _ew.shape[0] - 1):
        ew = jnp.concatenate([ew, _ew], axis=0)
    w = ew.reshape(-1).astype(jnp.float32)

    src = edge_index[0]
    dst = edge_index[1]

    # GCNConv(add_self_loops=False) symmetric normalization, folded into the O(E)
    # scatter so the kernel never does an N^2 normalization pass:
    #   A_norm[dst, src] = dinv[dst] * w * dinv[src],  dinv = (in-degree)^(-1/2)
    deg = jnp.zeros((N,), jnp.float32).at[dst].add(w)
    dinv = jnp.where(deg > 0.0, jax.lax.rsqrt(deg), 0.0)
    wn = w * dinv[dst] * dinv[src]
    a = jnp.zeros((N, N), jnp.float32).at[dst, src].add(wn)
    a = a.astype(jnp.bfloat16)   # halve HBM/VMEM footprint of the dominant operand

    # Graph membership helpers (computed once, outside the kernel).
    mask_gn = jax.nn.one_hot(batch, num_graphs, dtype=jnp.float32).T    # [G, N]
    cnt = jnp.sum(mask_gn, axis=1, keepdims=True)                       # [G, 1]
    cnt_inv = jnp.where(cnt > 0.0, 1.0 / cnt, 0.0)
    batch_col = batch.reshape(N, 1).astype(jnp.int32)                   # [N, 1]

    return fused_gcn_forward_call(a, x.astype(jnp.float32),
                                  params["w1"], params["b1"],
                                  params["w2"], params["b2"],
                                  mask_gn, batch_col, cnt_inv,
                                  params["fc_w_t"], params["fc_b"])


# ---------------------------------------------------------------------------
if __name__ == "__main__":
    num_features = 4
    hidden = 8             # GCNConv output channels (fixed to 8 in the module)
    channels = 64          # nodes per graph (module default)
    num_graphs = 16
    N = channels * num_graphs      # 1024 nodes -> exercises both row and k tiling

    key = jax.random.PRNGKey(0)
    k1, k2, k3, k4, k5, kx = jax.random.split(key, 6)
    params = {
        "w1": (jax.random.normal(k1, (num_features, hidden), jnp.float32)
               * (1.0 / np.sqrt(num_features))),
        "b1": 0.1 * jax.random.normal(k4, (hidden,), jnp.float32),
        "w2": (jax.random.normal(k2, (hidden, hidden), jnp.float32)
               * (1.0 / np.sqrt(hidden))),
        "b2": 0.1 * jax.random.normal(k5, (hidden,), jnp.float32),
        # torch.nn.Linear(16, 2): weight [2, 16]; pass transposed [16, 2]
        "fc_w_t": (jax.random.normal(k3, (2 * hidden, 2), jnp.float32)
                   * (1.0 / np.sqrt(2 * hidden))),
        "fc_b": jnp.zeros((2,), jnp.float32),
        # edge_weight parameter: (channels^2 - channels, 1) filled with 1
        "edge_weight": jnp.ones((channels * channels - channels, 1), jnp.float32),
    }

    # Complete graphs (no self-loops), one contiguous node block per graph.
    ii, jj = np.meshgrid(np.arange(channels), np.arange(channels), indexing="ij")
    keep = ii.reshape(-1) != jj.reshape(-1)
    src1 = ii.reshape(-1)[keep]
    dst1 = jj.reshape(-1)[keep]
    rows = np.concatenate([src1 + g * channels for g in range(num_graphs)])
    cols = np.concatenate([dst1 + g * channels for g in range(num_graphs)])
    edge_index = jnp.asarray(np.stack([rows, cols]), dtype=jnp.int32)   # [2, E]
    batch = jnp.asarray(np.repeat(np.arange(num_graphs), channels), dtype=jnp.int32)
    x = jax.random.normal(kx, (N, num_features), jnp.float32)           # [N, F]

    out = gcn_learn_forward(params, x, edge_index, batch, num_graphs)
    out = jax.block_until_ready(out)
    assert out.shape == (num_graphs, 2) and out.dtype == jnp.float32
    assert bool(jnp.all(jnp.isfinite(out)))
    print("KERNEL_OK")
</pallas_src>

<mosaic_0001>
module attributes {stable_mosaic.version = 11 : i64} {
  func.func @kernel(%arg0: i32, %arg1: i32, %arg2: i32, %arg3: memref<256x512xbf16, #tpu.memory_space<vmem>>, %arg4: memref<512x4xf32, #tpu.memory_space<vmem>>, %arg5: memref<4x8xf32, #tpu.memory_space<vmem>>, %arg6: memref<1x8xf32, #tpu.memory_space<vmem>>, %arg7: memref<8x8xf32, #tpu.memory_space<vmem>>, %arg8: memref<1x8xf32, #tpu.memory_space<vmem>>, %arg9: memref<16x1024xf32, #tpu.memory_space<vmem>>, %arg10: memref<1024x1xi32, #tpu.memory_space<vmem>>, %arg11: memref<16x1xf32, #tpu.memory_space<vmem>>, %arg12: memref<16x2xf32, #tpu.memory_space<vmem>>, %arg13: memref<1x2xf32, #tpu.memory_space<vmem>>, %arg14: memref<16x2xf32, #tpu.memory_space<vmem>>, %arg15: memref<1024x8xbf16, #tpu.memory_space<vmem>>, %arg16: memref<1024x8xf32, #tpu.memory_space<vmem>>, %arg17: memref<1024x8xf32, #tpu.memory_space<vmem>>, %arg18: memref<256x8xf32, #tpu.memory_space<vmem>>, %arg19: memref<16x8xf32, #tpu.memory_space<vmem>>) attributes {dimension_semantics = [#tpu.dimension_semantics<arbitrary>, #tpu.dimension_semantics<arbitrary>, #tpu.dimension_semantics<arbitrary>], iteration_bounds = array<i64: 2, 4, 2>, scalar_prefetch = 0 : i64, scratch_operands = 5 : i64, tpu.core_type = #tpu.core_type<tc>, window_params = [{transform_indices = @transform_0, window_bounds = array<i64: 256, 512>}, {transform_indices = @transform_1, window_bounds = array<i64: 512, 4>}, {pipeline_mode = #tpu.pipeline_mode<synchronous>, transform_indices = @transform_2, window_bounds = array<i64: 4, 8>}, {pipeline_mode = #tpu.pipeline_mode<synchronous>, transform_indices = @transform_3, window_bounds = array<i64: 1, 8>}, {pipeline_mode = #tpu.pipeline_mode<synchronous>, transform_indices = @transform_4, window_bounds = array<i64: 8, 8>}, {pipeline_mode = #tpu.pipeline_mode<synchronous>, transform_indices = @transform_5, window_bounds = array<i64: 1, 8>}, {pipeline_mode = #tpu.pipeline_mode<synchronous>, transform_indices = @transform_6, window_bounds = array<i64: 16, 1024>}, {pipeline_mode = #tpu.pipeline_mode<synchronous>, transform_indices = @transform_7, window_bounds = array<i64: 1024, 1>}, {pipeline_mode = #tpu.pipeline_mode<synchronous>, transform_indices = @transform_8, window_bounds = array<i64: 16, 1>}, {pipeline_mode = #tpu.pipeline_mode<synchronous>, transform_indices = @transform_9, window_bounds = array<i64: 16, 2>}, {pipeline_mode = #tpu.pipeline_mode<synchronous>, transform_indices = @transform_10, window_bounds = array<i64: 1, 2>}, {pipeline_mode = #tpu.pipeline_mode<synchronous>, transform_indices = @transform_11, window_bounds = array<i64: 16, 2>}]} {
    %c512_i32 = arith.constant 512 : i32
    %0 = arith.muli %arg2, %c512_i32 : i32
    %1 = tpu.assume_multiple %0, 512 : i32
    %c256_i32 = arith.constant 256 : i32
    %2 = arith.muli %arg1, %c256_i32 : i32
    %3 = tpu.assume_multiple %2, 256 : i32
    %c0_i32 = arith.constant 0 : i32
    %4 = arith.cmpi eq, %arg1, %c0_i32 : i32
    %5 = arith.extui %4 : i1 to i32
    %c0_i32_0 = arith.constant 0 : i32
    %6 = arith.cmpi ne, %5, %c0_i32_0 : i32
    scf.if %6 {
      %c0_i32_13 = arith.constant 0 : i32
      %27 = arith.cmpi eq, %arg0, %c0_i32_13 : i32
      %28 = arith.extui %27 : i1 to i32
      %c0_i32_14 = arith.constant 0 : i32
      %29 = arith.cmpi ne, %28, %c0_i32_14 : i32
      scf.if %29 {
        %c0_17 = arith.constant 0 : index
        %c0_18 = arith.constant 0 : index
        %33 = vector.load %arg4[%c0_17, %c0_18] : memref<512x4xf32, #tpu.memory_space<vmem>>, vector<512x4xf32>
        %c0_19 = arith.constant 0 : index
        %c0_20 = arith.constant 0 : index
        %34 = vector.load %arg5[%c0_19, %c0_20] : memref<4x8xf32, #tpu.memory_space<vmem>>, vector<4x8xf32>
        %cst_21 = arith.constant dense<0.000000e+00> : vector<512x8xf32>
        %35 = tpu.matmul %33, %34, %cst_21 {dimension_numbers = #tpu.dot_dimension_numbers<[1], [0], [0], [1], [0, 0, 1, 1], [], []>} : vector<512x4xf32>, vector<4x8xf32>, vector<512x8xf32> -> vector<512x8xf32>
        %36 = arith.truncf %35 : vector<512x8xf32> to vector<512x8xbf16>
        %37 = arith.index_cast %1 : i32 to index
        %c0_22 = arith.constant 0 : index
        %38 = vector.load %arg15[%37, %c0_22] : memref<1024x8xbf16, #tpu.memory_space<vmem>>, vector<512x8xbf16>
        tpu.vector_store %arg15[%37, %c0_22], %36 {strides = array<i32>} : memref<1024x8xbf16, #tpu.memory_space<vmem>>, vector<512x8xbf16>,
      } else {
      }
      %c1_i32_15 = arith.constant 1 : i32
      %30 = arith.cmpi eq, %arg0, %c1_i32_15 : i32
      %31 = arith.extui %30 : i1 to i32
      %c0_i32_16 = arith.constant 0 : i32
      %32 = arith.cmpi ne, %31, %c0_i32_16 : i32
      scf.if %32 {
        %33 = arith.index_cast %1 : i32 to index
        %c0_17 = arith.constant 0 : index
        %34 = vector.load %arg16[%33, %c0_17] : memref<1024x8xf32, #tpu.memory_space<vmem>>, vector<512x8xf32>
        %c0_18 = arith.constant 0 : index
        %c0_19 = arith.constant 0 : index
        %35 = vector.load %arg7[%c0_18, %c0_19] : memref<8x8xf32, #tpu.memory_space<vmem>>, vector<8x8xf32>
        %cst_20 = arith.constant dense<0.000000e+00> : vector<512x8xf32>
        %36 = tpu.matmul %34, %35, %cst_20 {dimension_numbers = #tpu.dot_dimension_numbers<[1], [0], [0], [1], [0, 0, 1, 1], [], []>} : vector<512x8xf32>, vector<8x8xf32>, vector<512x8xf32> -> vector<512x8xf32>
        %37 = arith.truncf %36 : vector<512x8xf32> to vector<512x8xbf16>
        %38 = arith.index_cast %1 : i32 to index
        %c0_21 = arith.constant 0 : index
        %39 = vector.load %arg15[%38, %c0_21] : memref<1024x8xbf16, #tpu.memory_space<vmem>>, vector<512x8xbf16>
        tpu.vector_store %arg15[%38, %c0_21], %37 {strides = array<i32>} : memref<1024x8xbf16, #tpu.memory_space<vmem>>, vector<512x8xbf16>,
      } else {
      }
    } else {
    }
    %c0_i32_1 = arith.constant 0 : i32
    %7 = arith.cmpi eq, %arg2, %c0_i32_1 : i32
    %8 = arith.extui %7 : i1 to i32
    %c0_i32_2 = arith.constant 0 : i32
    %9 = arith.cmpi ne, %8, %c0_i32_2 : i32
    scf.if %9 {
      %cst_13 = arith.constant 0.000000e+00 : f32
      %27 = vector.broadcast %cst_13 : f32 to vector<256x8xf32>
      %c0_14 = arith.constant 0 : index
      %c0_15 = arith.constant 0 : index
      %28 = vector.load %arg18[%c0_14, %c0_15] : memref<256x8xf32, #tpu.memory_space<vmem>>, vector<256x8xf32>
      tpu.vector_store %arg18[%c0_14, %c0_15], %27 {strides = array<i32>} : memref<256x8xf32, #tpu.memory_space<vmem>>, vector<256x8xf32>,
    } else {
    }
    %c0 = arith.constant 0 : index
    %c0_3 = arith.constant 0 : index
    %10 = vector.load %arg18[%c0, %c0_3] : memref<256x8xf32, #tpu.memory_space<vmem>>, vector<256x8xf32>
    %c0_4 = arith.constant 0 : index
    %c0_5 = arith.constant 0 : index
    %11 = vector.load %arg3[%c0_4, %c0_5] : memref<256x512xbf16, #tpu.memory_space<vmem>>, vector<256x512xbf16>
    %12 = arith.index_cast %1 : i32 to index
    %c0_6 = arith.constant 0 : index
    %13 = vector.load %arg15[%12, %c0_6] : memref<1024x8xbf16, #tpu.memory_space<vmem>>, vector<512x8xbf16>
    %cst = arith.constant dense<0.000000e+00> : vector<256x8xf32>
    %14 = tpu.matmul %11, %13, %cst {dimension_numbers = #tpu.dot_dimension_numbers<[1], [0], [0], [1], [0, 0, 1, 1], [], []>} : vector<256x512xbf16>, vector<512x8xbf16>, vector<256x8xf32> -> vector<256x8xf32>
    %15 = arith.addf %10, %14 : vector<256x8xf32>
    %c0_7 = arith.constant 0 : index
    %c0_8 = arith.constant 0 : index
    %16 = vector.load %arg18[%c0_7, %c0_8] : memref<256x8xf32, #tpu.memory_space<vmem>>, vector<256x8xf32>
    tpu.vector_store %arg18[%c0_7, %c0_8], %15 {strides = array<i32>} : memref<256x8xf32, #tpu.memory_space<vmem>>, vector<256x8xf32>,
    %c1_i32 = arith.constant 1 : i32
    %17 = arith.cmpi eq, %arg2, %c1_i32 : i32
    %18 = arith.extui %17 : i1 to i32
    %c0_i32_9 = arith.constant 0 : i32
    %19 = arith.cmpi ne, %18, %c0_i32_9 : i32
    scf.if %19 {
      %c0_i32_13 = arith.constant 0 : i32
      %27 = arith.cmpi eq, %arg0, %c0_i32_13 : i32
      %28 = arith.extui %27 : i1 to i32
      %c0_i32_14 = arith.constant 0 : i32
      %29 = arith.cmpi ne, %28, %c0_i32_14 : i32
      scf.if %29 {
        %c0_17 = arith.constant 0 : index
        %c0_18 = arith.constant 0 : index
        %33 = vector.load %arg18[%c0_17, %c0_18] : memref<256x8xf32, #tpu.memory_space<vmem>>, vector<256x8xf32>
        %c0_19 = arith.constant 0 : index
        %c0_20 = arith.constant 0 : index
        %34 = vector.load %arg6[%c0_19, %c0_20] : memref<1x8xf32, #tpu.memory_space<vmem>>, vector<1x8xf32>
        %35 = vector.broadcast %34 : vector<1x8xf32> to vector<256x8xf32>
        %36 = arith.addf %33, %35 : vector<256x8xf32>
        %cst_21 = arith.constant 0.000000e+00 : f32
        %37 = vector.broadcast %cst_21 : f32 to vector<256x8xf32>
        %38 = arith.maximumf %36, %37 : vector<256x8xf32>
        %39 = arith.index_cast %3 : i32 to index
        %c0_22 = arith.constant 0 : index
        %40 = vector.load %arg16[%39, %c0_22] : memref<1024x8xf32, #tpu.memory_space<vmem>>, vector<256x8xf32>
        tpu.vector_store %arg16[%39, %c0_22], %38 {strides = array<i32>} : memref<1024x8xf32, #tpu.memory_space<vmem>>, vector<256x8xf32>,
      } else {
      }
      %c1_i32_15 = arith.constant 1 : i32
      %30 = arith.cmpi eq, %arg0, %c1_i32_15 : i32
      %31 = arith.extui %30 : i1 to i32
      %c0_i32_16 = arith.constant 0 : i32
      %32 = arith.cmpi ne, %31, %c0_i32_16 : i32
      scf.if %32 {
        %c0_17 = arith.constant 0 : index
        %c0_18 = arith.constant 0 : index
        %33 = vector.load %arg18[%c0_17, %c0_18] : memref<256x8xf32, #tpu.memory_space<vmem>>, vector<256x8xf32>
        %c0_19 = arith.constant 0 : index
        %c0_20 = arith.constant 0 : index
        %34 = vector.load %arg8[%c0_19, %c0_20] : memref<1x8xf32, #tpu.memory_space<vmem>>, vector<1x8xf32>
        %35 = vector.broadcast %34 : vector<1x8xf32> to vector<256x8xf32>
        %36 = arith.addf %33, %35 : vector<256x8xf32>
        %cst_21 = arith.constant 0.000000e+00 : f32
        %37 = vector.broadcast %cst_21 : f32 to vector<256x8xf32>
        %38 = arith.maximumf %36, %37 : vector<256x8xf32>
        %39 = arith.index_cast %3 : i32 to index
        %c0_22 = arith.constant 0 : index
        %40 = vector.load %arg17[%39, %c0_22] : memref<1024x8xf32, #tpu.memory_space<vmem>>, vector<256x8xf32>
        tpu.vector_store %arg17[%39, %c0_22], %38 {strides = array<i32>} : memref<1024x8xf32, #tpu.memory_space<vmem>>, vector<256x8xf32>,
      } else {
      }
    } else {
    }
    %c1_i32_10 = arith.constant 1 : i32
    %20 = arith.cmpi eq, %arg0, %c1_i32_10 : i32
    %c3_i32 = arith.constant 3 : i32
    %21 = arith.cmpi eq, %arg1, %c3_i32 : i32
    %22 = arith.andi %20, %21 : i1
    %c1_i32_11 = arith.constant 1 : i32
    %23 = arith.cmpi eq, %arg2, %c1_i32_11 : i32
    %24 = arith.andi %22, %23 : i1
    %25 = arith.extui %24 : i1 to i32
    %c0_i32_12 = arith.constant 0 : i32
    %26 = arith.cmpi ne, %25, %c0_i32_12 : i32
    scf.if %26 {
      %c0_13 = arith.constant 0 : index
      %c0_14 = arith.constant 0 : index
      %27 = vector.load %arg17[%c0_13, %c0_14] : memref<1024x8xf32, #tpu.memory_space<vmem>>, vector<1024x8xf32>
      %c0_15 = arith.constant 0 : index
      %c0_16 = arith.constant 0 : index
      %28 = vector.load %arg9[%c0_15, %c0_16] : memref<16x1024xf32, #tpu.memory_space<vmem>>, vector<16x1024xf32>
      %cst_17 = arith.constant dense<0.000000e+00> : vector<16x8xf32>
      %29 = tpu.matmul %28, %27, %cst_17 {dimension_numbers = #tpu.dot_dimension_numbers<[1], [0], [0], [1], [0, 0, 1, 1], [], []>} : vector<16x1024xf32>, vector<1024x8xf32>, vector<16x8xf32> -> vector<16x8xf32>
      %c0_18 = arith.constant 0 : index
      %c0_19 = arith.constant 0 : index
      %30 = vector.load %arg11[%c0_18, %c0_19] : memref<16x1xf32, #tpu.memory_space<vmem>>, vector<16x1xf32>
      %31 = vector.broadcast %30 : vector<16x1xf32> to vector<16x8xf32>
      %32 = arith.mulf %29, %31 : vector<16x8xf32>
      %c0_20 = arith.constant 0 : index
      %c0_21 = arith.constant 0 : index
      %33 = vector.load %arg10[%c0_20, %c0_21] : memref<1024x1xi32, #tpu.memory_space<vmem>>, vector<1024x1xi32>
      %c0_i32_22 = arith.constant 0 : i32
      %c16_i32 = arith.constant 16 : i32
      %34 = arith.addi %c0_i32_22, %c16_i32 : i32
      %c1_i32_23 = arith.constant 1 : i32
      scf.for %arg20 = %c0_i32_22 to %34 step %c1_i32_23  : i32 {
        %c1_i32_35 = arith.constant 1 : i32
        %46 = arith.muli %arg20, %c1_i32_35 : i32
        %c0_i32_36 = arith.constant 0 : i32
        %47 = arith.addi %c0_i32_36, %46 : i32
        %48 = vector.broadcast %47 : i32 to vector<1024x1xi32>
        %49 = arith.cmpi eq, %33, %48 : vector<1024x1xi32>
        %cst_37 = arith.constant 0.000000e+00 : f32
        %50 = vector.shape_cast %49 : vector<1024x1xi1> to vector<1024x1xi1>
        %51 = vector.broadcast %50 : vector<1024x1xi1> to vector<1024x8xi1>
        %52 = vector.broadcast %cst_37 : f32 to vector<1024x8xf32>
        %53 = arith.select %51, %27, %52 : vector<1024x8xi1>, vector<1024x8xf32>
        %cst_38 = arith.constant dense<0xFF800000> : vector<8xf32>
        %54 = vector.multi_reduction <maximumf>, %53, %cst_38 [0] : vector<1024x8xf32> to vector<8xf32>
        %55 = vector.shape_cast %54 : vector<8xf32> to vector<1x8xf32>
        %56 = arith.index_cast %47 : i32 to index
        %c0_39 = arith.constant 0 : index
        %57 = vector.load %arg19[%56, %c0_39] : memref<16x8xf32, #tpu.memory_space<vmem>>, vector<1x8xf32>
        tpu.vector_store %arg19[%56, %c0_39], %55 {strides = array<i32>} : memref<16x8xf32, #tpu.memory_space<vmem>>, vector<1x8xf32>,
      }
      %c16_i32_24 = arith.constant 16 : i32
      %c0_25 = arith.constant 0 : index
      %c0_26 = arith.constant 0 : index
      %35 = vector.load %arg12[%c0_25, %c0_26] : memref<16x2xf32, #tpu.memory_space<vmem>>, vector<16x2xf32>
      %c0_27 = arith.constant 0 : index
      %c0_28 = arith.constant 0 : index
      %36 = vector.load %arg19[%c0_27, %c0_28] : memref<16x8xf32, #tpu.memory_space<vmem>>, vector<16x8xf32>
      %37 = vector.extract_strided_slice %35 {offsets = [0, 0], sizes = [8, 2], strides = [1, 1]} : vector<16x2xf32> to vector<8x2xf32>
      %cst_29 = arith.constant dense<0.000000e+00> : vector<16x2xf32>
      %38 = tpu.matmul %36, %37, %cst_29 {dimension_numbers = #tpu.dot_dimension_numbers<[1], [0], [0], [1], [0, 0, 1, 1], [], []>} : vector<16x8xf32>, vector<8x2xf32>, vector<16x2xf32> -> vector<16x2xf32>
      %39 = vector.extract_strided_slice %35 {offsets = [8, 0], sizes = [8, 2], strides = [1, 1]} : vector<16x2xf32> to vector<8x2xf32>
      %cst_30 = arith.constant dense<0.000000e+00> : vector<16x2xf32>
      %40 = tpu.matmul %32, %39, %cst_30 {dimension_numbers = #tpu.dot_dimension_numbers<[1], [0], [0], [1], [0, 0, 1, 1], [], []>} : vector<16x8xf32>, vector<8x2xf32>, vector<16x2xf32> -> vector<16x2xf32>
      %41 = arith.addf %38, %40 : vector<16x2xf32>
      %c0_31 = arith.constant 0 : index
      %c0_32 = arith.constant 0 : index
      %42 = vector.load %arg13[%c0_31, %c0_32] : memref<1x2xf32, #tpu.memory_space<vmem>>, vector<1x2xf32>
      %43 = vector.broadcast %42 : vector<1x2xf32> to vector<16x2xf32>
      %44 = arith.addf %41, %43 : vector<16x2xf32>
      %c0_33 = arith.constant 0 : index
      %c0_34 = arith.constant 0 : index
      %45 = vector.load %arg14[%c0_33, %c0_34] : memref<16x2xf32, #tpu.memory_space<vmem>>, vector<16x2xf32>
      tpu.vector_store %arg14[%c0_33, %c0_34], %44 {strides = array<i32>} : memref<16x2xf32, #tpu.memory_space<vmem>>, vector<16x2xf32>,
    } else {
    }
    return
  }
  func.func @transform_0(%arg0: i32, %arg1: i32, %arg2: i32) -> (i32, i32) {
    %c0_i32 = arith.constant 0 : i32
    return %arg1, %arg2 : i32, i32
  }
  func.func @transform_1(%arg0: i32, %arg1: i32, %arg2: i32) -> (i32, i32) {
    %c0_i32 = arith.constant 0 : i32
    %c0_i32_0 = arith.constant 0 : i32
    return %arg2, %c0_i32 : i32, i32
  }
  func.func @transform_2(%arg0: i32, %arg1: i32, %arg2: i32) -> (i32, i32) {
    %c0_i32 = arith.constant 0 : i32
    %c0_i32_0 = arith.constant 0 : i32
    %c0_i32_1 = arith.constant 0 : i32
    return %c0_i32, %c0_i32_0 : i32, i32
  }
  func.func @transform_3(%arg0: i32, %arg1: i32, %arg2: i32) -> (i32, i32) {
    %c0_i32 = arith.constant 0 : i32
    %c0_i32_0 = arith.constant 0 : i32
    %c0_i32_1 = arith.constant 0 : i32
    return %c0_i32, %c0_i32_0 : i32, i32
  }
  func.func @transform_4(%arg0: i32, %arg1: i32, %arg2: i32) -> (i32, i32) {
    %c0_i32 = arith.constant 0 : i32
    %c0_i32_0 = arith.constant 0 : i32
    %c0_i32_1 = arith.constant 0 : i32
    return %c0_i32, %c0_i32_0 : i32, i32
  }
  func.func @transform_5(%arg0: i32, %arg1: i32, %arg2: i32) -> (i32, i32) {
    %c0_i32 = arith.constant 0 : i32
    %c0_i32_0 = arith.constant 0 : i32
    %c0_i32_1 = arith.constant 0 : i32
    return %c0_i32, %c0_i32_0 : i32, i32
  }
  func.func @transform_6(%arg0: i32, %arg1: i32, %arg2: i32) -> (i32, i32) {
    %c0_i32 = arith.constant 0 : i32
    %c0_i32_0 = arith.constant 0 : i32
    %c0_i32_1 = arith.constant 0 : i32
    return %c0_i32, %c0_i32_0 : i32, i32
  }
  func.func @transform_7(%arg0: i32, %arg1: i32, %arg2: i32) -> (i32, i32) {
    %c0_i32 = arith.constant 0 : i32
    %c0_i32_0 = arith.constant 0 : i32
    %c0_i32_1 = arith.constant 0 : i32
    return %c0_i32, %c0_i32_0 : i32, i32
  }
  func.func @transform_8(%arg0: i32, %arg1: i32, %arg2: i32) -> (i32, i32) {
    %c0_i32 = arith.constant 0 : i32
    %c0_i32_0 = arith.constant 0 : i32
    %c0_i32_1 = arith.constant 0 : i32
    return %c0_i32, %c0_i32_0 : i32, i32
  }
  func.func @transform_9(%arg0: i32, %arg1: i32, %arg2: i32) -> (i32, i32) {
    %c0_i32 = arith.constant 0 : i32
    %c0_i32_0 = arith.constant 0 : i32
    %c0_i32_1 = arith.constant 0 : i32
    return %c0_i32, %c0_i32_0 : i32, i32
  }
  func.func @transform_10(%arg0: i32, %arg1: i32, %arg2: i32) -> (i32, i32) {
    %c0_i32 = arith.constant 0 : i32
    %c0_i32_0 = arith.constant 0 : i32
    %c0_i32_1 = arith.constant 0 : i32
    return %c0_i32, %c0_i32_0 : i32, i32
  }
  func.func @transform_11(%arg0: i32, %arg1: i32, %arg2: i32) -> (i32, i32) {
    %c0_i32 = arith.constant 0 : i32
    %c0_i32_0 = arith.constant 0 : i32
    %c0_i32_1 = arith.constant 0 : i32
    return %c0_i32, %c0_i32_0 : i32, i32
  }
}

</mosaic_0001>

<llo_original>
// kernel: custom-call
$region0: #{custom-call}
  %s0 = inlined_call_operand.vmem [shape: f32[64512,1], index: 0, kind: output, shape index: {}]

// kernel: gcn_learn_forward.1
$region0: #{gcn_learn_forward.1}
  #allocation0 [shape = 'u32[]', space=smem, size = 0x4, offset = 0x4, fixed_abs, tag = 'smem constant byte address 0x4 - core index']
  #allocation1 [shape = 'u32[72,128]{1,0:T(1,128)}', space=vmem, size = 0x9000, scoped, tag = 'internal scratch']
  #allocation2 [shape = 'bf16[1024,8]{1,0:T(8,128)(2,1)}', space=vmem, size = 0x40000, scoped, tag = 'scratch operand']
  #allocation3 [shape = 'f32[1024,8]{1,0:T(8,128)}', space=vmem, size = 0x80000, scoped, tag = 'scratch operand']
  #allocation4 [shape = 'f32[1024,8]{1,0:T(8,128)}', space=vmem, size = 0x80000, scoped, tag = 'scratch operand']
  #allocation5 [shape = 'f32[256,8]{1,0:T(8,128)}', space=vmem, size = 0x20000, scoped, tag = 'scratch operand']
  #allocation6 [shape = 'f32[16,8]{1,0:T(8,128)}', space=vmem, size = 0x2000, scoped, tag = 'scratch operand']
  %s0 = inlined_call_operand.vmem [shape: bf16[1024,1024], index: 0, kind: input, shape index: {}]
  %s1 = inlined_call_operand.vmem [shape: f32[1024,4], index: 1, kind: input, shape index: {}]
  %s2 = inlined_call_operand.vmem [shape: f32[4,8], index: 2, kind: input, shape index: {}]
  %s3 = inlined_call_operand.vmem [shape: f32[1,8], index: 3, kind: input, shape index: {}]
  %s4 = inlined_call_operand.vmem [shape: f32[8,8], index: 4, kind: input, shape index: {}]
  %s5 = inlined_call_operand.vmem [shape: f32[1,8], index: 5, kind: input, shape index: {}]
  %s6 = inlined_call_operand.vmem [shape: f32[16,1024], index: 6, kind: input, shape index: {}]
  %s7 = inlined_call_operand.vmem [shape: s32[1024,1], index: 7, kind: input, shape index: {}]
  %s8 = inlined_call_operand.vmem [shape: f32[16,1], index: 8, kind: input, shape index: {}]
  %s9 = inlined_call_operand.vmem [shape: f32[16,2], index: 9, kind: input, shape index: {}]
  %s10 = inlined_call_operand.vmem [shape: f32[1,2], index: 10, kind: input, shape index: {}]
  %s11 = inlined_call_operand.vmem [shape: f32[16,2], index: 11, kind: output, shape index: {}]
  %s12 = sld [smem:[#allocation0]]
  $region139: #{gcn_learn_forward.1} parent=0
    _
  %s14 = ssub.s32 1, %s12
  %s15 = scalar_select 0, %s14, %s12
  $region1: #{gcn_learn_forward.1} parent=0
    #allocation7 [shape = 'u8[524288]{0}', space=vmem, size = 0x80000, scoped, tag = 'input window, operand 0']
    loop: start=0, step=1, limit=18
    $region2: #{gcn_learn_forward.1} parent=1 // loop_pre_header
      _
    $region3: #{gcn_learn_forward.1} parent=1 // loop_header
      %s17 = sphi 0, %s21
      %p18 = scmp.ge.s32.totalorder %s17, 18
      %s24 = sphi 0, %s43
      %s25 = sphi 0, %s39
      %s26 = sphi 0, %s35
      %s27 = sphi 0, %s24
      %s28 = sphi 0, %s25
      %s29 = sphi 0, %s26
      %s30 = sphi 0, %s27
      %s31 = sphi 0, %s28
      %s32 = sphi 0, %s29
      %s48 = sphi 0, %s50
      %s51 = sphi 0, %s48
      %s52 = sphi 0, %s51
      %s68 = sphi 0, %s52
      %s74 = sphi 0, %s76
      %s77 = sphi 0, %s74
      %s78 = sphi 0, %s77
      %s94 = sphi 0, %s78
      %s98 = sphi 0, %s98
      %s100 = sphi 0, %s98
      %s101 = sphi 0, %s100
      %s115 = sphi 0, %s101
      %s119 = sphi 0, %s119
      %s121 = sphi 0, %s119
      %s122 = sphi 0, %s121
      %s136 = sphi 0, %s122
      %s140 = sphi 0, %s140
      %s142 = sphi 0, %s140
      %s143 = sphi 0, %s142
      %s157 = sphi 0, %s143
      %s161 = sphi 0, %s161
      %s163 = sphi 0, %s161
      %s164 = sphi 0, %s163
      %s178 = sphi 0, %s164
      %s182 = sphi 0, %s182
      %s184 = sphi 0, %s182
      %s185 = sphi 0, %s184
      %s199 = sphi 0, %s185
      %s203 = sphi 0, %s203
      %s205 = sphi 0, %s203
      %s206 = sphi 0, %s205
      %s220 = sphi 0, %s206
      %s224 = sphi 0, %s224
      %s226 = sphi 0, %s224
      %s227 = sphi 0, %s226
      %s241 = sphi 0, %s227
      %s245 = sphi 0, %s245
      %s247 = sphi 0, %s245
      %s248 = sphi 0, %s247
      %s262 = sphi 0, %s248
      %s266 = sphi 0, %s266
      %s268 = sphi 0, %s266
      %s269 = sphi 0, %s268
      %s283 = sphi 0, %s269
      %s287 = sphi 0, %s287
      %s289 = sphi 0, %s287
      %s290 = sphi 0, %s289
      %s304 = sphi 0, %s290
    $region4: #{gcn_learn_forward.1} parent=1 // loop_header_branch
      %20 = sbr.rel (%p18) target = $region8
    $region5: #{gcn_learn_forward.1} parent=1 // loop_body
      %s22 = ssub.s32 %s17, 1
      %s23 = ssub.s32 %s17, 2
      %s33 = sadd.s32 1, %s26
      %p34 = scmp.ge.s32.totalorder %s33, 2
      %s35 = scalar_select %p34, 0, %s33
      %s36 = sadd.s32 1, %s25
      %s37 = scalar_select %p34, %s36, %s25
      %p38 = scmp.ge.s32.totalorder %s37, 4
      %s39 = scalar_select %p38, 0, %s37
      %s40 = sadd.s32 1, %s24
      %s41 = scalar_select %p38, %s40, %s24
      %p42 = scmp.ge.s32.totalorder %s41, 2
      %s43 = scalar_select %p42, 0, %s41
      %s44 = ssub.s32 %s25, %s39
      %s45 = ssub.s32 %s26, %s35
      %s46 = sor.u32 %s44, %s45
      %p47 = scmp.eq.s32.totalorder %s46, 0
      %s49 = sadd.s32 %s48, 1
      %s50 = scalar_select %p47, %s48, %s49
      %p53 = pneg %p47
      %p54 = scmp.eq.s32.totalorder %s17, 15
      %p55 = por %p53, %p54
      %p56 = scmp.ne.s32.totalorder %s48, %s51
      %p57 = scmp.eq.s32.totalorder %s17, 0
      %p58 = por %p56, %p57
      %p59 = scmp.ne.s32.totalorder %s48, %s51
      %p60 = scmp.eq.s32.totalorder %s22, 15
      %p61 = por %p59, %p60
      %p62 = scmp.ne.s32.totalorder %s51, %s52
      %p63 = scmp.eq.s32.totalorder %s22, 0
      %p64 = por %p62, %p63
      %p65 = scmp.ne.s32.totalorder %s51, %s52
      %p66 = scmp.eq.s32.totalorder %s23, 15
      %p67 = por %p65, %p66
      %p69 = scmp.ne.s32.totalorder %s52, %s68
      %p70 = scmp.eq.s32.totalorder %s23, 0
      %p71 = por %p69, %p70
      %s72 = ssub.s32 %s26, %s35
      %p73 = scmp.eq.s32.totalorder %s72, 0
      %s75 = sadd.s32 %s74, 1
      %s76 = scalar_select %p73, %s74, %s75
      %p79 = pneg %p73
      %p80 = scmp.eq.s32.totalorder %s17, 15
      %p81 = por %p79, %p80
      %p82 = scmp.ne.s32.totalorder %s74, %s77
      %p83 = scmp.eq.s32.totalorder %s17, 0
      %p84 = por %p82, %p83
      %p85 = scmp.ne.s32.totalorder %s74, %s77
      %p86 = scmp.eq.s32.totalorder %s22, 15
      %p87 = por %p85, %p86
      %p88 = scmp.ne.s32.totalorder %s77, %s78
      %p89 = scmp.eq.s32.totalorder %s22, 0
      %p90 = por %p88, %p89
      %p91 = scmp.ne.s32.totalorder %s77, %s78
      %p92 = scmp.eq.s32.totalorder %s23, 15
      %p93 = por %p91, %p92
      %p95 = scmp.ne.s32.totalorder %s78, %s94
      %p96 = scmp.eq.s32.totalorder %s23, 0
      %p97 = por %p95, %p96
      %s99 = sadd.s32 %s98, 1
      %p102 = scmp.eq.s32.totalorder %s17, 15
      %p103 = scmp.ne.s32.totalorder %s98, %s100
      %p104 = scmp.eq.s32.totalorder %s17, 0
      %p105 = por %p103, %p104
      %p106 = scmp.ne.s32.totalorder %s98, %s100
      %p107 = scmp.eq.s32.totalorder %s22, 15
      %p108 = por %p106, %p107
      %p109 = scmp.ne.s32.totalorder %s100, %s101
      %p110 = scmp.eq.s32.totalorder %s22, 0
      %p111 = por %p109, %p110
      %p112 = scmp.ne.s32.totalorder %s100, %s101
      %p113 = scmp.eq.s32.totalorder %s23, 15
      %p114 = por %p112, %p113
      %p116 = scmp.ne.s32.totalorder %s101, %s115
      %p117 = scmp.eq.s32.totalorder %s23, 0
      %p118 = por %p116, %p117
      %s120 = sadd.s32 %s119, 1
      %p123 = scmp.eq.s32.totalorder %s17, 15
      %p124 = scmp.ne.s32.totalorder %s119, %s121
      %p125 = scmp.eq.s32.totalorder %s17, 0
      %p126 = por %p124, %p125
      %p127 = scmp.ne.s32.totalorder %s119, %s121
      %p128 = scmp.eq.s32.totalorder %s22, 15
      %p129 = por %p127, %p128
      %p130 = scmp.ne.s32.totalorder %s121, %s122
      %p131 = scmp.eq.s32.totalorder %s22, 0
      %p132 = por %p130, %p131
      %p133 = scmp.ne.s32.totalorder %s121, %s122
      %p134 = scmp.eq.s32.totalorder %s23, 15
      %p135 = por %p133, %p134
      %p137 = scmp.ne.s32.totalorder %s122, %s136
      %p138 = scmp.eq.s32.totalorder %s23, 0
      %p139 = por %p137, %p138
      %s141 = sadd.s32 %s140, 1
      %p144 = scmp.eq.s32.totalorder %s17, 15
      %p145 = scmp.ne.s32.totalorder %s140, %s142
      %p146 = scmp.eq.s32.totalorder %s17, 0
      %p147 = por %p145, %p146
      %p148 = scmp.ne.s32.totalorder %s140, %s142
      %p149 = scmp.eq.s32.totalorder %s22, 15
      %p150 = por %p148, %p149
      %p151 = scmp.ne.s32.totalorder %s142, %s143
      %p152 = scmp.eq.s32.totalorder %s22, 0
      %p153 = por %p151, %p152
      %p154 = scmp.ne.s32.totalorder %s142, %s143
      %p155 = scmp.eq.s32.totalorder %s23, 15
      %p156 = por %p154, %p155
      %p158 = scmp.ne.s32.totalorder %s143, %s157
      %p159 = scmp.eq.s32.totalorder %s23, 0
      %p160 = por %p158, %p159
      %s162 = sadd.s32 %s161, 1
      %p165 = scmp.eq.s32.totalorder %s17, 15
      %p166 = scmp.ne.s32.totalorder %s161, %s163
      %p167 = scmp.eq.s32.totalorder %s17, 0
      %p168 = por %p166, %p167
      %p169 = scmp.ne.s32.totalorder %s161, %s163
      %p170 = scmp.eq.s32.totalorder %s22, 15
      %p171 = por %p169, %p170
      %p172 = scmp.ne.s32.totalorder %s163, %s164
      %p173 = scmp.eq.s32.totalorder %s22, 0
      %p174 = por %p172, %p173
      %p175 = scmp.ne.s32.totalorder %s163, %s164
      %p176 = scmp.eq.s32.totalorder %s23, 15
      %p177 = por %p175, %p176
      %p179 = scmp.ne.s32.totalorder %s164, %s178
      %p180 = scmp.eq.s32.totalorder %s23, 0
      %p181 = por %p179, %p180
      %s183 = sadd.s32 %s182, 1
      %p186 = scmp.eq.s32.totalorder %s17, 15
      %p187 = scmp.ne.s32.totalorder %s182, %s184
      %p188 = scmp.eq.s32.totalorder %s17, 0
      %p189 = por %p187, %p188
      %p190 = scmp.ne.s32.totalorder %s182, %s184
      %p191 = scmp.eq.s32.totalorder %s22, 15
      %p192 = por %p190, %p191
      %p193 = scmp.ne.s32.totalorder %s184, %s185
      %p194 = scmp.eq.s32.totalorder %s22, 0
      %p195 = por %p193, %p194
      %p196 = scmp.ne.s32.totalorder %s184, %s185
      %p197 = scmp.eq.s32.totalorder %s23, 15
      %p198 = por %p196, %p197
      %p200 = scmp.ne.s32.totalorder %s185, %s199
      %p201 = scmp.eq.s32.totalorder %s23, 0
      %p202 = por %p200, %p201
      %s204 = sadd.s32 %s203, 1
      %p207 = scmp.eq.s32.totalorder %s17, 15
      %p208 = scmp.ne.s32.totalorder %s203, %s205
      %p209 = scmp.eq.s32.totalorder %s17, 0
      %p210 = por %p208, %p209
      %p211 = scmp.ne.s32.totalorder %s203, %s205
      %p212 = scmp.eq.s32.totalorder %s22, 15
      %p213 = por %p211, %p212
      %p214 = scmp.ne.s32.totalorder %s205, %s206
      %p215 = scmp.eq.s32.totalorder %s22, 0
      %p216 = por %p214, %p215
      %p217 = scmp.ne.s32.totalorder %s205, %s206
      %p218 = scmp.eq.s32.totalorder %s23, 15
      %p219 = por %p217, %p218
      %p221 = scmp.ne.s32.totalorder %s206, %s220
      %p222 = scmp.eq.s32.totalorder %s23, 0
      %p223 = por %p221, %p222
      %s225 = sadd.s32 %s224, 1
      %p228 = scmp.eq.s32.totalorder %s17, 15
      %p229 = scmp.ne.s32.totalorder %s224, %s226
      %p230 = scmp.eq.s32.totalorder %s17, 0
      %p231 = por %p229, %p230
      %p232 = scmp.ne.s32.totalorder %s224, %s226
      %p233 = scmp.eq.s32.totalorder %s22, 15
      %p234 = por %p232, %p233
      %p235 = scmp.ne.s32.totalorder %s226, %s227
      %p236 = scmp.eq.s32.totalorder %s22, 0
      %p237 = por %p235, %p236
      %p238 = scmp.ne.s32.totalorder %s226, %s227
      %p239 = scmp.eq.s32.totalorder %s23, 15
      %p240 = por %p238, %p239
      %p242 = scmp.ne.s32.totalorder %s227, %s241
      %p243 = scmp.eq.s32.totalorder %s23, 0
      %p244 = por %p242, %p243
      %s246 = sadd.s32 %s245, 1
      %p249 = scmp.eq.s32.totalorder %s17, 15
      %p250 = scmp.ne.s32.totalorder %s245, %s247
      %p251 = scmp.eq.s32.totalorder %s17, 0
      %p252 = por %p250, %p251
      %p253 = scmp.ne.s32.totalorder %s245, %s247
      %p254 = scmp.eq.s32.totalorder %s22, 15
      %p255 = por %p253, %p254
      %p256 = scmp.ne.s32.totalorder %s247, %s248
      %p257 = scmp.eq.s32.totalorder %s22, 0
      %p258 = por %p256, %p257
      %p259 = scmp.ne.s32.totalorder %s247, %s248
      %p260 = scmp.eq.s32.totalorder %s23, 15
      %p261 = por %p259, %p260
      %p263 = scmp.ne.s32.totalorder %s248, %s262
      %p264 = scmp.eq.s32.totalorder %s23, 0
      %p265 = por %p263, %p264
      %s267 = sadd.s32 %s266, 1
      %p270 = scmp.eq.s32.totalorder %s17, 15
      %p271 = scmp.ne.s32.totalorder %s266, %s268
      %p272 = scmp.eq.s32.totalorder %s17, 0
      %p273 = por %p271, %p272
      %p274 = scmp.ne.s32.totalorder %s266, %s268
      %p275 = scmp.eq.s32.totalorder %s22, 15
      %p276 = por %p274, %p275
      %p277 = scmp.ne.s32.totalorder %s268, %s269
      %p278 = scmp.eq.s32.totalorder %s22, 0
      %p279 = por %p277, %p278
      %p280 = scmp.ne.s32.totalorder %s268, %s269
      %p281 = scmp.eq.s32.totalorder %s23, 15
      %p282 = por %p280, %p281
      %p284 = scmp.ne.s32.totalorder %s269, %s283
      %p285 = scmp.eq.s32.totalorder %s23, 0
      %p286 = por %p284, %p285
      %s288 = sadd.s32 %s287, 1
      %p291 = scmp.eq.s32.totalorder %s17, 15
      %p292 = scmp.ne.s32.totalorder %s287, %s289
      %p293 = scmp.eq.s32.totalorder %s17, 0
      %p294 = por %p292, %p293
      %p295 = scmp.ne.s32.totalorder %s287, %s289
      %p296 = scmp.eq.s32.totalorder %s22, 15
      %p297 = por %p295, %p296
      %p298 = scmp.ne.s32.totalorder %s289, %s290
      %p299 = scmp.eq.s32.totalorder %s22, 0
      %p300 = por %p298, %p299
      %p301 = scmp.ne.s32.totalorder %s289, %s290
      %p302 = scmp.eq.s32.totalorder %s23, 15
      %p303 = por %p301, %p302
      %p305 = scmp.ne.s32.totalorder %s290, %s304
      %p306 = scmp.eq.s32.totalorder %s23, 0
      %p307 = por %p305, %p306
      %p308 = scmp.le.s32.totalorder 1, %s17
      %p309 = scmp.lt.s32.totalorder %s17, 17
      %p310 = pnand %p308, %p309
      %p311 = pneg %p310
      // Predicated region
      $region9: #{gcn_learn_forward.1} parent=5 // pred_check
        _
      $region10: #{gcn_learn_forward.1} parent=5 // pred_check_branch
        %313 = sbr.rel (%p310) target = $region12
      $region11: #{gcn_learn_forward.1} parent=5 // pred_region
        %s314 = ssub.s32 %s17, 1
        // Predicated region
        $region13: #{gcn_learn_forward.1} parent=11 // pred_check
          %p315 = pneg %p111
        $region14: #{gcn_learn_forward.1} parent=11 // pred_check_branch
          %317 = sbr.rel (%p315) target = $region16
        $region15: #{gcn_learn_forward.1} parent=11 // pred_region
          _
        $region16: #{gcn_learn_forward.1} parent=11 // pred_fallthru
          _
        // Predicated region
        $region17: #{gcn_learn_forward.1} parent=11 // pred_check
          %p318 = pneg %p132
        $region18: #{gcn_learn_forward.1} parent=11 // pred_check_branch
          %320 = sbr.rel (%p318) target = $region20
        $region19: #{gcn_learn_forward.1} parent=11 // pred_region
          _
        $region20: #{gcn_learn_forward.1} parent=11 // pred_fallthru
          _
        // Predicated region
        $region21: #{gcn_learn_forward.1} parent=11 // pred_check
          %p321 = pneg %p153
        $region22: #{gcn_learn_forward.1} parent=11 // pred_check_branch
          %323 = sbr.rel (%p321) target = $region24
        $region23: #{gcn_learn_forward.1} parent=11 // pred_region
          _
        $region24: #{gcn_learn_forward.1} parent=11 // pred_fallthru
          _
        // Predicated region
        $region25: #{gcn_learn_forward.1} parent=11 // pred_check
          %p324 = pneg %p174
        $region26: #{gcn_learn_forward.1} parent=11 // pred_check_branch
          %326 = sbr.rel (%p324) target = $region28
        $region27: #{gcn_learn_forward.1} parent=11 // pred_region
          _
        $region28: #{gcn_learn_forward.1} parent=11 // pred_fallthru
          _
        // Predicated region
        $region29: #{gcn_learn_forward.1} parent=11 // pred_check
          %p327 = pneg %p195
        $region30: #{gcn_learn_forward.1} parent=11 // pred_check_branch
          %329 = sbr.rel (%p327) target = $region32
        $region31: #{gcn_learn_forward.1} parent=11 // pred_region
          _
        $region32: #{gcn_learn_forward.1} parent=11 // pred_fallthru
          _
        // Predicated region
        $region33: #{gcn_learn_forward.1} parent=11 // pred_check
          %p330 = pneg %p216
        $region34: #{gcn_learn_forward.1} parent=11 // pred_check_branch
          %332 = sbr.rel (%p330) target = $region36
        $region35: #{gcn_learn_forward.1} parent=11 // pred_region
          _
        $region36: #{gcn_learn_forward.1} parent=11 // pred_fallthru
          _
        // Predicated region
        $region37: #{gcn_learn_forward.1} parent=11 // pred_check
          %p333 = pneg %p237
        $region38: #{gcn_learn_forward.1} parent=11 // pred_check_branch
          %335 = sbr.rel (%p333) target = $region40
        $region39: #{gcn_learn_forward.1} parent=11 // pred_region
          _
        $region40: #{gcn_learn_forward.1} parent=11 // pred_fallthru
          _
        // Predicated region
        $region41: #{gcn_learn_forward.1} parent=11 // pred_check
          %p336 = pneg %p258
        $region42: #{gcn_learn_forward.1} parent=11 // pred_check_branch
          %338 = sbr.rel (%p336) target = $region44
        $region43: #{gcn_learn_forward.1} parent=11 // pred_region
          _
        $region44: #{gcn_learn_forward.1} parent=11 // pred_fallthru
          _
        // Predicated region
        $region45: #{gcn_learn_forward.1} parent=11 // pred_check
          %p339 = pneg %p279
        $region46: #{gcn_learn_forward.1} parent=11 // pred_check_branch
          %341 = sbr.rel (%p339) target = $region48
        $region47: #{gcn_learn_forward.1} parent=11 // pred_region
          _
        $region48: #{gcn_learn_forward.1} parent=11 // pred_fallthru
          _
      $region12: #{gcn_learn_forward.1} parent=5 // pred_fallthru
        _
      %p342 = scmp.lt.s32.totalorder %s17, 16
      // Predicated region
      $region49: #{gcn_learn_forward.1} parent=5 // pred_check
        %p343 = pneg %p342
      $region50: #{gcn_learn_forward.1} parent=5 // pred_check_branch
        %345 = sbr.rel (%p343) target = $region52
      $region51: #{gcn_learn_forward.1} parent=5 // pred_region
        // Predicated region
        $region53: #{gcn_learn_forward.1} parent=51 // pred_check
          %p346 = pneg %p58
        $region54: #{gcn_learn_forward.1} parent=51 // pred_check_branch
          %348 = sbr.rel (%p346) target = $region56
        $region55: #{gcn_learn_forward.1} parent=51 // pred_region
          %s349 = sand.u32 %s48, 1
          %s350 = sand.u32 %s48, 1
          %s351 = smul.addr %s350, 512
          %s352 = scalar_lea.vmem [#allocation7], %s351
          %s353 = smul.u32 32, %s25
          %s354 = smul.u32 4, %s26
          %s355 = smul.addr %s353, 8
          %s356 = sadd.s32 %s354, %s355
          %s357 = smul.addr %s356, 4
          %s358 = scalar_lea.vmem %s0, %s357
          // Predicated region
          $region57: #{gcn_learn_forward.1} parent=55 // pred_check
            _
          $region58: #{gcn_learn_forward.1} parent=55 // pred_check_branch
            %360 = sbr.rel (0) target = $region60
          $region59: #{gcn_learn_forward.1} parent=55 // pred_region
            // Predicated region
            $region61: #{gcn_learn_forward.1} parent=59 // pred_check
              _
            $region62: #{gcn_learn_forward.1} parent=59 // pred_check_branch
              %362 = sbr.rel (0) target = $region64
            $region63: #{gcn_learn_forward.1} parent=59 // pred_region
              loop: start=0, step=1, limit=1
              $region65: #{gcn_learn_forward.1} parent=63 // loop_pre_header
                _
              $region66: #{gcn_learn_forward.1} parent=63 // loop_header
                %s364 = sphi 0, %s368
                %p365 = scmp.ge.s32.totalorder %s364, 1
                %s369 = sphi %s358, %s358
                %s370 = sphi %s352, %s352
              $region67: #{gcn_learn_forward.1} parent=63 // loop_header_branch
                %367 = sbr.rel (%p365) target = $region71
              $region68: #{gcn_learn_forward.1} parent=63 // loop_body
                %v371 = vld [vmem:[%s369] sm:$0xff]
                %372 = vst [vmem:[%s370] sm:$0xff] %v371
                %v373 = vld [vmem:[%s369 + $0x8] sm:$0xff]
                %374 = vst [vmem:[%s370 + $0x8] sm:$0xff] %v373
                %v375 = vld [vmem:[%s369 + $0x20] sm:$0xff]
                %376 = vst [vmem:[%s370 + $0x10] sm:$0xff] %v375
                %v377 = vld [vmem:[%s369 + $0x28] sm:$0xff]
                %378 = vst [vmem:[%s370 + $0x18] sm:$0xff] %v377
                %v379 = vld [vmem:[%s369 + $0x40] sm:$0xff]
                %380 = vst [vmem:[%s370 + $0x20] sm:$0xff] %v379
                %v381 = vld [vmem:[%s369 + $0x48] sm:$0xff]
                %382 = vst [vmem:[%s370 + $0x28] sm:$0xff] %v381
                %v383 = vld [vmem:[%s369 + $0x60] sm:$0xff]
                %384 = vst [vmem:[%s370 + $0x30] sm:$0xff] %v383
                %v385 = vld [vmem:[%s369 + $0x68] sm:$0xff]
                %386 = vst [vmem:[%s370 + $0x38] sm:$0xff] %v385
                %v387 = vld [vmem:[%s369 + $0x80] sm:$0xff]
                %388 = vst [vmem:[%s370 + $0x40] sm:$0xff] %v387
                %v389 = vld [vmem:[%s369 + $0x88] sm:$0xff]
                %390 = vst [vmem:[%s370 + $0x48] sm:$0xff] %v389
                %v391 = vld [vmem:[%s369 + $0xa0] sm:$0xff]
                %392 = vst [vmem:[%s370 + $0x50] sm:$0xff] %v391
                %v393 = vld [vmem:[%s369 + $0xa8] sm:$0xff]
                %394 = vst [vmem:[%s370 + $0x58] sm:$0xff] %v393
                %v395 = vld [vmem:[%s369 + $0xc0] sm:$0xff]
                %396 = vst [vmem:[%s370 + $0x60] sm:$0xff] %v395
                %v397 = vld [vmem:[%s369 + $0xc8] sm:$0xff]
                %398 = vst [vmem:[%s370 + $0x68] sm:$0xff] %v397
                %v399 = vld [vmem:[%s369 + $0xe0] sm:$0xff]
                %400 = vst [vmem:[%s370 + $0x70] sm:$0xff] %v399
                %v401 = vld [vmem:[%s369 + $0xe8] sm:$0xff]
                %402 = vst [vmem:[%s370 + $0x78] sm:$0xff] %v401
                %v403 = vld [vmem:[%s369 + $0x100] sm:$0xff]
                %404 = vst [vmem:[%s370 + $0x80] sm:$0xff] %v403
                %v405 = vld [vmem:[%s369 + $0x108] sm:$0xff]
                %406 = vst [vmem:[%s370 + $0x88] sm:$0xff] %v405
                %v407 = vld [vmem:[%s369 + $0x120] sm:$0xff]
                %408 = vst [vmem:[%s370 + $0x90] sm:$0xff] %v407
                %v409 = vld [vmem:[%s369 + $0x128] sm:$0xff]
                %410 = vst [vmem:[%s370 + $0x98] sm:$0xff] %v409
                %v411 = vld [vmem:[%s369 + $0x140] sm:$0xff]
                %412 = vst [vmem:[%s370 + $0xa0] sm:$0xff] %v411
                %v413 = vld [vmem:[%s369 + $0x148] sm:$0xff]
                %414 = vst [vmem:[%s370 + $0xa8] sm:$0xff] %v413
                %v415 = vld [vmem:[%s369 + $0x160] sm:$0xff]
                %416 = vst [vmem:[%s370 + $0xb0] sm:$0xff] %v415
                %v417 = vld [vmem:[%s369 + $0x168] sm:$0xff]
                %418 = vst [vmem:[%s370 + $0xb8] sm:$0xff] %v417
                %v419 = vld [vmem:[%s369 + $0x180] sm:$0xff]
                %420 = vst [vmem:[%s370 + $0xc0] sm:$0xff] %v419
                %v421 = vld [vmem:[%s369 + $0x188] sm:$0xff]
                %422 = vst [vmem:[%s370 + $0xc8] sm:$0xff] %v421
                %v423 = vld [vmem:[%s369 + $0x1a0] sm:$0xff]
                %424 = vst [vmem:[%s370 + $0xd0] sm:$0xff] %v423
                %v425 = vld [vmem:[%s369 + $0x1a8] sm:$0xff]
                %426 = vst [vmem:[%s370 + $0xd8] sm:$0xff] %v425
                %v427 = vld [vmem:[%s369 + $0x1c0] sm:$0xff]
                %428 = vst [vmem:[%s370 + $0xe0] sm:$0xff] %v427
                %v429 = vld [vmem:[%s369 + $0x1c8] sm:$0xff]
                %430 = vst [vmem:[%s370 + $0xe8] sm:$0xff] %v429
                %v431 = vld [vmem:[%s369 + $0x1e0] sm:$0xff]
                %432 = vst [vmem:[%s370 + $0xf0] sm:$0xff] %v431
                %v433 = vld [vmem:[%s369 + $0x1e8] sm:$0xff]
                %434 = vst [vmem:[%s370 + $0xf8] sm:$0xff] %v433
                %v435 = vld [vmem:[%s369 + $0x200] sm:$0xff]
                %436 = vst [vmem:[%s370 + $0x100] sm:$0xff] %v435
                %v437 = vld [vmem:[%s369 + $0x208] sm:$0xff]
                %438 = vst [vmem:[%s370 + $0x108] sm:$0xff] %v437
                %v439 = vld [vmem:[%s369 + $0x220] sm:$0xff]
                %440 = vst [vmem:[%s370 + $0x110] sm:$0xff] %v439
                %v441 = vld [vmem:[%s369 + $0x228] sm:$0xff]
                %442 = vst [vmem:[%s370 + $0x118] sm:$0xff] %v441
                %v443 = vld [vmem:[%s369 + $0x240] sm:$0xff]
                %444 = vst [vmem:[%s370 + $0x120] sm:$0xff] %v443
                %v445 = vld [vmem:[%s369 + $0x248] sm:$0xff]
                %446 = vst [vmem:[%s370 + $0x128] sm:$0xff] %v445
                %v447 = vld [vmem:[%s369 + $0x260] sm:$0xff]
                %448 = vst [vmem:[%s370 + $0x130] sm:$0xff] %v447
                %v449 = vld [vmem:[%s369 + $0x268] sm:$0xff]
                %450 = vst [vmem:[%s370 + $0x138] sm:$0xff] %v449
                %v451 = vld [vmem:[%s369 + $0x280] sm:$0xff]
                %452 = vst [vmem:[%s370 + $0x140] sm:$0xff] %v451
                %v453 = vld [vmem:[%s369 + $0x288] sm:$0xff]
                %454 = vst [vmem:[%s370 + $0x148] sm:$0xff] %v453
                %v455 = vld [vmem:[%s369 + $0x2a0] sm:$0xff]
                %456 = vst [vmem:[%s370 + $0x150] sm:$0xff] %v455
                %v457 = vld [vmem:[%s369 + $0x2a8] sm:$0xff]
                %458 = vst [vmem:[%s370 + $0x158] sm:$0xff] %v457
                %v459 = vld [vmem:[%s369 + $0x2c0] sm:$0xff]
                %460 = vst [vmem:[%s370 + $0x160] sm:$0xff] %v459
                %v461 = vld [vmem:[%s369 + $0x2c8] sm:$0xff]
                %462 = vst [vmem:[%s370 + $0x168] sm:$0xff] %v461
                %v463 = vld [vmem:[%s369 + $0x2e0] sm:$0xff]
                %464 = vst [vmem:[%s370 + $0x170] sm:$0xff] %v463
                %v465 = vld [vmem:[%s369 + $0x2e8] sm:$0xff]
                %466 = vst [vmem:[%s370 + $0x178] sm:$0xff] %v465
                %v467 = vld [vmem:[%s369 + $0x300] sm:$0xff]
                %468 = vst [vmem:[%s370 + $0x180] sm:$0xff] %v467
                %v469 = vld [vmem:[%s369 + $0x308] sm:$0xff]
                %470 = vst [vmem:[%s370 + $0x188] sm:$0xff] %v469
                %v471 = vld [vmem:[%s369 + $0x320] sm:$0xff]
                %472 = vst [vmem:[%s370 + $0x190] sm:$0xff] %v471
                %v473 = vld [vmem:[%s369 + $0x328] sm:$0xff]
                %474 = vst [vmem:[%s370 + $0x198] sm:$0xff] %v473
                %v475 = vld [vmem:[%s369 + $0x340] sm:$0xff]
                %476 = vst [vmem:[%s370 + $0x1a0] sm:$0xff] %v475
                %v477 = vld [vmem:[%s369 + $0x348] sm:$0xff]
                %478 = vst [vmem:[%s370 + $0x1a8] sm:$0xff] %v477
                %v479 = vld [vmem:[%s369 + $0x360] sm:$0xff]
                %480 = vst [vmem:[%s370 + $0x1b0] sm:$0xff] %v479
                %v481 = vld [vmem:[%s369 + $0x368] sm:$0xff]
                %482 = vst [vmem:[%s370 + $0x1b8] sm:$0xff] %v481
                %v483 = vld [vmem:[%s369 + $0x380] sm:$0xff]
                %484 = vst [vmem:[%s370 + $0x1c0] sm:$0xff] %v483
                %v485 = vld [vmem:[%s369 + $0x388] sm:$0xff]
                %486 = vst [vmem:[%s370 + $0x1c8] sm:$0xff] %v485
                %v487 = vld [vmem:[%s369 + $0x3a0] sm:$0xff]
                %488 = vst [vmem:[%s370 + $0x1d0] sm:$0xff] %v487
                %v489 = vld [vmem:[%s369 + $0x3a8] sm:$0xff]
                %490 = vst [vmem:[%s370 + $0x1d8] sm:$0xff] %v489
                %v491 = vld [vmem:[%s369 + $0x3c0] sm:$0xff]
                %492 = vst [vmem:[%s370 + $0x1e0] sm:$0xff] %v491
                %v493 = vld [vmem:[%s369 + $0x3c8] sm:$0xff]
                %494 = vst [vmem:[%s370 + $0x1e8] sm:$0xff] %v493
                %v495 = vld [vmem:[%s369 + $0x3e0] sm:$0xff]
                %496 = vst [vmem:[%s370 + $0x1f0] sm:$0xff] %v495
                %v497 = vld [vmem:[%s369 + $0x3e8] sm:$0xff]
                %498 = vst [vmem:[%s370 + $0x1f8] sm:$0xff] %v497
              $region69: #{gcn_learn_forward.1} parent=63 // loop_footer
                %s368 = sadd.s32 1, %s364
              $region70: #{gcn_learn_forward.1} parent=63 // loop_footer_branch
                %363 = sbr.rel target = $region66
              $region71: #{gcn_learn_forward.1} parent=63 // loop_exit
                _
            $region64: #{gcn_learn_forward.1} parent=59 // pred_fallthru
              _
            // Predicated region
            $region72: #{gcn_learn_forward.1} parent=59 // pred_check
              _
            $region73: #{gcn_learn_forward.1} parent=59 // pred_check_branch
              %500 = sbr.rel target = $region75
            $region74: #{gcn_learn_forward.1} parent=59 // pred_region
              _
            $region75: #{gcn_learn_forward.1} parent=59 // pred_fallthru
              _
          $region60: #{gcn_learn_forward.1} parent=55 // pred_fallthru
            _
          %501 = vnop
        $region56: #{gcn_learn_forward.1} parent=51 // pred_fallthru
          _
        // Predicated region
        $region76: #{gcn_learn_forward.1} parent=51 // pred_check
          %p502 = pneg %p84
        $region77: #{gcn_learn_forward.1} parent=51 // pred_check_branch
          %504 = sbr.rel (%p502) target = $region79
        $region78: #{gcn_learn_forward.1} parent=51 // pred_region
          %s505 = smul.u32 64, %s26
          %p506 = scmp.lt.s32.totalorder %s505, 127
          %s507 = scalar_select %p506, %s505, 127
          %s508 = smul.addr %s507, 8
          %s509 = scalar_lea.vmem %s1, %s508
          %s510 = smul.u32 64, %s26
        $region79: #{gcn_learn_forward.1} parent=51 // pred_fallthru
          _
      $region52: #{gcn_learn_forward.1} parent=5 // pred_fallthru
        _
      %p511 = scmp.le.s32.totalorder 1, %s17
      %p512 = scmp.lt.s32.totalorder %s17, 17
      %p513 = pnand %p511, %p512
      %p514 = pneg %p513
      // Predicated region
      $region80: #{gcn_learn_forward.1} parent=5 // pred_check
        _
      $region81: #{gcn_learn_forward.1} parent=5 // pred_check_branch
        %516 = sbr.rel (%p513) target = $region83
      $region82: #{gcn_learn_forward.1} parent=5 // pred_region
        %s517 = ssub.s32 %s17, 1
        %s518 = sand.u32 %s51, 1
        %s519 = sand.u32 %s51, 1
        %s520 = smul.addr %s519, 512
        %s521 = scalar_lea.vmem [#allocation7], %s520
        // Predicated region
        $region84: #{gcn_learn_forward.1} parent=82 // pred_check
          %p522 = pneg %p64
        $region85: #{gcn_learn_forward.1} parent=82 // pred_check_branch
          %524 = sbr.rel (%p522) target = $region87
        $region86: #{gcn_learn_forward.1} parent=82 // pred_region
          _
        $region87: #{gcn_learn_forward.1} parent=82 // pred_fallthru
          _
        %s525 = sand.u32 %s51, 1
        %s526 = sand.u32 %s51, 1
        %s527 = smul.addr %s526, 512
        %s528 = scalar_lea.vmem [#allocation7], %s527
        %p529 = pneg %p64
        %p530 = pneg %p61
        %s531 = smul.u32 64, %s29
        %p532 = scmp.lt.s32.totalorder %s531, 127
        %s533 = scalar_select %p532, %s531, 127
        %s534 = smul.addr %s533, 8
        %s535 = scalar_lea.vmem %s1, %s534
        %p536 = pneg %p90
        %p537 = pneg %p87
        %p538 = pneg %p111
        %p539 = pneg %p108
        %p540 = pneg %p132
        %p541 = pneg %p129
        %p542 = pneg %p153
        %p543 = pneg %p150
        %p544 = pneg %p174
        %p545 = pneg %p171
        %p546 = pneg %p195
        %p547 = pneg %p192
        %p548 = pneg %p216
        %p549 = pneg %p213
        %p550 = pneg %p237
        %p551 = pneg %p234
        %p552 = pneg %p258
        %p553 = pneg %p255
        %p554 = pneg %p279
        %p555 = pneg %p276
        %p556 = pneg %p300
        %p557 = pneg %p297
        %s558 = smul.u32 32, %s28
        %s559 = smul.u32 4, %s29
        %s560 = smul.u32 64, %s29
        %p561 = scmp.lt.s32.totalorder %s560, 127
        %s562 = scalar_select %p561, %s560, 127
        %s563 = smul.addr %s562, 8
        %s564 = scalar_lea.vmem %s1, %s563
        %s565 = smul.u32 64, %s29
        %s566 = smul.u32 %s29, 512
        %s567 = smul.u32 %s28, 256
        %p568 = scmp.eq.s32.totalorder %s28, 0
        // Predicated region
        $region88: #{gcn_learn_forward.1} parent=82 // pred_check
          %p569 = pneg %p568
        $region89: #{gcn_learn_forward.1} parent=82 // pred_check_branch
          %571 = sbr.rel (%p569) target = $region91
        $region90: #{gcn_learn_forward.1} parent=82 // pred_region
          %p572 = scmp.eq.s32.totalorder %s27, 0
          // Predicated region
          $region92: #{gcn_learn_forward.1} parent=90 // pred_check
            %p573 = pneg %p572
          $region93: #{gcn_learn_forward.1} parent=90 // pred_check_branch
            %575 = sbr.rel (%p573) target = $region95
          $region94: #{gcn_learn_forward.1} parent=90 // pred_region
            %v576 = vld [vmem:[%s564] sm:$0xff]
            %v577 = vld [vmem:[%s564 + $0x8] sm:$0xff]
            %v578 = vld [vmem:[%s564 + $0x10] sm:$0xff]
            %v579 = vld [vmem:[%s564 + $0x18] sm:$0xff]
            %v580 = vld [vmem:[%s564 + $0x20] sm:$0xff]
            %v581 = vld [vmem:[%s564 + $0x28] sm:$0xff]
            %v582 = vld [vmem:[%s564 + $0x30] sm:$0xff]
            %v583 = vld [vmem:[%s564 + $0x38] sm:$0xff]
            %v584 = vld [vmem:[%s564 + $0x40] sm:$0xff]
            %v585 = vld [vmem:[%s564 + $0x48] sm:$0xff]
            %v586 = vld [vmem:[%s564 + $0x50] sm:$0xff]
            %v587 = vld [vmem:[%s564 + $0x58] sm:$0xff]
            %v588 = vld [vmem:[%s564 + $0x60] sm:$0xff]
            %v589 = vld [vmem:[%s564 + $0x68] sm:$0xff]
            %v590 = vld [vmem:[%s564 + $0x70] sm:$0xff]
            %v591 = vld [vmem:[%s564 + $0x78] sm:$0xff]
            %v592 = vld [vmem:[%s564 + $0x80] sm:$0xff]
            %v593 = vld [vmem:[%s564 + $0x88] sm:$0xff]
            %v594 = vld [vmem:[%s564 + $0x90] sm:$0xff]
            %v595 = vld [vmem:[%s564 + $0x98] sm:$0xff]
            %v596 = vld [vmem:[%s564 + $0xa0] sm:$0xff]
            %v597 = vld [vmem:[%s564 + $0xa8] sm:$0xff]
            %v598 = vld [vmem:[%s564 + $0xb0] sm:$0xff]
            %v599 = vld [vmem:[%s564 + $0xb8] sm:$0xff]
            %v600 = vld [vmem:[%s564 + $0xc0] sm:$0xff]
            %v601 = vld [vmem:[%s564 + $0xc8] sm:$0xff]
            %v602 = vld [vmem:[%s564 + $0xd0] sm:$0xff]
            %v603 = vld [vmem:[%s564 + $0xd8] sm:$0xff]
            %v604 = vld [vmem:[%s564 + $0xe0] sm:$0xff]
            %v605 = vld [vmem:[%s564 + $0xe8] sm:$0xff]
            %v606 = vld [vmem:[%s564 + $0xf0] sm:$0xff]
            %v607 = vld [vmem:[%s564 + $0xf8] sm:$0xff]
            %v608 = vld [vmem:[%s564 + $0x100] sm:$0xff]
            %v609 = vld [vmem:[%s564 + $0x108] sm:$0xff]
            %v610 = vld [vmem:[%s564 + $0x110] sm:$0xff]
            %v611 = vld [vmem:[%s564 + $0x118] sm:$0xff]
            %v612 = vld [vmem:[%s564 + $0x120] sm:$0xff]
            %v613 = vld [vmem:[%s564 + $0x128] sm:$0xff]
            %v614 = vld [vmem:[%s564 + $0x130] sm:$0xff]
            %v615 = vld [vmem:[%s564 + $0x138] sm:$0xff]
            %v616 = vld [vmem:[%s564 + $0x140] sm:$0xff]
            %v617 = vld [vmem:[%s564 + $0x148] sm:$0xff]
            %v618 = vld [vmem:[%s564 + $0x150] sm:$0xff]
            %v619 = vld [vmem:[%s564 + $0x158] sm:$0xff]
            %v620 = vld [vmem:[%s564 + $0x160] sm:$0xff]
            %v621 = vld [vmem:[%s564 + $0x168] sm:$0xff]
            %v622 = vld [vmem:[%s564 + $0x170] sm:$0xff]
            %v623 = vld [vmem:[%s564 + $0x178] sm:$0xff]
            %v624 = vld [vmem:[%s564 + $0x180] sm:$0xff]
            %v625 = vld [vmem:[%s564 + $0x188] sm:$0xff]
            %v626 = vld [vmem:[%s564 + $0x190] sm:$0xff]
            %v627 = vld [vmem:[%s564 + $0x198] sm:$0xff]
            %v628 = vld [vmem:[%s564 + $0x1a0] sm:$0xff]
            %v629 = vld [vmem:[%s564 + $0x1a8] sm:$0xff]
            %v630 = vld [vmem:[%s564 + $0x1b0] sm:$0xff]
            %v631 = vld [vmem:[%s564 + $0x1b8] sm:$0xff]
            %v632 = vld [vmem:[%s564 + $0x1c0] sm:$0xff]
            %v633 = vld [vmem:[%s564 + $0x1c8] sm:$0xff]
            %v634 = vld [vmem:[%s564 + $0x1d0] sm:$0xff]
            %v635 = vld [vmem:[%s564 + $0x1d8] sm:$0xff]
            %v636 = vld [vmem:[%s564 + $0x1e0] sm:$0xff]
            %v637 = vld [vmem:[%s564 + $0x1e8] sm:$0xff]
            %v638 = vld [vmem:[%s564 + $0x1f0] sm:$0xff]
            %v639 = vld [vmem:[%s564 + $0x1f8] sm:$0xff]
            %v640 = vld [vmem:[%s2] sm:$0xf]
            %vm641 = vcmask 31744
            %v643 = vsel %vm641, %v576, 0
            %v646 = vsel %vm641, %v577, 0
            %v649 = vsel %vm641, %v578, 0
            %v652 = vsel %vm641, %v579, 0
            %v655 = vsel %vm641, %v580, 0
            %v658 = vsel %vm641, %v581, 0
            %v661 = vsel %vm641, %v582, 0
            %v664 = vsel %vm641, %v583, 0
            %v667 = vsel %vm641, %v584, 0
            %v670 = vsel %vm641, %v585, 0
            %v673 = vsel %vm641, %v586, 0
            %v676 = vsel %vm641, %v587, 0
            %v679 = vsel %vm641, %v588, 0
            %v682 = vsel %vm641, %v589, 0
            %v685 = vsel %vm641, %v590, 0
            %v688 = vsel %vm641, %v591, 0
            %v691 = vsel %vm641, %v592, 0
            %v694 = vsel %vm641, %v593, 0
            %v697 = vsel %vm641, %v594, 0
            %v700 = vsel %vm641, %v595, 0
            %v703 = vsel %vm641, %v596, 0
            %v706 = vsel %vm641, %v597, 0
            %v709 = vsel %vm641, %v598, 0
            %v712 = vsel %vm641, %v599, 0
            %v715 = vsel %vm641, %v600, 0
            %v718 = vsel %vm641, %v601, 0
            %v721 = vsel %vm641, %v602, 0
            %v724 = vsel %vm641, %v603, 0
            %v727 = vsel %vm641, %v604, 0
            %v730 = vsel %vm641, %v605, 0
            %v733 = vsel %vm641, %v606, 0
            %v736 = vsel %vm641, %v607, 0
            %v739 = vsel %vm641, %v608, 0
            %v742 = vsel %vm641, %v609, 0
            %v745 = vsel %vm641, %v610, 0
            %v748 = vsel %vm641, %v611, 0
            %v751 = vsel %vm641, %v612, 0
            %v754 = vsel %vm641, %v613, 0
            %v757 = vsel %vm641, %v614, 0
            %v760 = vsel %vm641, %v615, 0
            %v763 = vsel %vm641, %v616, 0
            %v766 = vsel %vm641, %v617, 0
            %v769 = vsel %vm641, %v618, 0
            %v772 = vsel %vm641, %v619, 0
            %v775 = vsel %vm641, %v620, 0
            %v778 = vsel %vm641, %v621, 0
            %v781 = vsel %vm641, %v622, 0
            %v784 = vsel %vm641, %v623, 0
            %v787 = vsel %vm641, %v624, 0
            %v790 = vsel %vm641, %v625, 0
            %v793 = vsel %vm641, %v626, 0
            %v796 = vsel %vm641, %v627, 0
            %v799 = vsel %vm641, %v628, 0
            %v802 = vsel %vm641, %v629, 0
            %v805 = vsel %vm641, %v630, 0
            %v808 = vsel %vm641, %v631, 0
            %v811 = vsel %vm641, %v632, 0
            %v814 = vsel %vm641, %v633, 0
            %v817 = vsel %vm641, %v634, 0
            %v820 = vsel %vm641, %v635, 0
            %v823 = vsel %vm641, %v636, 0
            %v826 = vsel %vm641, %v637, 0
            %v829 = vsel %vm641, %v638, 0
            %v832 = vsel %vm641, %v639, 0
            %vm834 = vcmask 1043456
            %v836 = vsel %vm834, %v640, 0
            %838 = vmatpush.msra.mxu0 0.0
            %839 = vmatpush.msra.mxu0 0.0
            %840 = vmatpush.msra.mxu0 0.0
            %841 = vmatpush.msra.mxu0 0.0
            %842 = vmatpush.msra.mxu0 0.0
            %843 = vmatpush.msra.mxu0 0.0
            %844 = vmatpush.msra.mxu0 0.0
            %845 = vmatpush.msra.mxu0 0.0
            %846 = vmatpush.msra.mxu0 0.0
            %847 = vmatpush.msra.mxu0 0.0
            %848 = vmatpush.msra.mxu0 0.0
            %849 = vmatpush.msra.mxu0 0.0
            %850 = vmatpush.msra.mxu0 0.0
            %851 = vmatpush.msra.mxu0 0.0
            %852 = vmatpush.msra.mxu0 0.0
            %853 = vmatpush.msra.mxu0 %v836
            %854 = vmatmul.f32.gmra.mxu0 %v643
            %v855 = vpop.f32.mrf.mxu0
            %v856 = vadd.f32 0.0, %v855
            %857 = vmatmul.f32.gmra.mxu0 %v646
            %v858 = vpop.f32.mrf.mxu0
            %v859 = vadd.f32 0.0, %v858
            %860 = vmatmul.f32.gmra.mxu0 %v649
            %v861 = vpop.f32.mrf.mxu0
            %v862 = vadd.f32 0.0, %v861
            %863 = vmatmul.f32.gmra.mxu0 %v652
            %v864 = vpop.f32.mrf.mxu0
            %v865 = vadd.f32 0.0, %v864
            %866 = vmatmul.f32.gmra.mxu0 %v655
            %v867 = vpop.f32.mrf.mxu0
            %v868 = vadd.f32 0.0, %v867
            %869 = vmatmul.f32.gmra.mxu0 %v658
            %v870 = vpop.f32.mrf.mxu0
            %v871 = vadd.f32 0.0, %v870
            %872 = vmatmul.f32.gmra.mxu0 %v661
            %v873 = vpop.f32.mrf.mxu0
            %v874 = vadd.f32 0.0, %v873
            %875 = vmatmul.f32.gmra.mxu0 %v664
            %v876 = vpop.f32.mrf.mxu0
            %v877 = vadd.f32 0.0, %v876
            %878 = vmatmul.f32.gmra.mxu0 %v667
            %v879 = vpop.f32.mrf.mxu0
            %v880 = vadd.f32 0.0, %v879
            %881 = vmatmul.f32.gmra.mxu0 %v670
            %v882 = vpop.f32.mrf.mxu0
            %v883 = vadd.f32 0.0, %v882
            %884 = vmatmul.f32.gmra.mxu0 %v673
            %v885 = vpop.f32.mrf.mxu0
            %v886 = vadd.f32 0.0, %v885
            %887 = vmatmul.f32.gmra.mxu0 %v676
            %v888 = vpop.f32.mrf.mxu0
            %v889 = vadd.f32 0.0, %v888
            %890 = vmatmul.f32.gmra.mxu0 %v679
            %v891 = vpop.f32.mrf.mxu0
            %v892 = vadd.f32 0.0, %v891
            %893 = vmatmul.f32.gmra.mxu0 %v682
            %v894 = vpop.f32.mrf.mxu0
            %v895 = vadd.f32 0.0, %v894
            %896 = vmatmul.f32.gmra.mxu0 %v685
            %v897 = vpop.f32.mrf.mxu0
            %v898 = vadd.f32 0.0, %v897
            %899 = vmatmul.f32.gmra.mxu0 %v688
            %v900 = vpop.f32.mrf.mxu0
            %v901 = vadd.f32 0.0, %v900
            %902 = vmatmul.f32.gmra.mxu0 %v691
            %v903 = vpop.f32.mrf.mxu0
            %v904 = vadd.f32 0.0, %v903
            %905 = vmatmul.f32.gmra.mxu0 %v694
            %v906 = vpop.f32.mrf.mxu0
            %v907 = vadd.f32 0.0, %v906
            %908 = vmatmul.f32.gmra.mxu0 %v697
            %v909 = vpop.f32.mrf.mxu0
            %v910 = vadd.f32 0.0, %v909
            %911 = vmatmul.f32.gmra.mxu0 %v700
            %v912 = vpop.f32.mrf.mxu0
            %v913 = vadd.f32 0.0, %v912
            %914 = vmatmul.f32.gmra.mxu0 %v703
            %v915 = vpop.f32.mrf.mxu0
            %v916 = vadd.f32 0.0, %v915
            %917 = vmatmul.f32.gmra.mxu0 %v706
            %v918 = vpop.f32.mrf.mxu0
            %v919 = vadd.f32 0.0, %v918
            %920 = vmatmul.f32.gmra.mxu0 %v709
            %v921 = vpop.f32.mrf.mxu0
            %v922 = vadd.f32 0.0, %v921
            %923 = vmatmul.f32.gmra.mxu0 %v712
            %v924 = vpop.f32.mrf.mxu0
            %v925 = vadd.f32 0.0, %v924
            %926 = vmatmul.f32.gmra.mxu0 %v715
            %v927 = vpop.f32.mrf.mxu0
            %v928 = vadd.f32 0.0, %v927
            %929 = vmatmul.f32.gmra.mxu0 %v718
            %v930 = vpop.f32.mrf.mxu0
            %v931 = vadd.f32 0.0, %v930
            %932 = vmatmul.f32.gmra.mxu0 %v721
            %v933 = vpop.f32.mrf.mxu0
            %v934 = vadd.f32 0.0, %v933
            %935 = vmatmul.f32.gmra.mxu0 %v724
            %v936 = vpop.f32.mrf.mxu0
            %v937 = vadd.f32 0.0, %v936
            %938 = vmatmul.f32.gmra.mxu0 %v727
            %v939 = vpop.f32.mrf.mxu0
            %v940 = vadd.f32 0.0, %v939
            %941 = vmatmul.f32.gmra.mxu0 %v730
            %v942 = vpop.f32.mrf.mxu0
            %v943 = vadd.f32 0.0, %v942
            %944 = vmatmul.f32.gmra.mxu0 %v733
            %v945 = vpop.f32.mrf.mxu0
            %v946 = vadd.f32 0.0, %v945
            %947 = vmatmul.f32.gmra.mxu0 %v736
            %v948 = vpop.f32.mrf.mxu0
            %v949 = vadd.f32 0.0, %v948
            %950 = vmatmul.f32.gmra.mxu0 %v739
            %v951 = vpop.f32.mrf.mxu0
            %v952 = vadd.f32 0.0, %v951
            %953 = vmatmul.f32.gmra.mxu0 %v742
            %v954 = vpop.f32.mrf.mxu0
            %v955 = vadd.f32 0.0, %v954
            %956 = vmatmul.f32.gmra.mxu0 %v745
            %v957 = vpop.f32.mrf.mxu0
            %v958 = vadd.f32 0.0, %v957
            %959 = vmatmul.f32.gmra.mxu0 %v748
            %v960 = vpop.f32.mrf.mxu0
            %v961 = vadd.f32 0.0, %v960
            %962 = vmatmul.f32.gmra.mxu0 %v751
            %v963 = vpop.f32.mrf.mxu0
            %v964 = vadd.f32 0.0, %v963
            %965 = vmatmul.f32.gmra.mxu0 %v754
            %v966 = vpop.f32.mrf.mxu0
            %v967 = vadd.f32 0.0, %v966
            %968 = vmatmul.f32.gmra.mxu0 %v757
            %v969 = vpop.f32.mrf.mxu0
            %v970 = vadd.f32 0.0, %v969
            %971 = vmatmul.f32.gmra.mxu0 %v760
            %v972 = vpop.f32.mrf.mxu0
            %v973 = vadd.f32 0.0, %v972
            %974 = vmatmul.f32.gmra.mxu0 %v763
            %v975 = vpop.f32.mrf.mxu0
            %v976 = vadd.f32 0.0, %v975
            %977 = vmatmul.f32.gmra.mxu0 %v766
            %v978 = vpop.f32.mrf.mxu0
            %v979 = vadd.f32 0.0, %v978
            %980 = vmatmul.f32.gmra.mxu0 %v769
            %v981 = vpop.f32.mrf.mxu0
            %v982 = vadd.f32 0.0, %v981
            %983 = vmatmul.f32.gmra.mxu0 %v772
            %v984 = vpop.f32.mrf.mxu0
            %v985 = vadd.f32 0.0, %v984
            %986 = vmatmul.f32.gmra.mxu0 %v775
            %v987 = vpop.f32.mrf.mxu0
            %v988 = vadd.f32 0.0, %v987
            %989 = vmatmul.f32.gmra.mxu0 %v778
            %v990 = vpop.f32.mrf.mxu0
            %v991 = vadd.f32 0.0, %v990
            %992 = vmatmul.f32.gmra.mxu0 %v781
            %v993 = vpop.f32.mrf.mxu0
            %v994 = vadd.f32 0.0, %v993
            %995 = vmatmul.f32.gmra.mxu0 %v784
            %v996 = vpop.f32.mrf.mxu0
            %v997 = vadd.f32 0.0, %v996
            %998 = vmatmul.f32.gmra.mxu0 %v787
            %v999 = vpop.f32.mrf.mxu0
            %v1000 = vadd.f32 0.0, %v999
            %1001 = vmatmul.f32.gmra.mxu0 %v790
            %v1002 = vpop.f32.mrf.mxu0
            %v1003 = vadd.f32 0.0, %v1002
            %1004 = vmatmul.f32.gmra.mxu0 %v793
            %v1005 = vpop.f32.mrf.mxu0
            %v1006 = vadd.f32 0.0, %v1005
            %1007 = vmatmul.f32.gmra.mxu0 %v796
            %v1008 = vpop.f32.mrf.mxu0
            %v1009 = vadd.f32 0.0, %v1008
            %1010 = vmatmul.f32.gmra.mxu0 %v799
            %v1011 = vpop.f32.mrf.mxu0
            %v1012 = vadd.f32 0.0, %v1011
            %1013 = vmatmul.f32.gmra.mxu0 %v802
            %v1014 = vpop.f32.mrf.mxu0
            %v1015 = vadd.f32 0.0, %v1014
            %1016 = vmatmul.f32.gmra.mxu0 %v805
            %v1017 = vpop.f32.mrf.mxu0
            %v1018 = vadd.f32 0.0, %v1017
            %1019 = vmatmul.f32.gmra.mxu0 %v808
            %v1020 = vpop.f32.mrf.mxu0
            %v1021 = vadd.f32 0.0, %v1020
            %1022 = vmatmul.f32.gmra.mxu0 %v811
            %v1023 = vpop.f32.mrf.mxu0
            %v1024 = vadd.f32 0.0, %v1023
            %1025 = vmatmul.f32.gmra.mxu0 %v814
            %v1026 = vpop.f32.mrf.mxu0
            %v1027 = vadd.f32 0.0, %v1026
            %1028 = vmatmul.f32.gmra.mxu0 %v817
            %v1029 = vpop.f32.mrf.mxu0
            %v1030 = vadd.f32 0.0, %v1029
            %1031 = vmatmul.f32.gmra.mxu0 %v820
            %v1032 = vpop.f32.mrf.mxu0
            %v1033 = vadd.f32 0.0, %v1032
            %1034 = vmatmul.f32.gmra.mxu0 %v823
            %v1035 = vpop.f32.mrf.mxu0
            %v1036 = vadd.f32 0.0, %v1035
            %1037 = vmatmul.f32.gmra.mxu0 %v826
            %v1038 = vpop.f32.mrf.mxu0
            %v1039 = vadd.f32 0.0, %v1038
            %1040 = vmatmul.f32.gmra.mxu0 %v829
            %v1041 = vpop.f32.mrf.mxu0
            %v1042 = vadd.f32 0.0, %v1041
            %1043 = vmatmul.f32.gmra.mxu0 %v832
            %v1044 = vpop.f32.mrf.mxu0
            %v1045 = vadd.f32 0.0, %v1044
            %1046 = vdwg.mxu0
            %v1047 = vpack.c.bf16 %v856, %v856
            %v1048 = vpack.c.bf16 %v859, %v859
            %v1049 = vpack.c.bf16 %v862, %v862
            %v1050 = vpack.c.bf16 %v865, %v865
            %v1051 = vpack.c.bf16 %v868, %v868
            %v1052 = vpack.c.bf16 %v871, %v871
            %v1053 = vpack.c.bf16 %v874, %v874
            %v1054 = vpack.c.bf16 %v877, %v877
            %v1055 = vpack.c.bf16 %v880, %v880
            %v1056 = vpack.c.bf16 %v883, %v883
            %v1057 = vpack.c.bf16 %v886, %v886
            %v1058 = vpack.c.bf16 %v889, %v889
            %v1059 = vpack.c.bf16 %v892, %v892
            %v1060 = vpack.c.bf16 %v895, %v895
            %v1061 = vpack.c.bf16 %v898, %v898
            %v1062 = vpack.c.bf16 %v901, %v901
            %v1063 = vpack.c.bf16 %v904, %v904
            %v1064 = vpack.c.bf16 %v907, %v907
            %v1065 = vpack.c.bf16 %v910, %v910
            %v1066 = vpack.c.bf16 %v913, %v913
            %v1067 = vpack.c.bf16 %v916, %v916
            %v1068 = vpack.c.bf16 %v919, %v919
            %v1069 = vpack.c.bf16 %v922, %v922
            %v1070 = vpack.c.bf16 %v925, %v925
            %v1071 = vpack.c.bf16 %v928, %v928
            %v1072 = vpack.c.bf16 %v931, %v931
            %v1073 = vpack.c.bf16 %v934, %v934
            %v1074 = vpack.c.bf16 %v937, %v937
            %v1075 = vpack.c.bf16 %v940, %v940
            %v1076 = vpack.c.bf16 %v943, %v943
            %v1077 = vpack.c.bf16 %v946, %v946
            %v1078 = vpack.c.bf16 %v949, %v949
            %v1079 = vpack.c.bf16 %v952, %v952
            %v1080 = vpack.c.bf16 %v955, %v955
            %v1081 = vpack.c.bf16 %v958, %v958
            %v1082 = vpack.c.bf16 %v961, %v961
            %v1083 = vpack.c.bf16 %v964, %v964
            %v1084 = vpack.c.bf16 %v967, %v967
            %v1085 = vpack.c.bf16 %v970, %v970
            %v1086 = vpack.c.bf16 %v973, %v973
            %v1087 = vpack.c.bf16 %v976, %v976
            %v1088 = vpack.c.bf16 %v979, %v979
            %v1089 = vpack.c.bf16 %v982, %v982
            %v1090 = vpack.c.bf16 %v985, %v985
            %v1091 = vpack.c.bf16 %v988, %v988
            %v1092 = vpack.c.bf16 %v991, %v991
            %v1093 = vpack.c.bf16 %v994, %v994
            %v1094 = vpack.c.bf16 %v997, %v997
            %v1095 = vpack.c.bf16 %v1000, %v1000
            %v1096 = vpack.c.bf16 %v1003, %v1003
            %v1097 = vpack.c.bf16 %v1006, %v1006
            %v1098 = vpack.c.bf16 %v1009, %v1009
            %v1099 = vpack.c.bf16 %v1012, %v1012
            %v1100 = vpack.c.bf16 %v1015, %v1015
            %v1101 = vpack.c.bf16 %v1018, %v1018
            %v1102 = vpack.c.bf16 %v1021, %v1021
            %v1103 = vpack.c.bf16 %v1024, %v1024
            %v1104 = vpack.c.bf16 %v1027, %v1027
            %v1105 = vpack.c.bf16 %v1030, %v1030
            %v1106 = vpack.c.bf16 %v1033, %v1033
            %v1107 = vpack.c.bf16 %v1036, %v1036
            %v1108 = vpack.c.bf16 %v1039, %v1039
            %v1109 = vpack.c.bf16 %v1042, %v1042
            %v1110 = vpack.c.bf16 %v1045, %v1045
            %s1111 = sshra.s32 %s566, 3
            %s1112 = sand.u32 %s566, 7
            %s1113 = smul.addr %s1111, 4
            %s1114 = scalar_lea.vmem [#allocation2], %s1113
            %vm1115 = vcmask 60416
            %1116 = vst.msk [vmem:[%s1114] sm:$0xf] %vm1115, %v1047
            %1117 = vst.msk [vmem:[%s1114 + $0x4] sm:$0xf] %vm1115, %v1048
            %1118 = vst.msk [vmem:[%s1114 + $0x8] sm:$0xf] %vm1115, %v1049
            %1119 = vst.msk [vmem:[%s1114 + $0xc] sm:$0xf] %vm1115, %v1050
            %1120 = vst.msk [vmem:[%s1114 + $0x10] sm:$0xf] %vm1115, %v1051
            %1121 = vst.msk [vmem:[%s1114 + $0x14] sm:$0xf] %vm1115, %v1052
            %1122 = vst.msk [vmem:[%s1114 + $0x18] sm:$0xf] %vm1115, %v1053
            %1123 = vst.msk [vmem:[%s1114 + $0x1c] sm:$0xf] %vm1115, %v1054
            %1124 = vst.msk [vmem:[%s1114 + $0x20] sm:$0xf] %vm1115, %v1055
            %1125 = vst.msk [vmem:[%s1114 + $0x24] sm:$0xf] %vm1115, %v1056
            %1126 = vst.msk [vmem:[%s1114 + $0x28] sm:$0xf] %vm1115, %v1057
            %1127 = vst.msk [vmem:[%s1114 + $0x2c] sm:$0xf] %vm1115, %v1058
            %1128 = vst.msk [vmem:[%s1114 + $0x30] sm:$0xf] %vm1115, %v1059
            %1129 = vst.msk [vmem:[%s1114 + $0x34] sm:$0xf] %vm1115, %v1060
            %1130 = vst.msk [vmem:[%s1114 + $0x38] sm:$0xf] %vm1115, %v1061
            %1131 = vst.msk [vmem:[%s1114 + $0x3c] sm:$0xf] %vm1115, %v1062
            %1132 = vst.msk [vmem:[%s1114 + $0x40] sm:$0xf] %vm1115, %v1063
            %1133 = vst.msk [vmem:[%s1114 + $0x44] sm:$0xf] %vm1115, %v1064
            %1134 = vst.msk [vmem:[%s1114 + $0x48] sm:$0xf] %vm1115, %v1065
            %1135 = vst.msk [vmem:[%s1114 + $0x4c] sm:$0xf] %vm1115, %v1066
            %1136 = vst.msk [vmem:[%s1114 + $0x50] sm:$0xf] %vm1115, %v1067
            %1137 = vst.msk [vmem:[%s1114 + $0x54] sm:$0xf] %vm1115, %v1068
            %1138 = vst.msk [vmem:[%s1114 + $0x58] sm:$0xf] %vm1115, %v1069
            %1139 = vst.msk [vmem:[%s1114 + $0x5c] sm:$0xf] %vm1115, %v1070
            %1140 = vst.msk [vmem:[%s1114 + $0x60] sm:$0xf] %vm1115, %v1071
            %1141 = vst.msk [vmem:[%s1114 + $0x64] sm:$0xf] %vm1115, %v1072
            %1142 = vst.msk [vmem:[%s1114 + $0x68] sm:$0xf] %vm1115, %v1073
            %1143 = vst.msk [vmem:[%s1114 + $0x6c] sm:$0xf] %vm1115, %v1074
            %1144 = vst.msk [vmem:[%s1114 + $0x70] sm:$0xf] %vm1115, %v1075
            %1145 = vst.msk [vmem:[%s1114 + $0x74] sm:$0xf] %vm1115, %v1076
            %1146 = vst.msk [vmem:[%s1114 + $0x78] sm:$0xf] %vm1115, %v1077
            %1147 = vst.msk [vmem:[%s1114 + $0x7c] sm:$0xf] %vm1115, %v1078
            %1148 = vst.msk [vmem:[%s1114 + $0x80] sm:$0xf] %vm1115, %v1079
            %1149 = vst.msk [vmem:[%s1114 + $0x84] sm:$0xf] %vm1115, %v1080
            %1150 = vst.msk [vmem:[%s1114 + $0x88] sm:$0xf] %vm1115, %v1081
            %1151 = vst.msk [vmem:[%s1114 + $0x8c] sm:$0xf] %vm1115, %v1082
            %1152 = vst.msk [vmem:[%s1114 + $0x90] sm:$0xf] %vm1115, %v1083
            %1153 = vst.msk [vmem:[%s1114 + $0x94] sm:$0xf] %vm1115, %v1084
            %1154 = vst.msk [vmem:[%s1114 + $0x98] sm:$0xf] %vm1115, %v1085
            %1155 = vst.msk [vmem:[%s1114 + $0x9c] sm:$0xf] %vm1115, %v1086
            %1156 = vst.msk [vmem:[%s1114 + $0xa0] sm:$0xf] %vm1115, %v1087
            %1157 = vst.msk [vmem:[%s1114 + $0xa4] sm:$0xf] %vm1115, %v1088
            %1158 = vst.msk [vmem:[%s1114 + $0xa8] sm:$0xf] %vm1115, %v1089
            %1159 = vst.msk [vmem:[%s1114 + $0xac] sm:$0xf] %vm1115, %v1090
            %1160 = vst.msk [vmem:[%s1114 + $0xb0] sm:$0xf] %vm1115, %v1091
            %1161 = vst.msk [vmem:[%s1114 + $0xb4] sm:$0xf] %vm1115, %v1092
            %1162 = vst.msk [vmem:[%s1114 + $0xb8] sm:$0xf] %vm1115, %v1093
            %1163 = vst.msk [vmem:[%s1114 + $0xbc] sm:$0xf] %vm1115, %v1094
            %1164 = vst.msk [vmem:[%s1114 + $0xc0] sm:$0xf] %vm1115, %v1095
            %1165 = vst.msk [vmem:[%s1114 + $0xc4] sm:$0xf] %vm1115, %v1096
            %1166 = vst.msk [vmem:[%s1114 + $0xc8] sm:$0xf] %vm1115, %v1097
            %1167 = vst.msk [vmem:[%s1114 + $0xcc] sm:$0xf] %vm1115, %v1098
            %1168 = vst.msk [vmem:[%s1114 + $0xd0] sm:$0xf] %vm1115, %v1099
            %1169 = vst.msk [vmem:[%s1114 + $0xd4] sm:$0xf] %vm1115, %v1100
            %1170 = vst.msk [vmem:[%s1114 + $0xd8] sm:$0xf] %vm1115, %v1101
            %1171 = vst.msk [vmem:[%s1114 + $0xdc] sm:$0xf] %vm1115, %v1102
            %1172 = vst.msk [vmem:[%s1114 + $0xe0] sm:$0xf] %vm1115, %v1103
            %1173 = vst.msk [vmem:[%s1114 + $0xe4] sm:$0xf] %vm1115, %v1104
            %1174 = vst.msk [vmem:[%s1114 + $0xe8] sm:$0xf] %vm1115, %v1105
            %1175 = vst.msk [vmem:[%s1114 + $0xec] sm:$0xf] %vm1115, %v1106
            %1176 = vst.msk [vmem:[%s1114 + $0xf0] sm:$0xf] %vm1115, %v1107
            %1177 = vst.msk [vmem:[%s1114 + $0xf4] sm:$0xf] %vm1115, %v1108
            %1178 = vst.msk [vmem:[%s1114 + $0xf8] sm:$0xf] %vm1115, %v1109
            %1179 = vst.msk [vmem:[%s1114 + $0xfc] sm:$0xf] %vm1115, %v1110
          $region95: #{gcn_learn_forward.1} parent=90 // pred_fallthru
            _
          %p1180 = scmp.eq.s32.totalorder %s27, 1
          // Predicated region
          $region96: #{gcn_learn_forward.1} parent=90 // pred_check
            %p1181 = pneg %p1180
          $region97: #{gcn_learn_forward.1} parent=90 // pred_check_branch
            %1183 = sbr.rel (%p1181) target = $region99
          $region98: #{gcn_learn_forward.1} parent=90 // pred_region
            %s1184 = scalar_lea.vmem [#allocation3], %s566
            %v1185 = vld [vmem:[%s1184] sm:$0xff]
            %v1186 = vld [vmem:[%s1184 + $0x8] sm:$0xff]
            %v1187 = vld [vmem:[%s1184 + $0x10] sm:$0xff]
            %v1188 = vld [vmem:[%s1184 + $0x18] sm:$0xff]
            %v1189 = vld [vmem:[%s1184 + $0x20] sm:$0xff]
            %v1190 = vld [vmem:[%s1184 + $0x28] sm:$0xff]
            %v1191 = vld [vmem:[%s1184 + $0x30] sm:$0xff]
            %v1192 = vld [vmem:[%s1184 + $0x38] sm:$0xff]
            %v1193 = vld [vmem:[%s1184 + $0x40] sm:$0xff]
            %v1194 = vld [vmem:[%s1184 + $0x48] sm:$0xff]
            %v1195 = vld [vmem:[%s1184 + $0x50] sm:$0xff]
            %v1196 = vld [vmem:[%s1184 + $0x58] sm:$0xff]
            %v1197 = vld [vmem:[%s1184 + $0x60] sm:$0xff]
            %v1198 = vld [vmem:[%s1184 + $0x68] sm:$0xff]
            %v1199 = vld [vmem:[%s1184 + $0x70] sm:$0xff]
            %v1200 = vld [vmem:[%s1184 + $0x78] sm:$0xff]
            %v1201 = vld [vmem:[%s1184 + $0x80] sm:$0xff]
            %v1202 = vld [vmem:[%s1184 + $0x88] sm:$0xff]
            %v1203 = vld [vmem:[%s1184 + $0x90] sm:$0xff]
            %v1204 = vld [vmem:[%s1184 + $0x98] sm:$0xff]
            %v1205 = vld [vmem:[%s1184 + $0xa0] sm:$0xff]
            %v1206 = vld [vmem:[%s1184 + $0xa8] sm:$0xff]
            %v1207 = vld [vmem:[%s1184 + $0xb0] sm:$0xff]
            %v1208 = vld [vmem:[%s1184 + $0xb8] sm:$0xff]
            %v1209 = vld [vmem:[%s1184 + $0xc0] sm:$0xff]
            %v1210 = vld [vmem:[%s1184 + $0xc8] sm:$0xff]
            %v1211 = vld [vmem:[%s1184 + $0xd0] sm:$0xff]
            %v1212 = vld [vmem:[%s1184 + $0xd8] sm:$0xff]
            %v1213 = vld [vmem:[%s1184 + $0xe0] sm:$0xff]
            %v1214 = vld [vmem:[%s1184 + $0xe8] sm:$0xff]
            %v1215 = vld [vmem:[%s1184 + $0xf0] sm:$0xff]
            %v1216 = vld [vmem:[%s1184 + $0xf8] sm:$0xff]
            %v1217 = vld [vmem:[%s1184 + $0x100] sm:$0xff]
            %v1218 = vld [vmem:[%s1184 + $0x108] sm:$0xff]
            %v1219 = vld [vmem:[%s1184 + $0x110] sm:$0xff]
            %v1220 = vld [vmem:[%s1184 + $0x118] sm:$0xff]
            %v1221 = vld [vmem:[%s1184 + $0x120] sm:$0xff]
            %v1222 = vld [vmem:[%s1184 + $0x128] sm:$0xff]
            %v1223 = vld [vmem:[%s1184 + $0x130] sm:$0xff]
            %v1224 = vld [vmem:[%s1184 + $0x138] sm:$0xff]
            %v1225 = vld [vmem:[%s1184 + $0x140] sm:$0xff]
            %v1226 = vld [vmem:[%s1184 + $0x148] sm:$0xff]
            %v1227 = vld [vmem:[%s1184 + $0x150] sm:$0xff]
            %v1228 = vld [vmem:[%s1184 + $0x158] sm:$0xff]
            %v1229 = vld [vmem:[%s1184 + $0x160] sm:$0xff]
            %v1230 = vld [vmem:[%s1184 + $0x168] sm:$0xff]
            %v1231 = vld [vmem:[%s1184 + $0x170] sm:$0xff]
            %v1232 = vld [vmem:[%s1184 + $0x178] sm:$0xff]
            %v1233 = vld [vmem:[%s1184 + $0x180] sm:$0xff]
            %v1234 = vld [vmem:[%s1184 + $0x188] sm:$0xff]
            %v1235 = vld [vmem:[%s1184 + $0x190] sm:$0xff]
            %v1236 = vld [vmem:[%s1184 + $0x198] sm:$0xff]
            %v1237 = vld [vmem:[%s1184 + $0x1a0] sm:$0xff]
            %v1238 = vld [vmem:[%s1184 + $0x1a8] sm:$0xff]
            %v1239 = vld [vmem:[%s1184 + $0x1b0] sm:$0xff]
            %v1240 = vld [vmem:[%s1184 + $0x1b8] sm:$0xff]
            %v1241 = vld [vmem:[%s1184 + $0x1c0] sm:$0xff]
            %v1242 = vld [vmem:[%s1184 + $0x1c8] sm:$0xff]
            %v1243 = vld [vmem:[%s1184 + $0x1d0] sm:$0xff]
            %v1244 = vld [vmem:[%s1184 + $0x1d8] sm:$0xff]
            %v1245 = vld [vmem:[%s1184 + $0x1e0] sm:$0xff]
            %v1246 = vld [vmem:[%s1184 + $0x1e8] sm:$0xff]
            %v1247 = vld [vmem:[%s1184 + $0x1f0] sm:$0xff]
            %v1248 = vld [vmem:[%s1184 + $0x1f8] sm:$0xff]
            %v1249 = vld [vmem:[%s4] sm:$0xff]
            %vm1250 = vcmask 64512
            %v1252 = vsel %vm1250, %v1185, 0
            %v1255 = vsel %vm1250, %v1186, 0
            %v1258 = vsel %vm1250, %v1187, 0
            %v1261 = vsel %vm1250, %v1188, 0
            %v1264 = vsel %vm1250, %v1189, 0
            %v1267 = vsel %vm1250, %v1190, 0
            %v1270 = vsel %vm1250, %v1191, 0
            %v1273 = vsel %vm1250, %v1192, 0
            %v1276 = vsel %vm1250, %v1193, 0
            %v1279 = vsel %vm1250, %v1194, 0
            %v1282 = vsel %vm1250, %v1195, 0
            %v1285 = vsel %vm1250, %v1196, 0
            %v1288 = vsel %vm1250, %v1197, 0
            %v1291 = vsel %vm1250, %v1198, 0
            %v1294 = vsel %vm1250, %v1199, 0
            %v1297 = vsel %vm1250, %v1200, 0
            %v1300 = vsel %vm1250, %v1201, 0
            %v1303 = vsel %vm1250, %v1202, 0
            %v1306 = vsel %vm1250, %v1203, 0
            %v1309 = vsel %vm1250, %v1204, 0
            %v1312 = vsel %vm1250, %v1205, 0
            %v1315 = vsel %vm1250, %v1206, 0
            %v1318 = vsel %vm1250, %v1207, 0
            %v1321 = vsel %vm1250, %v1208, 0
            %v1324 = vsel %vm1250, %v1209, 0
            %v1327 = vsel %vm1250, %v1210, 0
            %v1330 = vsel %vm1250, %v1211, 0
            %v1333 = vsel %vm1250, %v1212, 0
            %v1336 = vsel %vm1250, %v1213, 0
            %v1339 = vsel %vm1250, %v1214, 0
            %v1342 = vsel %vm1250, %v1215, 0
            %v1345 = vsel %vm1250, %v1216, 0
            %v1348 = vsel %vm1250, %v1217, 0
            %v1351 = vsel %vm1250, %v1218, 0
            %v1354 = vsel %vm1250, %v1219, 0
            %v1357 = vsel %vm1250, %v1220, 0
            %v1360 = vsel %vm1250, %v1221, 0
            %v1363 = vsel %vm1250, %v1222, 0
            %v1366 = vsel %vm1250, %v1223, 0
            %v1369 = vsel %vm1250, %v1224, 0
            %v1372 = vsel %vm1250, %v1225, 0
            %v1375 = vsel %vm1250, %v1226, 0
            %v1378 = vsel %vm1250, %v1227, 0
            %v1381 = vsel %vm1250, %v1228, 0
            %v1384 = vsel %vm1250, %v1229, 0
            %v1387 = vsel %vm1250, %v1230, 0
            %v1390 = vsel %vm1250, %v1231, 0
            %v1393 = vsel %vm1250, %v1232, 0
            %v1396 = vsel %vm1250, %v1233, 0
            %v1399 = vsel %vm1250, %v1234, 0
            %v1402 = vsel %vm1250, %v1235, 0
            %v1405 = vsel %vm1250, %v1236, 0
            %v1408 = vsel %vm1250, %v1237, 0
            %v1411 = vsel %vm1250, %v1238, 0
            %v1414 = vsel %vm1250, %v1239, 0
            %v1417 = vsel %vm1250, %v1240, 0
            %v1420 = vsel %vm1250, %v1241, 0
            %v1423 = vsel %vm1250, %v1242, 0
            %v1426 = vsel %vm1250, %v1243, 0
            %v1429 = vsel %vm1250, %v1244, 0
            %v1432 = vsel %vm1250, %v1245, 0
            %v1435 = vsel %vm1250, %v1246, 0
            %v1438 = vsel %vm1250, %v1247, 0
            %v1441 = vsel %vm1250, %v1248, 0
            %1443 = vmatpush.msra.mxu0 0.0
            %1444 = vmatpush.msra.mxu0 0.0
            %1445 = vmatpush.msra.mxu0 0.0
            %1446 = vmatpush.msra.mxu0 0.0
            %1447 = vmatpush.msra.mxu0 0.0
            %1448 = vmatpush.msra.mxu0 0.0
            %1449 = vmatpush.msra.mxu0 0.0
            %1450 = vmatpush.msra.mxu0 0.0
            %1451 = vmatpush.msra.mxu0 0.0
            %1452 = vmatpush.msra.mxu0 0.0
            %1453 = vmatpush.msra.mxu0 0.0
            %1454 = vmatpush.msra.mxu0 0.0
            %1455 = vmatpush.msra.mxu0 0.0
            %1456 = vmatpush.msra.mxu0 0.0
            %1457 = vmatpush.msra.mxu0 0.0
            %1458 = vmatpush.msra.mxu0 %v1249
            %1459 = vmatmul.f32.gmra.mxu0 %v1252
            %v1460 = vpop.f32.mrf.mxu0
            %v1461 = vadd.f32 0.0, %v1460
            %1462 = vmatmul.f32.gmra.mxu0 %v1255
            %v1463 = vpop.f32.mrf.mxu0
            %v1464 = vadd.f32 0.0, %v1463
            %1465 = vmatmul.f32.gmra.mxu0 %v1258
            %v1466 = vpop.f32.mrf.mxu0
            %v1467 = vadd.f32 0.0, %v1466
            %1468 = vmatmul.f32.gmra.mxu0 %v1261
            %v1469 = vpop.f32.mrf.mxu0
            %v1470 = vadd.f32 0.0, %v1469
            %1471 = vmatmul.f32.gmra.mxu0 %v1264
            %v1472 = vpop.f32.mrf.mxu0
            %v1473 = vadd.f32 0.0, %v1472
            %1474 = vmatmul.f32.gmra.mxu0 %v1267
            %v1475 = vpop.f32.mrf.mxu0
            %v1476 = vadd.f32 0.0, %v1475
            %1477 = vmatmul.f32.gmra.mxu0 %v1270
            %v1478 = vpop.f32.mrf.mxu0
            %v1479 = vadd.f32 0.0, %v1478
            %1480 = vmatmul.f32.gmra.mxu0 %v1273
            %v1481 = vpop.f32.mrf.mxu0
            %v1482 = vadd.f32 0.0, %v1481
            %1483 = vmatmul.f32.gmra.mxu0 %v1276
            %v1484 = vpop.f32.mrf.mxu0
            %v1485 = vadd.f32 0.0, %v1484
            %1486 = vmatmul.f32.gmra.mxu0 %v1279
            %v1487 = vpop.f32.mrf.mxu0
            %v1488 = vadd.f32 0.0, %v1487
            %1489 = vmatmul.f32.gmra.mxu0 %v1282
            %v1490 = vpop.f32.mrf.mxu0
            %v1491 = vadd.f32 0.0, %v1490
            %1492 = vmatmul.f32.gmra.mxu0 %v1285
            %v1493 = vpop.f32.mrf.mxu0
            %v1494 = vadd.f32 0.0, %v1493
            %1495 = vmatmul.f32.gmra.mxu0 %v1288
            %v1496 = vpop.f32.mrf.mxu0
            %v1497 = vadd.f32 0.0, %v1496
            %1498 = vmatmul.f32.gmra.mxu0 %v1291
            %v1499 = vpop.f32.mrf.mxu0
            %v1500 = vadd.f32 0.0, %v1499
            %1501 = vmatmul.f32.gmra.mxu0 %v1294
            %v1502 = vpop.f32.mrf.mxu0
            %v1503 = vadd.f32 0.0, %v1502
            %1504 = vmatmul.f32.gmra.mxu0 %v1297
            %v1505 = vpop.f32.mrf.mxu0
            %v1506 = vadd.f32 0.0, %v1505
            %1507 = vmatmul.f32.gmra.mxu0 %v1300
            %v1508 = vpop.f32.mrf.mxu0
            %v1509 = vadd.f32 0.0, %v1508
            %1510 = vmatmul.f32.gmra.mxu0 %v1303
            %v1511 = vpop.f32.mrf.mxu0
            %v1512 = vadd.f32 0.0, %v1511
            %1513 = vmatmul.f32.gmra.mxu0 %v1306
            %v1514 = vpop.f32.mrf.mxu0
            %v1515 = vadd.f32 0.0, %v1514
            %1516 = vmatmul.f32.gmra.mxu0 %v1309
            %v1517 = vpop.f32.mrf.mxu0
            %v1518 = vadd.f32 0.0, %v1517
            %1519 = vmatmul.f32.gmra.mxu0 %v1312
            %v1520 = vpop.f32.mrf.mxu0
            %v1521 = vadd.f32 0.0, %v1520
            %1522 = vmatmul.f32.gmra.mxu0 %v1315
            %v1523 = vpop.f32.mrf.mxu0
            %v1524 = vadd.f32 0.0, %v1523
            %1525 = vmatmul.f32.gmra.mxu0 %v1318
            %v1526 = vpop.f32.mrf.mxu0
            %v1527 = vadd.f32 0.0, %v1526
            %1528 = vmatmul.f32.gmra.mxu0 %v1321
            %v1529 = vpop.f32.mrf.mxu0
            %v1530 = vadd.f32 0.0, %v1529
            %1531 = vmatmul.f32.gmra.mxu0 %v1324
            %v1532 = vpop.f32.mrf.mxu0
            %v1533 = vadd.f32 0.0, %v1532
            %1534 = vmatmul.f32.gmra.mxu0 %v1327
            %v1535 = vpop.f32.mrf.mxu0
            %v1536 = vadd.f32 0.0, %v1535
            %1537 = vmatmul.f32.gmra.mxu0 %v1330
            %v1538 = vpop.f32.mrf.mxu0
            %v1539 = vadd.f32 0.0, %v1538
            %1540 = vmatmul.f32.gmra.mxu0 %v1333
            %v1541 = vpop.f32.mrf.mxu0
            %v1542 = vadd.f32 0.0, %v1541
            %1543 = vmatmul.f32.gmra.mxu0 %v1336
            %v1544 = vpop.f32.mrf.mxu0
            %v1545 = vadd.f32 0.0, %v1544
            %1546 = vmatmul.f32.gmra.mxu0 %v1339
            %v1547 = vpop.f32.mrf.mxu0
            %v1548 = vadd.f32 0.0, %v1547
            %1549 = vmatmul.f32.gmra.mxu0 %v1342
            %v1550 = vpop.f32.mrf.mxu0
            %v1551 = vadd.f32 0.0, %v1550
            %1552 = vmatmul.f32.gmra.mxu0 %v1345
            %v1553 = vpop.f32.mrf.mxu0
            %v1554 = vadd.f32 0.0, %v1553
            %1555 = vmatmul.f32.gmra.mxu0 %v1348
            %v1556 = vpop.f32.mrf.mxu0
            %v1557 = vadd.f32 0.0, %v1556
            %1558 = vmatmul.f32.gmra.mxu0 %v1351
            %v1559 = vpop.f32.mrf.mxu0
            %v1560 = vadd.f32 0.0, %v1559
            %1561 = vmatmul.f32.gmra.mxu0 %v1354
            %v1562 = vpop.f32.mrf.mxu0
            %v1563 = vadd.f32 0.0, %v1562
            %1564 = vmatmul.f32.gmra.mxu0 %v1357
            %v1565 = vpop.f32.mrf.mxu0
            %v1566 = vadd.f32 0.0, %v1565
            %1567 = vmatmul.f32.gmra.mxu0 %v1360
            %v1568 = vpop.f32.mrf.mxu0
            %v1569 = vadd.f32 0.0, %v1568
            %1570 = vmatmul.f32.gmra.mxu0 %v1363
            %v1571 = vpop.f32.mrf.mxu0
            %v1572 = vadd.f32 0.0, %v1571
            %1573 = vmatmul.f32.gmra.mxu0 %v1366
            %v1574 = vpop.f32.mrf.mxu0
            %v1575 = vadd.f32 0.0, %v1574
            %1576 = vmatmul.f32.gmra.mxu0 %v1369
            %v1577 = vpop.f32.mrf.mxu0
            %v1578 = vadd.f32 0.0, %v1577
            %1579 = vmatmul.f32.gmra.mxu0 %v1372
            %v1580 = vpop.f32.mrf.mxu0
            %v1581 = vadd.f32 0.0, %v1580
            %1582 = vmatmul.f32.gmra.mxu0 %v1375
            %v1583 = vpop.f32.mrf.mxu0
            %v1584 = vadd.f32 0.0, %v1583
            %1585 = vmatmul.f32.gmra.mxu0 %v1378
            %v1586 = vpop.f32.mrf.mxu0
            %v1587 = vadd.f32 0.0, %v1586
            %1588 = vmatmul.f32.gmra.mxu0 %v1381
            %v1589 = vpop.f32.mrf.mxu0
            %v1590 = vadd.f32 0.0, %v1589
            %1591 = vmatmul.f32.gmra.mxu0 %v1384
            %v1592 = vpop.f32.mrf.mxu0
            %v1593 = vadd.f32 0.0, %v1592
            %1594 = vmatmul.f32.gmra.mxu0 %v1387
            %v1595 = vpop.f32.mrf.mxu0
            %v1596 = vadd.f32 0.0, %v1595
            %1597 = vmatmul.f32.gmra.mxu0 %v1390
            %v1598 = vpop.f32.mrf.mxu0
            %v1599 = vadd.f32 0.0, %v1598
            %1600 = vmatmul.f32.gmra.mxu0 %v1393
            %v1601 = vpop.f32.mrf.mxu0
            %v1602 = vadd.f32 0.0, %v1601
            %1603 = vmatmul.f32.gmra.mxu0 %v1396
            %v1604 = vpop.f32.mrf.mxu0
            %v1605 = vadd.f32 0.0, %v1604
            %1606 = vmatmul.f32.gmra.mxu0 %v1399
            %v1607 = vpop.f32.mrf.mxu0
            %v1608 = vadd.f32 0.0, %v1607
            %1609 = vmatmul.f32.gmra.mxu0 %v1402
            %v1610 = vpop.f32.mrf.mxu0
            %v1611 = vadd.f32 0.0, %v1610
            %1612 = vmatmul.f32.gmra.mxu0 %v1405
            %v1613 = vpop.f32.mrf.mxu0
            %v1614 = vadd.f32 0.0, %v1613
            %1615 = vmatmul.f32.gmra.mxu0 %v1408
            %v1616 = vpop.f32.mrf.mxu0
            %v1617 = vadd.f32 0.0, %v1616
            %1618 = vmatmul.f32.gmra.mxu0 %v1411
            %v1619 = vpop.f32.mrf.mxu0
            %v1620 = vadd.f32 0.0, %v1619
            %1621 = vmatmul.f32.gmra.mxu0 %v1414
            %v1622 = vpop.f32.mrf.mxu0
            %v1623 = vadd.f32 0.0, %v1622
            %1624 = vmatmul.f32.gmra.mxu0 %v1417
            %v1625 = vpop.f32.mrf.mxu0
            %v1626 = vadd.f32 0.0, %v1625
            %1627 = vmatmul.f32.gmra.mxu0 %v1420
            %v1628 = vpop.f32.mrf.mxu0
            %v1629 = vadd.f32 0.0, %v1628
            %1630 = vmatmul.f32.gmra.mxu0 %v1423
            %v1631 = vpop.f32.mrf.mxu0
            %v1632 = vadd.f32 0.0, %v1631
            %1633 = vmatmul.f32.gmra.mxu0 %v1426
            %v1634 = vpop.f32.mrf.mxu0
            %v1635 = vadd.f32 0.0, %v1634
            %1636 = vmatmul.f32.gmra.mxu0 %v1429
            %v1637 = vpop.f32.mrf.mxu0
            %v1638 = vadd.f32 0.0, %v1637
            %1639 = vmatmul.f32.gmra.mxu0 %v1432
            %v1640 = vpop.f32.mrf.mxu0
            %v1641 = vadd.f32 0.0, %v1640
            %1642 = vmatmul.f32.gmra.mxu0 %v1435
            %v1643 = vpop.f32.mrf.mxu0
            %v1644 = vadd.f32 0.0, %v1643
            %1645 = vmatmul.f32.gmra.mxu0 %v1438
            %v1646 = vpop.f32.mrf.mxu0
            %v1647 = vadd.f32 0.0, %v1646
            %1648 = vmatmul.f32.gmra.mxu0 %v1441
            %v1649 = vpop.f32.mrf.mxu0
            %v1650 = vadd.f32 0.0, %v1649
            %1651 = vdwg.mxu0
            %v1652 = vpack.c.bf16 %v1461, %v1461
            %v1653 = vpack.c.bf16 %v1464, %v1464
            %v1654 = vpack.c.bf16 %v1467, %v1467
            %v1655 = vpack.c.bf16 %v1470, %v1470
            %v1656 = vpack.c.bf16 %v1473, %v1473
            %v1657 = vpack.c.bf16 %v1476, %v1476
            %v1658 = vpack.c.bf16 %v1479, %v1479
            %v1659 = vpack.c.bf16 %v1482, %v1482
            %v1660 = vpack.c.bf16 %v1485, %v1485
            %v1661 = vpack.c.bf16 %v1488, %v1488
            %v1662 = vpack.c.bf16 %v1491, %v1491
            %v1663 = vpack.c.bf16 %v1494, %v1494
            %v1664 = vpack.c.bf16 %v1497, %v1497
            %v1665 = vpack.c.bf16 %v1500, %v1500
            %v1666 = vpack.c.bf16 %v1503, %v1503
            %v1667 = vpack.c.bf16 %v1506, %v1506
            %v1668 = vpack.c.bf16 %v1509, %v1509
            %v1669 = vpack.c.bf16 %v1512, %v1512
            %v1670 = vpack.c.bf16 %v1515, %v1515
            %v1671 = vpack.c.bf16 %v1518, %v1518
            %v1672 = vpack.c.bf16 %v1521, %v1521
            %v1673 = vpack.c.bf16 %v1524, %v1524
            %v1674 = vpack.c.bf16 %v1527, %v1527
            %v1675 = vpack.c.bf16 %v1530, %v1530
            %v1676 = vpack.c.bf16 %v1533, %v1533
            %v1677 = vpack.c.bf16 %v1536, %v1536
            %v1678 = vpack.c.bf16 %v1539, %v1539
            %v1679 = vpack.c.bf16 %v1542, %v1542
            %v1680 = vpack.c.bf16 %v1545, %v1545
            %v1681 = vpack.c.bf16 %v1548, %v1548
            %v1682 = vpack.c.bf16 %v1551, %v1551
            %v1683 = vpack.c.bf16 %v1554, %v1554
            %v1684 = vpack.c.bf16 %v1557, %v1557
            %v1685 = vpack.c.bf16 %v1560, %v1560
            %v1686 = vpack.c.bf16 %v1563, %v1563
            %v1687 = vpack.c.bf16 %v1566, %v1566
            %v1688 = vpack.c.bf16 %v1569, %v1569
            %v1689 = vpack.c.bf16 %v1572, %v1572
            %v1690 = vpack.c.bf16 %v1575, %v1575
            %v1691 = vpack.c.bf16 %v1578, %v1578
            %v1692 = vpack.c.bf16 %v1581, %v1581
            %v1693 = vpack.c.bf16 %v1584, %v1584
            %v1694 = vpack.c.bf16 %v1587, %v1587
            %v1695 = vpack.c.bf16 %v1590, %v1590
            %v1696 = vpack.c.bf16 %v1593, %v1593
            %v1697 = vpack.c.bf16 %v1596, %v1596
            %v1698 = vpack.c.bf16 %v1599, %v1599
            %v1699 = vpack.c.bf16 %v1602, %v1602
            %v1700 = vpack.c.bf16 %v1605, %v1605
            %v1701 = vpack.c.bf16 %v1608, %v1608
            %v1702 = vpack.c.bf16 %v1611, %v1611
            %v1703 = vpack.c.bf16 %v1614, %v1614
            %v1704 = vpack.c.bf16 %v1617, %v1617
            %v1705 = vpack.c.bf16 %v1620, %v1620
            %v1706 = vpack.c.bf16 %v1623, %v1623
            %v1707 = vpack.c.bf16 %v1626, %v1626
            %v1708 = vpack.c.bf16 %v1629, %v1629
            %v1709 = vpack.c.bf16 %v1632, %v1632
            %v1710 = vpack.c.bf16 %v1635, %v1635
            %v1711 = vpack.c.bf16 %v1638, %v1638
            %v1712 = vpack.c.bf16 %v1641, %v1641
            %v1713 = vpack.c.bf16 %v1644, %v1644
            %v1714 = vpack.c.bf16 %v1647, %v1647
            %v1715 = vpack.c.bf16 %v1650, %v1650
            %s1716 = sshra.s32 %s566, 3
            %s1717 = sand.u32 %s566, 7
            %s1718 = smul.addr %s1716, 4
            %s1719 = scalar_lea.vmem [#allocation2], %s1718
            %vm1720 = vcmask 60416
            %1721 = vst.msk [vmem:[%s1719] sm:$0xf] %vm1720, %v1652
            %1722 = vst.msk [vmem:[%s1719 + $0x4] sm:$0xf] %vm1720, %v1653
            %1723 = vst.msk [vmem:[%s1719 + $0x8] sm:$0xf] %vm1720, %v1654
            %1724 = vst.msk [vmem:[%s1719 + $0xc] sm:$0xf] %vm1720, %v1655
            %1725 = vst.msk [vmem:[%s1719 + $0x10] sm:$0xf] %vm1720, %v1656
            %1726 = vst.msk [vmem:[%s1719 + $0x14] sm:$0xf] %vm1720, %v1657
            %1727 = vst.msk [vmem:[%s1719 + $0x18] sm:$0xf] %vm1720, %v1658
            %1728 = vst.msk [vmem:[%s1719 + $0x1c] sm:$0xf] %vm1720, %v1659
            %1729 = vst.msk [vmem:[%s1719 + $0x20] sm:$0xf] %vm1720, %v1660
            %1730 = vst.msk [vmem:[%s1719 + $0x24] sm:$0xf] %vm1720, %v1661
            %1731 = vst.msk [vmem:[%s1719 + $0x28] sm:$0xf] %vm1720, %v1662
            %1732 = vst.msk [vmem:[%s1719 + $0x2c] sm:$0xf] %vm1720, %v1663
            %1733 = vst.msk [vmem:[%s1719 + $0x30] sm:$0xf] %vm1720, %v1664
            %1734 = vst.msk [vmem:[%s1719 + $0x34] sm:$0xf] %vm1720, %v1665
            %1735 = vst.msk [vmem:[%s1719 + $0x38] sm:$0xf] %vm1720, %v1666
            %1736 = vst.msk [vmem:[%s1719 + $0x3c] sm:$0xf] %vm1720, %v1667
            %1737 = vst.msk [vmem:[%s1719 + $0x40] sm:$0xf] %vm1720, %v1668
            %1738 = vst.msk [vmem:[%s1719 + $0x44] sm:$0xf] %vm1720, %v1669
            %1739 = vst.msk [vmem:[%s1719 + $0x48] sm:$0xf] %vm1720, %v1670
            %1740 = vst.msk [vmem:[%s1719 + $0x4c] sm:$0xf] %vm1720, %v1671
            %1741 = vst.msk [vmem:[%s1719 + $0x50] sm:$0xf] %vm1720, %v1672
            %1742 = vst.msk [vmem:[%s1719 + $0x54] sm:$0xf] %vm1720, %v1673
            %1743 = vst.msk [vmem:[%s1719 + $0x58] sm:$0xf] %vm1720, %v1674
            %1744 = vst.msk [vmem:[%s1719 + $0x5c] sm:$0xf] %vm1720, %v1675
            %1745 = vst.msk [vmem:[%s1719 + $0x60] sm:$0xf] %vm1720, %v1676
            %1746 = vst.msk [vmem:[%s1719 + $0x64] sm:$0xf] %vm1720, %v1677
            %1747 = vst.msk [vmem:[%s1719 + $0x68] sm:$0xf] %vm1720, %v1678
            %1748 = vst.msk [vmem:[%s1719 + $0x6c] sm:$0xf] %vm1720, %v1679
            %1749 = vst.msk [vmem:[%s1719 + $0x70] sm:$0xf] %vm1720, %v1680
            %1750 = vst.msk [vmem:[%s1719 + $0x74] sm:$0xf] %vm1720, %v1681
            %1751 = vst.msk [vmem:[%s1719 + $0x78] sm:$0xf] %vm1720, %v1682
            %1752 = vst.msk [vmem:[%s1719 + $0x7c] sm:$0xf] %vm1720, %v1683
            %1753 = vst.msk [vmem:[%s1719 + $0x80] sm:$0xf] %vm1720, %v1684
            %1754 = vst.msk [vmem:[%s1719 + $0x84] sm:$0xf] %vm1720, %v1685
            %1755 = vst.msk [vmem:[%s1719 + $0x88] sm:$0xf] %vm1720, %v1686
            %1756 = vst.msk [vmem:[%s1719 + $0x8c] sm:$0xf] %vm1720, %v1687
            %1757 = vst.msk [vmem:[%s1719 + $0x90] sm:$0xf] %vm1720, %v1688
            %1758 = vst.msk [vmem:[%s1719 + $0x94] sm:$0xf] %vm1720, %v1689
            %1759 = vst.msk [vmem:[%s1719 + $0x98] sm:$0xf] %vm1720, %v1690
            %1760 = vst.msk [vmem:[%s1719 + $0x9c] sm:$0xf] %vm1720, %v1691
            %1761 = vst.msk [vmem:[%s1719 + $0xa0] sm:$0xf] %vm1720, %v1692
            %1762 = vst.msk [vmem:[%s1719 + $0xa4] sm:$0xf] %vm1720, %v1693
            %1763 = vst.msk [vmem:[%s1719 + $0xa8] sm:$0xf] %vm1720, %v1694
            %1764 = vst.msk [vmem:[%s1719 + $0xac] sm:$0xf] %vm1720, %v1695
            %1765 = vst.msk [vmem:[%s1719 + $0xb0] sm:$0xf] %vm1720, %v1696
            %1766 = vst.msk [vmem:[%s1719 + $0xb4] sm:$0xf] %vm1720, %v1697
            %1767 = vst.msk [vmem:[%s1719 + $0xb8] sm:$0xf] %vm1720, %v1698
            %1768 = vst.msk [vmem:[%s1719 + $0xbc] sm:$0xf] %vm1720, %v1699
            %1769 = vst.msk [vmem:[%s1719 + $0xc0] sm:$0xf] %vm1720, %v1700
            %1770 = vst.msk [vmem:[%s1719 + $0xc4] sm:$0xf] %vm1720, %v1701
            %1771 = vst.msk [vmem:[%s1719 + $0xc8] sm:$0xf] %vm1720, %v1702
            %1772 = vst.msk [vmem:[%s1719 + $0xcc] sm:$0xf] %vm1720, %v1703
            %1773 = vst.msk [vmem:[%s1719 + $0xd0] sm:$0xf] %vm1720, %v1704
            %1774 = vst.msk [vmem:[%s1719 + $0xd4] sm:$0xf] %vm1720, %v1705
            %1775 = vst.msk [vmem:[%s1719 + $0xd8] sm:$0xf] %vm1720, %v1706
            %1776 = vst.msk [vmem:[%s1719 + $0xdc] sm:$0xf] %vm1720, %v1707
            %1777 = vst.msk [vmem:[%s1719 + $0xe0] sm:$0xf] %vm1720, %v1708
            %1778 = vst.msk [vmem:[%s1719 + $0xe4] sm:$0xf] %vm1720, %v1709
            %1779 = vst.msk [vmem:[%s1719 + $0xe8] sm:$0xf] %vm1720, %v1710
            %1780 = vst.msk [vmem:[%s1719 + $0xec] sm:$0xf] %vm1720, %v1711
            %1781 = vst.msk [vmem:[%s1719 + $0xf0] sm:$0xf] %vm1720, %v1712
            %1782 = vst.msk [vmem:[%s1719 + $0xf4] sm:$0xf] %vm1720, %v1713
            %1783 = vst.msk [vmem:[%s1719 + $0xf8] sm:$0xf] %vm1720, %v1714
            %1784 = vst.msk [vmem:[%s1719 + $0xfc] sm:$0xf] %vm1720, %v1715
          $region99: #{gcn_learn_forward.1} parent=90 // pred_fallthru
            _
        $region91: #{gcn_learn_forward.1} parent=82 // pred_fallthru
          _
        %p1785 = scmp.eq.s32.totalorder %s29, 0
        // Predicated region
        $region100: #{gcn_learn_forward.1} parent=82 // pred_check
          %p1786 = pneg %p1785
        $region101: #{gcn_learn_forward.1} parent=82 // pred_check_branch
          %1788 = sbr.rel (%p1786) target = $region103
        $region102: #{gcn_learn_forward.1} parent=82 // pred_region
          %vm1789 = vcmask 64512
          %1790 = vst.msk [vmem:[#allocation5] sm:$0xff] %vm1789, 0.0
          %1791 = vst.msk [vmem:[#allocation5 + $0x8] sm:$0xff] %vm1789, 0.0
          %1792 = vst.msk [vmem:[#allocation5 + $0x10] sm:$0xff] %vm1789, 0.0
          %1793 = vst.msk [vmem:[#allocation5 + $0x18] sm:$0xff] %vm1789, 0.0
          %1794 = vst.msk [vmem:[#allocation5 + $0x20] sm:$0xff] %vm1789, 0.0
          %1795 = vst.msk [vmem:[#allocation5 + $0x28] sm:$0xff] %vm1789, 0.0
          %1796 = vst.msk [vmem:[#allocation5 + $0x30] sm:$0xff] %vm1789, 0.0
          %1797 = vst.msk [vmem:[#allocation5 + $0x38] sm:$0xff] %vm1789, 0.0
          %1798 = vst.msk [vmem:[#allocation5 + $0x40] sm:$0xff] %vm1789, 0.0
          %1799 = vst.msk [vmem:[#allocation5 + $0x48] sm:$0xff] %vm1789, 0.0
          %1800 = vst.msk [vmem:[#allocation5 + $0x50] sm:$0xff] %vm1789, 0.0
          %1801 = vst.msk [vmem:[#allocation5 + $0x58] sm:$0xff] %vm1789, 0.0
          %1802 = vst.msk [vmem:[#allocation5 + $0x60] sm:$0xff] %vm1789, 0.0
          %1803 = vst.msk [vmem:[#allocation5 + $0x68] sm:$0xff] %vm1789, 0.0
          %1804 = vst.msk [vmem:[#allocation5 + $0x70] sm:$0xff] %vm1789, 0.0
          %1805 = vst.msk [vmem:[#allocation5 + $0x78] sm:$0xff] %vm1789, 0.0
          %1806 = vst.msk [vmem:[#allocation5 + $0x80] sm:$0xff] %vm1789, 0.0
          %1807 = vst.msk [vmem:[#allocation5 + $0x88] sm:$0xff] %vm1789, 0.0
          %1808 = vst.msk [vmem:[#allocation5 + $0x90] sm:$0xff] %vm1789, 0.0
          %1809 = vst.msk [vmem:[#allocation5 + $0x98] sm:$0xff] %vm1789, 0.0
          %1810 = vst.msk [vmem:[#allocation5 + $0xa0] sm:$0xff] %vm1789, 0.0
          %1811 = vst.msk [vmem:[#allocation5 + $0xa8] sm:$0xff] %vm1789, 0.0
          %1812 = vst.msk [vmem:[#allocation5 + $0xb0] sm:$0xff] %vm1789, 0.0
          %1813 = vst.msk [vmem:[#allocation5 + $0xb8] sm:$0xff] %vm1789, 0.0
          %1814 = vst.msk [vmem:[#allocation5 + $0xc0] sm:$0xff] %vm1789, 0.0
          %1815 = vst.msk [vmem:[#allocation5 + $0xc8] sm:$0xff] %vm1789, 0.0
          %1816 = vst.msk [vmem:[#allocation5 + $0xd0] sm:$0xff] %vm1789, 0.0
          %1817 = vst.msk [vmem:[#allocation5 + $0xd8] sm:$0xff] %vm1789, 0.0
          %1818 = vst.msk [vmem:[#allocation5 + $0xe0] sm:$0xff] %vm1789, 0.0
          %1819 = vst.msk [vmem:[#allocation5 + $0xe8] sm:$0xff] %vm1789, 0.0
          %1820 = vst.msk [vmem:[#allocation5 + $0xf0] sm:$0xff] %vm1789, 0.0
          %1821 = vst.msk [vmem:[#allocation5 + $0xf8] sm:$0xff] %vm1789, 0.0
        $region103: #{gcn_learn_forward.1} parent=82 // pred_fallthru
          _
        %v1822 = vld [vmem:[#allocation5] sm:$0xff]
        %v1823 = vld [vmem:[#allocation5 + $0x8] sm:$0xff]
        %v1824 = vld [vmem:[#allocation5 + $0x10] sm:$0xff]
        %v1825 = vld [vmem:[#allocation5 + $0x18] sm:$0xff]
        %v1826 = vld [vmem:[#allocation5 + $0x20] sm:$0xff]
        %v1827 = vld [vmem:[#allocation5 + $0x28] sm:$0xff]
        %v1828 = vld [vmem:[#allocation5 + $0x30] sm:$0xff]
        %v1829 = vld [vmem:[#allocation5 + $0x38] sm:$0xff]
        %v1830 = vld [vmem:[#allocation5 + $0x40] sm:$0xff]
        %v1831 = vld [vmem:[#allocation5 + $0x48] sm:$0xff]
        %v1832 = vld [vmem:[#allocation5 + $0x50] sm:$0xff]
        %v1833 = vld [vmem:[#allocation5 + $0x58] sm:$0xff]
        %v1834 = vld [vmem:[#allocation5 + $0x60] sm:$0xff]
        %v1835 = vld [vmem:[#allocation5 + $0x68] sm:$0xff]
        %v1836 = vld [vmem:[#allocation5 + $0x70] sm:$0xff]
        %v1837 = vld [vmem:[#allocation5 + $0x78] sm:$0xff]
        %v1838 = vld [vmem:[#allocation5 + $0x80] sm:$0xff]
        %v1839 = vld [vmem:[#allocation5 + $0x88] sm:$0xff]
        %v1840 = vld [vmem:[#allocation5 + $0x90] sm:$0xff]
        %v1841 = vld [vmem:[#allocation5 + $0x98] sm:$0xff]
        %v1842 = vld [vmem:[#allocation5 + $0xa0] sm:$0xff]
        %v1843 = vld [vmem:[#allocation5 + $0xa8] sm:$0xff]
        %v1844 = vld [vmem:[#allocation5 + $0xb0] sm:$0xff]
        %v1845 = vld [vmem:[#allocation5 + $0xb8] sm:$0xff]
        %v1846 = vld [vmem:[#allocation5 + $0xc0] sm:$0xff]
        %v1847 = vld [vmem:[#allocation5 + $0xc8] sm:$0xff]
        %v1848 = vld [vmem:[#allocation5 + $0xd0] sm:$0xff]
        %v1849 = vld [vmem:[#allocation5 + $0xd8] sm:$0xff]
        %v1850 = vld [vmem:[#allocation5 + $0xe0] sm:$0xff]
        %v1851 = vld [vmem:[#allocation5 + $0xe8] sm:$0xff]
        %v1852 = vld [vmem:[#allocation5 + $0xf0] sm:$0xff]
        %v1853 = vld [vmem:[#allocation5 + $0xf8] sm:$0xff]
        %v1854 = vld [vmem:[%s521] sm:$0xff]
        %v1855 = vld [vmem:[%s521 + $0x8] sm:$0xff]
        %v1856 = vld [vmem:[%s521 + $0x10] sm:$0xff]
        %v1857 = vld [vmem:[%s521 + $0x18] sm:$0xff]
        %v1858 = vld [vmem:[%s521 + $0x20] sm:$0xff]
        %v1859 = vld [vmem:[%s521 + $0x28] sm:$0xff]
        %v1860 = vld [vmem:[%s521 + $0x30] sm:$0xff]
        %v1861 = vld [vmem:[%s521 + $0x38] sm:$0xff]
        %v1862 = vld [vmem:[%s521 + $0x40] sm:$0xff]
        %v1863 = vld [vmem:[%s521 + $0x48] sm:$0xff]
        %v1864 = vld [vmem:[%s521 + $0x50] sm:$0xff]
        %v1865 = vld [vmem:[%s521 + $0x58] sm:$0xff]
        %v1866 = vld [vmem:[%s521 + $0x60] sm:$0xff]
        %v1867 = vld [vmem:[%s521 + $0x68] sm:$0xff]
        %v1868 = vld [vmem:[%s521 + $0x70] sm:$0xff]
        %v1869 = vld [vmem:[%s521 + $0x78] sm:$0xff]
        %v1870 = vld [vmem:[%s521 + $0x80] sm:$0xff]
        %v1871 = vld [vmem:[%s521 + $0x88] sm:$0xff]
        %v1872 = vld [vmem:[%s521 + $0x90] sm:$0xff]
        %v1873 = vld [vmem:[%s521 + $0x98] sm:$0xff]
        %v1874 = vld [vmem:[%s521 + $0xa0] sm:$0xff]
        %v1875 = vld [vmem:[%s521 + $0xa8] sm:$0xff]
        %v1876 = vld [vmem:[%s521 + $0xb0] sm:$0xff]
        %v1877 = vld [vmem:[%s521 + $0xb8] sm:$0xff]
        %v1878 = vld [vmem:[%s521 + $0xc0] sm:$0xff]
        %v1879 = vld [vmem:[%s521 + $0xc8] sm:$0xff]
        %v1880 = vld [vmem:[%s521 + $0xd0] sm:$0xff]
        %v1881 = vld [vmem:[%s521 + $0xd8] sm:$0xff]
        %v1882 = vld [vmem:[%s521 + $0xe0] sm:$0xff]
        %v1883 = vld [vmem:[%s521 + $0xe8] sm:$0xff]
        %v1884 = vld [vmem:[%s521 + $0xf0] sm:$0xff]
        %v1885 = vld [vmem:[%s521 + $0xf8] sm:$0xff]
        %v1886 = vld [vmem:[%s521 + $0x100] sm:$0xff]
        %v1887 = vld [vmem:[%s521 + $0x108] sm:$0xff]
        %v1888 = vld [vmem:[%s521 + $0x110] sm:$0xff]
        %v1889 = vld [vmem:[%s521 + $0x118] sm:$0xff]
        %v1890 = vld [vmem:[%s521 + $0x120] sm:$0xff]
        %v1891 = vld [vmem:[%s521 + $0x128] sm:$0xff]
        %v1892 = vld [vmem:[%s521 + $0x130] sm:$0xff]
        %v1893 = vld [vmem:[%s521 + $0x138] sm:$0xff]
        %v1894 = vld [vmem:[%s521 + $0x140] sm:$0xff]
        %v1895 = vld [vmem:[%s521 + $0x148] sm:$0xff]
        %v1896 = vld [vmem:[%s521 + $0x150] sm:$0xff]
        %v1897 = vld [vmem:[%s521 + $0x158] sm:$0xff]
        %v1898 = vld [vmem:[%s521 + $0x160] sm:$0xff]
        %v1899 = vld [vmem:[%s521 + $0x168] sm:$0xff]
        %v1900 = vld [vmem:[%s521 + $0x170] sm:$0xff]
        %v1901 = vld [vmem:[%s521 + $0x178] sm:$0xff]
        %v1902 = vld [vmem:[%s521 + $0x180] sm:$0xff]
        %v1903 = vld [vmem:[%s521 + $0x188] sm:$0xff]
        %v1904 = vld [vmem:[%s521 + $0x190] sm:$0xff]
        %v1905 = vld [vmem:[%s521 + $0x198] sm:$0xff]
        %v1906 = vld [vmem:[%s521 + $0x1a0] sm:$0xff]
        %v1907 = vld [vmem:[%s521 + $0x1a8] sm:$0xff]
        %v1908 = vld [vmem:[%s521 + $0x1b0] sm:$0xff]
        %v1909 = vld [vmem:[%s521 + $0x1b8] sm:$0xff]
        %v1910 = vld [vmem:[%s521 + $0x1c0] sm:$0xff]
        %v1911 = vld [vmem:[%s521 + $0x1c8] sm:$0xff]
        %v1912 = vld [vmem:[%s521 + $0x1d0] sm:$0xff]
        %v1913 = vld [vmem:[%s521 + $0x1d8] sm:$0xff]
        %v1914 = vld [vmem:[%s521 + $0x1e0] sm:$0xff]
        %v1915 = vld [vmem:[%s521 + $0x1e8] sm:$0xff]
        %v1916 = vld [vmem:[%s521 + $0x1f0] sm:$0xff]
        %v1917 = vld [vmem:[%s521 + $0x1f8] sm:$0xff]
        %s1918 = sshra.s32 %s566, 3
        %s1919 = sand.u32 %s566, 7
        %s1920 = smul.addr %s1918, 4
        %s1921 = scalar_lea.vmem [#allocation2], %s1920
        %v1922 = vld [vmem:[%s1921] sm:$0xf]
        %v1923 = vld [vmem:[%s1921 + $0x4] sm:$0xf]
        %v1924 = vld [vmem:[%s1921 + $0x8] sm:$0xf]
        %v1925 = vld [vmem:[%s1921 + $0xc] sm:$0xf]
        %v1926 = vld [vmem:[%s1921 + $0x10] sm:$0xf]
        %v1927 = vld [vmem:[%s1921 + $0x14] sm:$0xf]
        %v1928 = vld [vmem:[%s1921 + $0x18] sm:$0xf]
        %v1929 = vld [vmem:[%s1921 + $0x1c] sm:$0xf]
        %v1930 = vld [vmem:[%s1921 + $0x20] sm:$0xf]
        %v1931 = vld [vmem:[%s1921 + $0x24] sm:$0xf]
        %v1932 = vld [vmem:[%s1921 + $0x28] sm:$0xf]
        %v1933 = vld [vmem:[%s1921 + $0x2c] sm:$0xf]
        %v1934 = vld [vmem:[%s1921 + $0x30] sm:$0xf]
        %v1935 = vld [vmem:[%s1921 + $0x34] sm:$0xf]
        %v1936 = vld [vmem:[%s1921 + $0x38] sm:$0xf]
        %v1937 = vld [vmem:[%s1921 + $0x3c] sm:$0xf]
        %v1938 = vld [vmem:[%s1921 + $0x40] sm:$0xf]
        %v1939 = vld [vmem:[%s1921 + $0x44] sm:$0xf]
        %v1940 = vld [vmem:[%s1921 + $0x48] sm:$0xf]
        %v1941 = vld [vmem:[%s1921 + $0x4c] sm:$0xf]
        %v1942 = vld [vmem:[%s1921 + $0x50] sm:$0xf]
        %v1943 = vld [vmem:[%s1921 + $0x54] sm:$0xf]
        %v1944 = vld [vmem:[%s1921 + $0x58] sm:$0xf]
        %v1945 = vld [vmem:[%s1921 + $0x5c] sm:$0xf]
        %v1946 = vld [vmem:[%s1921 + $0x60] sm:$0xf]
        %v1947 = vld [vmem:[%s1921 + $0x64] sm:$0xf]
        %v1948 = vld [vmem:[%s1921 + $0x68] sm:$0xf]
        %v1949 = vld [vmem:[%s1921 + $0x6c] sm:$0xf]
        %v1950 = vld [vmem:[%s1921 + $0x70] sm:$0xf]
        %v1951 = vld [vmem:[%s1921 + $0x74] sm:$0xf]
        %v1952 = vld [vmem:[%s1921 + $0x78] sm:$0xf]
        %v1953 = vld [vmem:[%s1921 + $0x7c] sm:$0xf]
        %v1954 = vld [vmem:[%s1921 + $0x80] sm:$0xf]
        %v1955 = vld [vmem:[%s1921 + $0x84] sm:$0xf]
        %v1956 = vld [vmem:[%s1921 + $0x88] sm:$0xf]
        %v1957 = vld [vmem:[%s1921 + $0x8c] sm:$0xf]
        %v1958 = vld [vmem:[%s1921 + $0x90] sm:$0xf]
        %v1959 = vld [vmem:[%s1921 + $0x94] sm:$0xf]
        %v1960 = vld [vmem:[%s1921 + $0x98] sm:$0xf]
        %v1961 = vld [vmem:[%s1921 + $0x9c] sm:$0xf]
        %v1962 = vld [vmem:[%s1921 + $0xa0] sm:$0xf]
        %v1963 = vld [vmem:[%s1921 + $0xa4] sm:$0xf]
        %v1964 = vld [vmem:[%s1921 + $0xa8] sm:$0xf]
        %v1965 = vld [vmem:[%s1921 + $0xac] sm:$0xf]
        %v1966 = vld [vmem:[%s1921 + $0xb0] sm:$0xf]
        %v1967 = vld [vmem:[%s1921 + $0xb4] sm:$0xf]
        %v1968 = vld [vmem:[%s1921 + $0xb8] sm:$0xf]
        %v1969 = vld [vmem:[%s1921 + $0xbc] sm:$0xf]
        %v1970 = vld [vmem:[%s1921 + $0xc0] sm:$0xf]
        %v1971 = vld [vmem:[%s1921 + $0xc4] sm:$0xf]
        %v1972 = vld [vmem:[%s1921 + $0xc8] sm:$0xf]
        %v1973 = vld [vmem:[%s1921 + $0xcc] sm:$0xf]
        %v1974 = vld [vmem:[%s1921 + $0xd0] sm:$0xf]
        %v1975 = vld [vmem:[%s1921 + $0xd4] sm:$0xf]
        %v1976 = vld [vmem:[%s1921 + $0xd8] sm:$0xf]
        %v1977 = vld [vmem:[%s1921 + $0xdc] sm:$0xf]
        %v1978 = vld [vmem:[%s1921 + $0xe0] sm:$0xf]
        %v1979 = vld [vmem:[%s1921 + $0xe4] sm:$0xf]
        %v1980 = vld [vmem:[%s1921 + $0xe8] sm:$0xf]
        %v1981 = vld [vmem:[%s1921 + $0xec] sm:$0xf]
        %v1982 = vld [vmem:[%s1921 + $0xf0] sm:$0xf]
        %v1983 = vld [vmem:[%s1921 + $0xf4] sm:$0xf]
        %v1984 = vld [vmem:[%s1921 + $0xf8] sm:$0xf]
        %v1985 = vld [vmem:[%s1921 + $0xfc] sm:$0xf]
        %v2050 = vunpack.c.l.b16 %v1854
        %v2051 = vunpack.c.h.b16 %v1854
        %v2052 = vunpack.c.l.b16 %v1855
        %v2053 = vunpack.c.h.b16 %v1855
        %v2054 = vunpack.c.l.b16 %v1856
        %v2055 = vunpack.c.h.b16 %v1856
        %v2056 = vunpack.c.l.b16 %v1857
        %v2057 = vunpack.c.h.b16 %v1857
        %v2058 = vunpack.c.l.b16 %v1858
        %v2059 = vunpack.c.h.b16 %v1858
        %v2060 = vunpack.c.l.b16 %v1859
        %v2061 = vunpack.c.h.b16 %v1859
        %v2062 = vunpack.c.l.b16 %v1860
        %v2063 = vunpack.c.h.b16 %v1860
        %v2064 = vunpack.c.l.b16 %v1861
        %v2065 = vunpack.c.h.b16 %v1861
        %v2066 = vunpack.c.l.b16 %v1862
        %v2067 = vunpack.c.h.b16 %v1862
        %v2068 = vunpack.c.l.b16 %v1863
        %v2069 = vunpack.c.h.b16 %v1863
        %v2070 = vunpack.c.l.b16 %v1864
        %v2071 = vunpack.c.h.b16 %v1864
        %v2072 = vunpack.c.l.b16 %v1865
        %v2073 = vunpack.c.h.b16 %v1865
        %v2074 = vunpack.c.l.b16 %v1866
        %v2075 = vunpack.c.h.b16 %v1866
        %v2076 = vunpack.c.l.b16 %v1867
        %v2077 = vunpack.c.h.b16 %v1867
        %v2078 = vunpack.c.l.b16 %v1868
        %v2079 = vunpack.c.h.b16 %v1868
        %v2080 = vunpack.c.l.b16 %v1869
        %v2081 = vunpack.c.h.b16 %v1869
        %v2082 = vunpack.c.l.b16 %v1870
        %v2083 = vunpack.c.h.b16 %v1870
        %v2084 = vunpack.c.l.b16 %v1871
        %v2085 = vunpack.c.h.b16 %v1871
        %v2086 = vunpack.c.l.b16 %v1872
        %v2087 = vunpack.c.h.b16 %v1872
        %v2088 = vunpack.c.l.b16 %v1873
        %v2089 = vunpack.c.h.b16 %v1873
        %v2090 = vunpack.c.l.b16 %v1874
        %v2091 = vunpack.c.h.b16 %v1874
        %v2092 = vunpack.c.l.b16 %v1875
        %v2093 = vunpack.c.h.b16 %v1875
        %v2094 = vunpack.c.l.b16 %v1876
        %v2095 = vunpack.c.h.b16 %v1876
        %v2096 = vunpack.c.l.b16 %v1877
        %v2097 = vunpack.c.h.b16 %v1877
        %v2098 = vunpack.c.l.b16 %v1878
        %v2099 = vunpack.c.h.b16 %v1878
        %v2100 = vunpack.c.l.b16 %v1879
        %v2101 = vunpack.c.h.b16 %v1879
        %v2102 = vunpack.c.l.b16 %v1880
        %v2103 = vunpack.c.h.b16 %v1880
        %v2104 = vunpack.c.l.b16 %v1881
        %v2105 = vunpack.c.h.b16 %v1881
        %v2106 = vunpack.c.l.b16 %v1882
        %v2107 = vunpack.c.h.b16 %v1882
        %v2108 = vunpack.c.l.b16 %v1883
        %v2109 = vunpack.c.h.b16 %v1883
        %v2110 = vunpack.c.l.b16 %v1884
        %v2111 = vunpack.c.h.b16 %v1884
        %v2112 = vunpack.c.l.b16 %v1885
        %v2113 = vunpack.c.h.b16 %v1885
        %v2114 = vunpack.c.l.b16 %v1886
        %v2115 = vunpack.c.h.b16 %v1886
        %v2116 = vunpack.c.l.b16 %v1887
        %v2117 = vunpack.c.h.b16 %v1887
        %v2118 = vunpack.c.l.b16 %v1888
        %v2119 = vunpack.c.h.b16 %v1888
        %v2120 = vunpack.c.l.b16 %v1889
        %v2121 = vunpack.c.h.b16 %v1889
        %v2122 = vunpack.c.l.b16 %v1890
        %v2123 = vunpack.c.h.b16 %v1890
        %v2124 = vunpack.c.l.b16 %v1891
        %v2125 = vunpack.c.h.b16 %v1891
        %v2126 = vunpack.c.l.b16 %v1892
        %v2127 = vunpack.c.h.b16 %v1892
        %v2128 = vunpack.c.l.b16 %v1893
        %v2129 = vunpack.c.h.b16 %v1893
        %v2130 = vunpack.c.l.b16 %v1894
        %v2131 = vunpack.c.h.b16 %v1894
        %v2132 = vunpack.c.l.b16 %v1895
        %v2133 = vunpack.c.h.b16 %v1895
        %v2134 = vunpack.c.l.b16 %v1896
        %v2135 = vunpack.c.h.b16 %v1896
        %v2136 = vunpack.c.l.b16 %v1897
        %v2137 = vunpack.c.h.b16 %v1897
        %v2138 = vunpack.c.l.b16 %v1898
        %v2139 = vunpack.c.h.b16 %v1898
        %v2140 = vunpack.c.l.b16 %v1899
        %v2141 = vunpack.c.h.b16 %v1899
        %v2142 = vunpack.c.l.b16 %v1900
        %v2143 = vunpack.c.h.b16 %v1900
        %v2144 = vunpack.c.l.b16 %v1901
        %v2145 = vunpack.c.h.b16 %v1901
        %v2146 = vunpack.c.l.b16 %v1902
        %v2147 = vunpack.c.h.b16 %v1902
        %v2148 = vunpack.c.l.b16 %v1903
        %v2149 = vunpack.c.h.b16 %v1903
        %v2150 = vunpack.c.l.b16 %v1904
        %v2151 = vunpack.c.h.b16 %v1904
        %v2152 = vunpack.c.l.b16 %v1905
        %v2153 = vunpack.c.h.b16 %v1905
        %v2154 = vunpack.c.l.b16 %v1906
        %v2155 = vunpack.c.h.b16 %v1906
        %v2156 = vunpack.c.l.b16 %v1907
        %v2157 = vunpack.c.h.b16 %v1907
        %v2158 = vunpack.c.l.b16 %v1908
        %v2159 = vunpack.c.h.b16 %v1908
        %v2160 = vunpack.c.l.b16 %v1909
        %v2161 = vunpack.c.h.b16 %v1909
        %v2162 = vunpack.c.l.b16 %v1910
        %v2163 = vunpack.c.h.b16 %v1910
        %v2164 = vunpack.c.l.b16 %v1911
        %v2165 = vunpack.c.h.b16 %v1911
        %v2166 = vunpack.c.l.b16 %v1912
        %v2167 = vunpack.c.h.b16 %v1912
        %v2168 = vunpack.c.l.b16 %v1913
        %v2169 = vunpack.c.h.b16 %v1913
        %v2170 = vunpack.c.l.b16 %v1914
        %v2171 = vunpack.c.h.b16 %v1914
        %v2172 = vunpack.c.l.b16 %v1915
        %v2173 = vunpack.c.h.b16 %v1915
        %v2174 = vunpack.c.l.b16 %v1916
        %v2175 = vunpack.c.h.b16 %v1916
        %v2176 = vunpack.c.l.b16 %v1917
        %v2177 = vunpack.c.h.b16 %v1917
        %v2178 = vpack.c.b16 %v2054, %v2050
        %v2179 = vpack.c.b16 %v2055, %v2051
        %v2180 = vpack.c.b16 %v2056, %v2052
        %v2181 = vpack.c.b16 %v2057, %v2053
        %v2182 = vpack.c.b16 %v2062, %v2058
        %v2183 = vpack.c.b16 %v2063, %v2059
        %v2184 = vpack.c.b16 %v2064, %v2060
        %v2185 = vpack.c.b16 %v2065, %v2061
        %v2186 = vpack.c.b16 %v2070, %v2066
        %v2187 = vpack.c.b16 %v2071, %v2067
        %v2188 = vpack.c.b16 %v2072, %v2068
        %v2189 = vpack.c.b16 %v2073, %v2069
        %v2190 = vpack.c.b16 %v2078, %v2074
        %v2191 = vpack.c.b16 %v2079, %v2075
        %v2192 = vpack.c.b16 %v2080, %v2076
        %v2193 = vpack.c.b16 %v2081, %v2077
        %v2194 = vpack.c.b16 %v2086, %v2082
        %v2195 = vpack.c.b16 %v2087, %v2083
        %v2196 = vpack.c.b16 %v2088, %v2084
        %v2197 = vpack.c.b16 %v2089, %v2085
        %v2198 = vpack.c.b16 %v2094, %v2090
        %v2199 = vpack.c.b16 %v2095, %v2091
        %v2200 = vpack.c.b16 %v2096, %v2092
        %v2201 = vpack.c.b16 %v2097, %v2093
        %v2202 = vpack.c.b16 %v2102, %v2098
        %v2203 = vpack.c.b16 %v2103, %v2099
        %v2204 = vpack.c.b16 %v2104, %v2100
        %v2205 = vpack.c.b16 %v2105, %v2101
        %v2206 = vpack.c.b16 %v2110, %v2106
        %v2207 = vpack.c.b16 %v2111, %v2107
        %v2208 = vpack.c.b16 %v2112, %v2108
        %v2209 = vpack.c.b16 %v2113, %v2109
        %v2210 = vpack.c.b16 %v2118, %v2114
        %v2211 = vpack.c.b16 %v2119, %v2115
        %v2212 = vpack.c.b16 %v2120, %v2116
        %v2213 = vpack.c.b16 %v2121, %v2117
        %v2214 = vpack.c.b16 %v2126, %v2122
        %v2215 = vpack.c.b16 %v2127, %v2123
        %v2216 = vpack.c.b16 %v2128, %v2124
        %v2217 = vpack.c.b16 %v2129, %v2125
        %v2218 = vpack.c.b16 %v2134, %v2130
        %v2219 = vpack.c.b16 %v2135, %v2131
        %v2220 = vpack.c.b16 %v2136, %v2132
        %v2221 = vpack.c.b16 %v2137, %v2133
        %v2222 = vpack.c.b16 %v2142, %v2138
        %v2223 = vpack.c.b16 %v2143, %v2139
        %v2224 = vpack.c.b16 %v2144, %v2140
        %v2225 = vpack.c.b16 %v2145, %v2141
        %v2226 = vpack.c.b16 %v2150, %v2146
        %v2227 = vpack.c.b16 %v2151, %v2147
        %v2228 = vpack.c.b16 %v2152, %v2148
        %v2229 = vpack.c.b16 %v2153, %v2149
        %v2230 = vpack.c.b16 %v2158, %v2154
        %v2231 = vpack.c.b16 %v2159, %v2155
        %v2232 = vpack.c.b16 %v2160, %v2156
        %v2233 = vpack.c.b16 %v2161, %v2157
        %v2234 = vpack.c.b16 %v2166, %v2162
        %v2235 = vpack.c.b16 %v2167, %v2163
        %v2236 = vpack.c.b16 %v2168, %v2164
        %v2237 = vpack.c.b16 %v2169, %v2165
        %v2238 = vpack.c.b16 %v2174, %v2170
        %v2239 = vpack.c.b16 %v2175, %v2171
        %v2240 = vpack.c.b16 %v2176, %v2172
        %v2241 = vpack.c.b16 %v2177, %v2173
        %v2370 = vunpack.c.l.b16 %v1922
        %v2371 = vunpack.c.l.b16 %v1923
        %v2372 = vunpack.c.l.b16 %v1924
        %v2373 = vunpack.c.l.b16 %v1925
        %v2374 = vunpack.c.l.b16 %v1926
        %v2375 = vunpack.c.l.b16 %v1927
        %v2376 = vunpack.c.l.b16 %v1928
        %v2377 = vunpack.c.l.b16 %v1929
        %v2378 = vunpack.c.l.b16 %v1930
        %v2379 = vunpack.c.l.b16 %v1931
        %v2380 = vunpack.c.l.b16 %v1932
        %v2381 = vunpack.c.l.b16 %v1933
        %v2382 = vunpack.c.l.b16 %v1934
        %v2383 = vunpack.c.l.b16 %v1935
        %v2384 = vunpack.c.l.b16 %v1936
        %v2385 = vunpack.c.l.b16 %v1937
        %v2386 = vunpack.c.l.b16 %v1938
        %v2387 = vunpack.c.l.b16 %v1939
        %v2388 = vunpack.c.l.b16 %v1940
        %v2389 = vunpack.c.l.b16 %v1941
        %v2390 = vunpack.c.l.b16 %v1942
        %v2391 = vunpack.c.l.b16 %v1943
        %v2392 = vunpack.c.l.b16 %v1944
        %v2393 = vunpack.c.l.b16 %v1945
        %v2394 = vunpack.c.l.b16 %v1946
        %v2395 = vunpack.c.l.b16 %v1947
        %v2396 = vunpack.c.l.b16 %v1948
        %v2397 = vunpack.c.l.b16 %v1949
        %v2398 = vunpack.c.l.b16 %v1950
        %v2399 = vunpack.c.l.b16 %v1951
        %v2400 = vunpack.c.l.b16 %v1952
        %v2401 = vunpack.c.l.b16 %v1953
        %v2402 = vunpack.c.l.b16 %v1954
        %v2403 = vunpack.c.l.b16 %v1955
        %v2404 = vunpack.c.l.b16 %v1956
        %v2405 = vunpack.c.l.b16 %v1957
        %v2406 = vunpack.c.l.b16 %v1958
        %v2407 = vunpack.c.l.b16 %v1959
        %v2408 = vunpack.c.l.b16 %v1960
        %v2409 = vunpack.c.l.b16 %v1961
        %v2410 = vunpack.c.l.b16 %v1962
        %v2411 = vunpack.c.l.b16 %v1963
        %v2412 = vunpack.c.l.b16 %v1964
        %v2413 = vunpack.c.l.b16 %v1965
        %v2414 = vunpack.c.l.b16 %v1966
        %v2415 = vunpack.c.l.b16 %v1967
        %v2416 = vunpack.c.l.b16 %v1968
        %v2417 = vunpack.c.l.b16 %v1969
        %v2418 = vunpack.c.l.b16 %v1970
        %v2419 = vunpack.c.l.b16 %v1971
        %v2420 = vunpack.c.l.b16 %v1972
        %v2421 = vunpack.c.l.b16 %v1973
        %v2422 = vunpack.c.l.b16 %v1974
        %v2423 = vunpack.c.l.b16 %v1975
        %v2424 = vunpack.c.l.b16 %v1976
        %v2425 = vunpack.c.l.b16 %v1977
        %v2426 = vunpack.c.l.b16 %v1978
        %v2427 = vunpack.c.l.b16 %v1979
        %v2428 = vunpack.c.l.b16 %v1980
        %v2429 = vunpack.c.l.b16 %v1981
        %v2430 = vunpack.c.l.b16 %v1982
        %v2431 = vunpack.c.l.b16 %v1983
        %v2432 = vunpack.c.l.b16 %v1984
        %v2433 = vunpack.c.l.b16 %v1985
        %v2434 = vpack.c.b16 %v2371, %v2370
        %v2435 = vpack.c.b16 %v2373, %v2372
        %v2436 = vpack.c.b16 %v2375, %v2374
        %v2437 = vpack.c.b16 %v2377, %v2376
        %v2438 = vpack.c.b16 %v2379, %v2378
        %v2439 = vpack.c.b16 %v2381, %v2380
        %v2440 = vpack.c.b16 %v2383, %v2382
        %v2441 = vpack.c.b16 %v2385, %v2384
        %v2442 = vpack.c.b16 %v2387, %v2386
        %v2443 = vpack.c.b16 %v2389, %v2388
        %v2444 = vpack.c.b16 %v2391, %v2390
        %v2445 = vpack.c.b16 %v2393, %v2392
        %v2446 = vpack.c.b16 %v2395, %v2394
        %v2447 = vpack.c.b16 %v2397, %v2396
        %v2448 = vpack.c.b16 %v2399, %v2398
        %v2449 = vpack.c.b16 %v2401, %v2400
        %v2450 = vpack.c.b16 %v2403, %v2402
        %v2451 = vpack.c.b16 %v2405, %v2404
        %v2452 = vpack.c.b16 %v2407, %v2406
        %v2453 = vpack.c.b16 %v2409, %v2408
        %v2454 = vpack.c.b16 %v2411, %v2410
        %v2455 = vpack.c.b16 %v2413, %v2412
        %v2456 = vpack.c.b16 %v2415, %v2414
        %v2457 = vpack.c.b16 %v2417, %v2416
        %v2458 = vpack.c.b16 %v2419, %v2418
        %v2459 = vpack.c.b16 %v2421, %v2420
        %v2460 = vpack.c.b16 %v2423, %v2422
        %v2461 = vpack.c.b16 %v2425, %v2424
        %v2462 = vpack.c.b16 %v2427, %v2426
        %v2463 = vpack.c.b16 %v2429, %v2428
        %v2464 = vpack.c.b16 %v2431, %v2430
        %v2465 = vpack.c.b16 %v2433, %v2432
        %2498 = vmatpush.bf16.msra.mxu0 %v2441
        %2499 = vmatpush.bf16.msra.mxu0 %v2440
        %2500 = vmatpush.bf16.msra.mxu0 %v2439
        %2501 = vmatpush.bf16.msra.mxu0 %v2438
        %2502 = vmatpush.bf16.msra.mxu0 %v2437
        %2503 = vmatpush.bf16.msra.mxu0 %v2436
        %2504 = vmatpush.bf16.msra.mxu0 %v2435
        %2505 = vmatpush.bf16.msra.mxu0 %v2434
        %2506 = vmatmul.bf16.gmra.mxu0 %v2178
        %v2507 = vpop.f32.mrf.mxu0
        %v2508 = vadd.f32 0.0, %v2507
        %v2509 = vpop.f32.mrf.mxu0
        %v2510 = vadd.f32 0.0, %v2509
        %2511 = vmatmul.bf16.gmra.mxu0 %v2182
        %v2512 = vpop.f32.mrf.mxu0
        %v2513 = vadd.f32 0.0, %v2512
        %v2514 = vpop.f32.mrf.mxu0
        %v2515 = vadd.f32 0.0, %v2514
        %2516 = vmatmul.bf16.gmra.mxu0 %v2186
        %v2517 = vpop.f32.mrf.mxu0
        %v2518 = vadd.f32 0.0, %v2517
        %v2519 = vpop.f32.mrf.mxu0
        %v2520 = vadd.f32 0.0, %v2519
        %2521 = vmatmul.bf16.gmra.mxu0 %v2190
        %v2522 = vpop.f32.mrf.mxu0
        %v2523 = vadd.f32 0.0, %v2522
        %v2524 = vpop.f32.mrf.mxu0
        %v2525 = vadd.f32 0.0, %v2524
        %2526 = vmatmul.bf16.gmra.mxu0 %v2194
        %v2527 = vpop.f32.mrf.mxu0
        %v2528 = vadd.f32 0.0, %v2527
        %v2529 = vpop.f32.mrf.mxu0
        %v2530 = vadd.f32 0.0, %v2529
        %2531 = vmatmul.bf16.gmra.mxu0 %v2198
        %v2532 = vpop.f32.mrf.mxu0
        %v2533 = vadd.f32 0.0, %v2532
        %v2534 = vpop.f32.mrf.mxu0
        %v2535 = vadd.f32 0.0, %v2534
        %2536 = vmatmul.bf16.gmra.mxu0 %v2202
        %v2537 = vpop.f32.mrf.mxu0
        %v2538 = vadd.f32 0.0, %v2537
        %v2539 = vpop.f32.mrf.mxu0
        %v2540 = vadd.f32 0.0, %v2539
        %2541 = vmatmul.bf16.gmra.mxu0 %v2206
        %v2542 = vpop.f32.mrf.mxu0
        %v2543 = vadd.f32 0.0, %v2542
        %v2544 = vpop.f32.mrf.mxu0
        %v2545 = vadd.f32 0.0, %v2544
        %2546 = vmatmul.bf16.gmra.mxu0 %v2210
        %v2547 = vpop.f32.mrf.mxu0
        %v2548 = vadd.f32 0.0, %v2547
        %v2549 = vpop.f32.mrf.mxu0
        %v2550 = vadd.f32 0.0, %v2549
        %2551 = vmatmul.bf16.gmra.mxu0 %v2214
        %v2552 = vpop.f32.mrf.mxu0
        %v2553 = vadd.f32 0.0, %v2552
        %v2554 = vpop.f32.mrf.mxu0
        %v2555 = vadd.f32 0.0, %v2554
        %2556 = vmatmul.bf16.gmra.mxu0 %v2218
        %v2557 = vpop.f32.mrf.mxu0
        %v2558 = vadd.f32 0.0, %v2557
        %v2559 = vpop.f32.mrf.mxu0
        %v2560 = vadd.f32 0.0, %v2559
        %2561 = vmatmul.bf16.gmra.mxu0 %v2222
        %v2562 = vpop.f32.mrf.mxu0
        %v2563 = vadd.f32 0.0, %v2562
        %v2564 = vpop.f32.mrf.mxu0
        %v2565 = vadd.f32 0.0, %v2564
        %2566 = vmatmul.bf16.gmra.mxu0 %v2226
        %v2567 = vpop.f32.mrf.mxu0
        %v2568 = vadd.f32 0.0, %v2567
        %v2569 = vpop.f32.mrf.mxu0
        %v2570 = vadd.f32 0.0, %v2569
        %2571 = vmatmul.bf16.gmra.mxu0 %v2230
        %v2572 = vpop.f32.mrf.mxu0
        %v2573 = vadd.f32 0.0, %v2572
        %v2574 = vpop.f32.mrf.mxu0
        %v2575 = vadd.f32 0.0, %v2574
        %2576 = vmatmul.bf16.gmra.mxu0 %v2234
        %v2577 = vpop.f32.mrf.mxu0
        %v2578 = vadd.f32 0.0, %v2577
        %v2579 = vpop.f32.mrf.mxu0
        %v2580 = vadd.f32 0.0, %v2579
        %2581 = vmatmul.bf16.gmra.mxu0 %v2238
        %v2582 = vpop.f32.mrf.mxu0
        %v2583 = vadd.f32 0.0, %v2582
        %v2584 = vpop.f32.mrf.mxu0
        %v2585 = vadd.f32 0.0, %v2584
        %2586 = vdwg.mxu0
        %2587 = vmatpush.bf16.msra.mxu0 %v2449
        %2588 = vmatpush.bf16.msra.mxu0 %v2448
        %2589 = vmatpush.bf16.msra.mxu0 %v2447
        %2590 = vmatpush.bf16.msra.mxu0 %v2446
        %2591 = vmatpush.bf16.msra.mxu0 %v2445
        %2592 = vmatpush.bf16.msra.mxu0 %v2444
        %2593 = vmatpush.bf16.msra.mxu0 %v2443
        %2594 = vmatpush.bf16.msra.mxu0 %v2442
        %2595 = vmatmul.bf16.gmra.mxu0 %v2179
        %v2596 = vpop.f32.mrf.mxu0
        %v2597 = vadd.f32 %v2508, %v2596
        %v2598 = vpop.f32.mrf.mxu0
        %v2599 = vadd.f32 %v2510, %v2598
        %2600 = vmatmul.bf16.gmra.mxu0 %v2183
        %v2601 = vpop.f32.mrf.mxu0
        %v2602 = vadd.f32 %v2513, %v2601
        %v2603 = vpop.f32.mrf.mxu0
        %v2604 = vadd.f32 %v2515, %v2603
        %2605 = vmatmul.bf16.gmra.mxu0 %v2187
        %v2606 = vpop.f32.mrf.mxu0
        %v2607 = vadd.f32 %v2518, %v2606
        %v2608 = vpop.f32.mrf.mxu0
        %v2609 = vadd.f32 %v2520, %v2608
        %2610 = vmatmul.bf16.gmra.mxu0 %v2191
        %v2611 = vpop.f32.mrf.mxu0
        %v2612 = vadd.f32 %v2523, %v2611
        %v2613 = vpop.f32.mrf.mxu0
        %v2614 = vadd.f32 %v2525, %v2613
        %2615 = vmatmul.bf16.gmra.mxu0 %v2195
        %v2616 = vpop.f32.mrf.mxu0
        %v2617 = vadd.f32 %v2528, %v2616
        %v2618 = vpop.f32.mrf.mxu0
        %v2619 = vadd.f32 %v2530, %v2618
        %2620 = vmatmul.bf16.gmra.mxu0 %v2199
        %v2621 = vpop.f32.mrf.mxu0
        %v2622 = vadd.f32 %v2533, %v2621
        %v2623 = vpop.f32.mrf.mxu0
        %v2624 = vadd.f32 %v2535, %v2623
        %2625 = vmatmul.bf16.gmra.mxu0 %v2203
        %v2626 = vpop.f32.mrf.mxu0
        %v2627 = vadd.f32 %v2538, %v2626
        %v2628 = vpop.f32.mrf.mxu0
        %v2629 = vadd.f32 %v2540, %v2628
        %2630 = vmatmul.bf16.gmra.mxu0 %v2207
        %v2631 = vpop.f32.mrf.mxu0
        %v2632 = vadd.f32 %v2543, %v2631
        %v2633 = vpop.f32.mrf.mxu0
        %v2634 = vadd.f32 %v2545, %v2633
        %2635 = vmatmul.bf16.gmra.mxu0 %v2211
        %v2636 = vpop.f32.mrf.mxu0
        %v2637 = vadd.f32 %v2548, %v2636
        %v2638 = vpop.f32.mrf.mxu0
        %v2639 = vadd.f32 %v2550, %v2638
        %2640 = vmatmul.bf16.gmra.mxu0 %v2215
        %v2641 = vpop.f32.mrf.mxu0
        %v2642 = vadd.f32 %v2553, %v2641
        %v2643 = vpop.f32.mrf.mxu0
        %v2644 = vadd.f32 %v2555, %v2643
        %2645 = vmatmul.bf16.gmra.mxu0 %v2219
        %v2646 = vpop.f32.mrf.mxu0
        %v2647 = vadd.f32 %v2558, %v2646
        %v2648 = vpop.f32.mrf.mxu0
        %v2649 = vadd.f32 %v2560, %v2648
        %2650 = vmatmul.bf16.gmra.mxu0 %v2223
        %v2651 = vpop.f32.mrf.mxu0
        %v2652 = vadd.f32 %v2563, %v2651
        %v2653 = vpop.f32.mrf.mxu0
        %v2654 = vadd.f32 %v2565, %v2653
        %2655 = vmatmul.bf16.gmra.mxu0 %v2227
        %v2656 = vpop.f32.mrf.mxu0
        %v2657 = vadd.f32 %v2568, %v2656
        %v2658 = vpop.f32.mrf.mxu0
        %v2659 = vadd.f32 %v2570, %v2658
        %2660 = vmatmul.bf16.gmra.mxu0 %v2231
        %v2661 = vpop.f32.mrf.mxu0
        %v2662 = vadd.f32 %v2573, %v2661
        %v2663 = vpop.f32.mrf.mxu0
        %v2664 = vadd.f32 %v2575, %v2663
        %2665 = vmatmul.bf16.gmra.mxu0 %v2235
        %v2666 = vpop.f32.mrf.mxu0
        %v2667 = vadd.f32 %v2578, %v2666
        %v2668 = vpop.f32.mrf.mxu0
        %v2669 = vadd.f32 %v2580, %v2668
        %2670 = vmatmul.bf16.gmra.mxu0 %v2239
        %v2671 = vpop.f32.mrf.mxu0
        %v2672 = vadd.f32 %v2583, %v2671
        %v2673 = vpop.f32.mrf.mxu0
        %v2674 = vadd.f32 %v2585, %v2673
        %2675 = vdwg.mxu0
        %2676 = vmatpush.bf16.msra.mxu0 %v2457
        %2677 = vmatpush.bf16.msra.mxu0 %v2456
        %2678 = vmatpush.bf16.msra.mxu0 %v2455
        %2679 = vmatpush.bf16.msra.mxu0 %v2454
        %2680 = vmatpush.bf16.msra.mxu0 %v2453
        %2681 = vmatpush.bf16.msra.mxu0 %v2452
        %2682 = vmatpush.bf16.msra.mxu0 %v2451
        %2683 = vmatpush.bf16.msra.mxu0 %v2450
        %2684 = vmatmul.bf16.gmra.mxu0 %v2180
        %v2685 = vpop.f32.mrf.mxu0
        %v2686 = vadd.f32 %v2597, %v2685
        %v2687 = vpop.f32.mrf.mxu0
        %v2688 = vadd.f32 %v2599, %v2687
        %2689 = vmatmul.bf16.gmra.mxu0 %v2184
        %v2690 = vpop.f32.mrf.mxu0
        %v2691 = vadd.f32 %v2602, %v2690
        %v2692 = vpop.f32.mrf.mxu0
        %v2693 = vadd.f32 %v2604, %v2692
        %2694 = vmatmul.bf16.gmra.mxu0 %v2188
        %v2695 = vpop.f32.mrf.mxu0
        %v2696 = vadd.f32 %v2607, %v2695
        %v2697 = vpop.f32.mrf.mxu0
        %v2698 = vadd.f32 %v2609, %v2697
        %2699 = vmatmul.bf16.gmra.mxu0 %v2192
        %v2700 = vpop.f32.mrf.mxu0
        %v2701 = vadd.f32 %v2612, %v2700
        %v2702 = vpop.f32.mrf.mxu0
        %v2703 = vadd.f32 %v2614, %v2702
        %2704 = vmatmul.bf16.gmra.mxu0 %v2196
        %v2705 = vpop.f32.mrf.mxu0
        %v2706 = vadd.f32 %v2617, %v2705
        %v2707 = vpop.f32.mrf.mxu0
        %v2708 = vadd.f32 %v2619, %v2707
        %2709 = vmatmul.bf16.gmra.mxu0 %v2200
        %v2710 = vpop.f32.mrf.mxu0
        %v2711 = vadd.f32 %v2622, %v2710
        %v2712 = vpop.f32.mrf.mxu0
        %v2713 = vadd.f32 %v2624, %v2712
        %2714 = vmatmul.bf16.gmra.mxu0 %v2204
        %v2715 = vpop.f32.mrf.mxu0
        %v2716 = vadd.f32 %v2627, %v2715
        %v2717 = vpop.f32.mrf.mxu0
        %v2718 = vadd.f32 %v2629, %v2717
        %2719 = vmatmul.bf16.gmra.mxu0 %v2208
        %v2720 = vpop.f32.mrf.mxu0
        %v2721 = vadd.f32 %v2632, %v2720
        %v2722 = vpop.f32.mrf.mxu0
        %v2723 = vadd.f32 %v2634, %v2722
        %2724 = vmatmul.bf16.gmra.mxu0 %v2212
        %v2725 = vpop.f32.mrf.mxu0
        %v2726 = vadd.f32 %v2637, %v2725
        %v2727 = vpop.f32.mrf.mxu0
        %v2728 = vadd.f32 %v2639, %v2727
        %2729 = vmatmul.bf16.gmra.mxu0 %v2216
        %v2730 = vpop.f32.mrf.mxu0
        %v2731 = vadd.f32 %v2642, %v2730
        %v2732 = vpop.f32.mrf.mxu0
        %v2733 = vadd.f32 %v2644, %v2732
        %2734 = vmatmul.bf16.gmra.mxu0 %v2220
        %v2735 = vpop.f32.mrf.mxu0
        %v2736 = vadd.f32 %v2647, %v2735
        %v2737 = vpop.f32.mrf.mxu0
        %v2738 = vadd.f32 %v2649, %v2737
        %2739 = vmatmul.bf16.gmra.mxu0 %v2224
        %v2740 = vpop.f32.mrf.mxu0
        %v2741 = vadd.f32 %v2652, %v2740
        %v2742 = vpop.f32.mrf.mxu0
        %v2743 = vadd.f32 %v2654, %v2742
        %2744 = vmatmul.bf16.gmra.mxu0 %v2228
        %v2745 = vpop.f32.mrf.mxu0
        %v2746 = vadd.f32 %v2657, %v2745
        %v2747 = vpop.f32.mrf.mxu0
        %v2748 = vadd.f32 %v2659, %v2747
        %2749 = vmatmul.bf16.gmra.mxu0 %v2232
        %v2750 = vpop.f32.mrf.mxu0
        %v2751 = vadd.f32 %v2662, %v2750
        %v2752 = vpop.f32.mrf.mxu0
        %v2753 = vadd.f32 %v2664, %v2752
        %2754 = vmatmul.bf16.gmra.mxu0 %v2236
        %v2755 = vpop.f32.mrf.mxu0
        %v2756 = vadd.f32 %v2667, %v2755
        %v2757 = vpop.f32.mrf.mxu0
        %v2758 = vadd.f32 %v2669, %v2757
        %2759 = vmatmul.bf16.gmra.mxu0 %v2240
        %v2760 = vpop.f32.mrf.mxu0
        %v2761 = vadd.f32 %v2672, %v2760
        %v2762 = vpop.f32.mrf.mxu0
        %v2763 = vadd.f32 %v2674, %v2762
        %2764 = vdwg.mxu0
        %2765 = vmatpush.bf16.msra.mxu0 %v2465
        %2766 = vmatpush.bf16.msra.mxu0 %v2464
        %2767 = vmatpush.bf16.msra.mxu0 %v2463
        %2768 = vmatpush.bf16.msra.mxu0 %v2462
        %2769 = vmatpush.bf16.msra.mxu0 %v2461
        %2770 = vmatpush.bf16.msra.mxu0 %v2460
        %2771 = vmatpush.bf16.msra.mxu0 %v2459
        %2772 = vmatpush.bf16.msra.mxu0 %v2458
        %2773 = vmatmul.bf16.gmra.mxu0 %v2181
        %v2774 = vpop.f32.mrf.mxu0
        %v2775 = vadd.f32 %v2686, %v2774
        %v2776 = vpop.f32.mrf.mxu0
        %v2777 = vadd.f32 %v2688, %v2776
        %2778 = vmatmul.bf16.gmra.mxu0 %v2185
        %v2779 = vpop.f32.mrf.mxu0
        %v2780 = vadd.f32 %v2691, %v2779
        %v2781 = vpop.f32.mrf.mxu0
        %v2782 = vadd.f32 %v2693, %v2781
        %2783 = vmatmul.bf16.gmra.mxu0 %v2189
        %v2784 = vpop.f32.mrf.mxu0
        %v2785 = vadd.f32 %v2696, %v2784
        %v2786 = vpop.f32.mrf.mxu0
        %v2787 = vadd.f32 %v2698, %v2786
        %2788 = vmatmul.bf16.gmra.mxu0 %v2193
        %v2789 = vpop.f32.mrf.mxu0
        %v2790 = vadd.f32 %v2701, %v2789
        %v2791 = vpop.f32.mrf.mxu0
        %v2792 = vadd.f32 %v2703, %v2791
        %2793 = vmatmul.bf16.gmra.mxu0 %v2197
        %v2794 = vpop.f32.mrf.mxu0
        %v2795 = vadd.f32 %v2706, %v2794
        %v2796 = vpop.f32.mrf.mxu0
        %v2797 = vadd.f32 %v2708, %v2796
        %2798 = vmatmul.bf16.gmra.mxu0 %v2201
        %v2799 = vpop.f32.mrf.mxu0
        %v2800 = vadd.f32 %v2711, %v2799
        %v2801 = vpop.f32.mrf.mxu0
        %v2802 = vadd.f32 %v2713, %v2801
        %2803 = vmatmul.bf16.gmra.mxu0 %v2205
        %v2804 = vpop.f32.mrf.mxu0
        %v2805 = vadd.f32 %v2716, %v2804
        %v2806 = vpop.f32.mrf.mxu0
        %v2807 = vadd.f32 %v2718, %v2806
        %2808 = vmatmul.bf16.gmra.mxu0 %v2209
        %v2809 = vpop.f32.mrf.mxu0
        %v2810 = vadd.f32 %v2721, %v2809
        %v2811 = vpop.f32.mrf.mxu0
        %v2812 = vadd.f32 %v2723, %v2811
        %2813 = vmatmul.bf16.gmra.mxu0 %v2213
        %v2814 = vpop.f32.mrf.mxu0
        %v2815 = vadd.f32 %v2726, %v2814
        %v2816 = vpop.f32.mrf.mxu0
        %v2817 = vadd.f32 %v2728, %v2816
        %2818 = vmatmul.bf16.gmra.mxu0 %v2217
        %v2819 = vpop.f32.mrf.mxu0
        %v2820 = vadd.f32 %v2731, %v2819
        %v2821 = vpop.f32.mrf.mxu0
        %v2822 = vadd.f32 %v2733, %v2821
        %2823 = vmatmul.bf16.gmra.mxu0 %v2221
        %v2824 = vpop.f32.mrf.mxu0
        %v2825 = vadd.f32 %v2736, %v2824
        %v2826 = vpop.f32.mrf.mxu0
        %v2827 = vadd.f32 %v2738, %v2826
        %2828 = vmatmul.bf16.gmra.mxu0 %v2225
        %v2829 = vpop.f32.mrf.mxu0
        %v2830 = vadd.f32 %v2741, %v2829
        %v2831 = vpop.f32.mrf.mxu0
        %v2832 = vadd.f32 %v2743, %v2831
        %2833 = vmatmul.bf16.gmra.mxu0 %v2229
        %v2834 = vpop.f32.mrf.mxu0
        %v2835 = vadd.f32 %v2746, %v2834
        %v2836 = vpop.f32.mrf.mxu0
        %v2837 = vadd.f32 %v2748, %v2836
        %2838 = vmatmul.bf16.gmra.mxu0 %v2233
        %v2839 = vpop.f32.mrf.mxu0
        %v2840 = vadd.f32 %v2751, %v2839
        %v2841 = vpop.f32.mrf.mxu0
        %v2842 = vadd.f32 %v2753, %v2841
        %2843 = vmatmul.bf16.gmra.mxu0 %v2237
        %v2844 = vpop.f32.mrf.mxu0
        %v2845 = vadd.f32 %v2756, %v2844
        %v2846 = vpop.f32.mrf.mxu0
        %v2847 = vadd.f32 %v2758, %v2846
        %2848 = vmatmul.bf16.gmra.mxu0 %v2241
        %v2849 = vpop.f32.mrf.mxu0
        %v2850 = vadd.f32 %v2761, %v2849
        %v2851 = vpop.f32.mrf.mxu0
        %v2852 = vadd.f32 %v2763, %v2851
        %2853 = vdwg.mxu0
        %v2854 = vadd.f32 %v1822, %v2775
        %v2855 = vadd.f32 %v1823, %v2777
        %v2856 = vadd.f32 %v1824, %v2780
        %v2857 = vadd.f32 %v1825, %v2782
        %v2858 = vadd.f32 %v1826, %v2785
        %v2859 = vadd.f32 %v1827, %v2787
        %v2860 = vadd.f32 %v1828, %v2790
        %v2861 = vadd.f32 %v1829, %v2792
        %v2862 = vadd.f32 %v1830, %v2795
        %v2863 = vadd.f32 %v1831, %v2797
        %v2864 = vadd.f32 %v1832, %v2800
        %v2865 = vadd.f32 %v1833, %v2802
        %v2866 = vadd.f32 %v1834, %v2805
        %v2867 = vadd.f32 %v1835, %v2807
        %v2868 = vadd.f32 %v1836, %v2810
        %v2869 = vadd.f32 %v1837, %v2812
        %v2870 = vadd.f32 %v1838, %v2815
        %v2871 = vadd.f32 %v1839, %v2817
        %v2872 = vadd.f32 %v1840, %v2820
        %v2873 = vadd.f32 %v1841, %v2822
        %v2874 = vadd.f32 %v1842, %v2825
        %v2875 = vadd.f32 %v1843, %v2827
        %v2876 = vadd.f32 %v1844, %v2830
        %v2877 = vadd.f32 %v1845, %v2832
        %v2878 = vadd.f32 %v1846, %v2835
        %v2879 = vadd.f32 %v1847, %v2837
        %v2880 = vadd.f32 %v1848, %v2840
        %v2881 = vadd.f32 %v1849, %v2842
        %v2882 = vadd.f32 %v1850, %v2845
        %v2883 = vadd.f32 %v1851, %v2847
        %v2884 = vadd.f32 %v1852, %v2850
        %v2885 = vadd.f32 %v1853, %v2852
        %vm2886 = vcmask 64512
        %2887 = vst.msk [vmem:[#allocation5] sm:$0xff] %vm2886, %v2854
        %2888 = vst.msk [vmem:[#allocation5 + $0x8] sm:$0xff] %vm2886, %v2855
        %2889 = vst.msk [vmem:[#allocation5 + $0x10] sm:$0xff] %vm2886, %v2856
        %2890 = vst.msk [vmem:[#allocation5 + $0x18] sm:$0xff] %vm2886, %v2857
        %2891 = vst.msk [vmem:[#allocation5 + $0x20] sm:$0xff] %vm2886, %v2858
        %2892 = vst.msk [vmem:[#allocation5 + $0x28] sm:$0xff] %vm2886, %v2859
        %2893 = vst.msk [vmem:[#allocation5 + $0x30] sm:$0xff] %vm2886, %v2860
        %2894 = vst.msk [vmem:[#allocation5 + $0x38] sm:$0xff] %vm2886, %v2861
        %2895 = vst.msk [vmem:[#allocation5 + $0x40] sm:$0xff] %vm2886, %v2862
        %2896 = vst.msk [vmem:[#allocation5 + $0x48] sm:$0xff] %vm2886, %v2863
        %2897 = vst.msk [vmem:[#allocation5 + $0x50] sm:$0xff] %vm2886, %v2864
        %2898 = vst.msk [vmem:[#allocation5 + $0x58] sm:$0xff] %vm2886, %v2865
        %2899 = vst.msk [vmem:[#allocation5 + $0x60] sm:$0xff] %vm2886, %v2866
        %2900 = vst.msk [vmem:[#allocation5 + $0x68] sm:$0xff] %vm2886, %v2867
        %2901 = vst.msk [vmem:[#allocation5 + $0x70] sm:$0xff] %vm2886, %v2868
        %2902 = vst.msk [vmem:[#allocation5 + $0x78] sm:$0xff] %vm2886, %v2869
        %2903 = vst.msk [vmem:[#allocation5 + $0x80] sm:$0xff] %vm2886, %v2870
        %2904 = vst.msk [vmem:[#allocation5 + $0x88] sm:$0xff] %vm2886, %v2871
        %2905 = vst.msk [vmem:[#allocation5 + $0x90] sm:$0xff] %vm2886, %v2872
        %2906 = vst.msk [vmem:[#allocation5 + $0x98] sm:$0xff] %vm2886, %v2873
        %2907 = vst.msk [vmem:[#allocation5 + $0xa0] sm:$0xff] %vm2886, %v2874
        %2908 = vst.msk [vmem:[#allocation5 + $0xa8] sm:$0xff] %vm2886, %v2875
        %2909 = vst.msk [vmem:[#allocation5 + $0xb0] sm:$0xff] %vm2886, %v2876
        %2910 = vst.msk [vmem:[#allocation5 + $0xb8] sm:$0xff] %vm2886, %v2877
        %2911 = vst.msk [vmem:[#allocation5 + $0xc0] sm:$0xff] %vm2886, %v2878
        %2912 = vst.msk [vmem:[#allocation5 + $0xc8] sm:$0xff] %vm2886, %v2879
        %2913 = vst.msk [vmem:[#allocation5 + $0xd0] sm:$0xff] %vm2886, %v2880
        %2914 = vst.msk [vmem:[#allocation5 + $0xd8] sm:$0xff] %vm2886, %v2881
        %2915 = vst.msk [vmem:[#allocation5 + $0xe0] sm:$0xff] %vm2886, %v2882
        %2916 = vst.msk [vmem:[#allocation5 + $0xe8] sm:$0xff] %vm2886, %v2883
        %2917 = vst.msk [vmem:[#allocation5 + $0xf0] sm:$0xff] %vm2886, %v2884
        %2918 = vst.msk [vmem:[#allocation5 + $0xf8] sm:$0xff] %vm2886, %v2885
        %p2919 = scmp.eq.s32.totalorder %s29, 1
        // Predicated region
        $region104: #{gcn_learn_forward.1} parent=82 // pred_check
          %p2920 = pneg %p2919
        $region105: #{gcn_learn_forward.1} parent=82 // pred_check_branch
          %2922 = sbr.rel (%p2920) target = $region107
        $region106: #{gcn_learn_forward.1} parent=82 // pred_region
          %p2923 = scmp.eq.s32.totalorder %s27, 0
          // Predicated region
          $region108: #{gcn_learn_forward.1} parent=106 // pred_check
            %p2924 = pneg %p2923
          $region109: #{gcn_learn_forward.1} parent=106 // pred_check_branch
            %2926 = sbr.rel (%p2924) target = $region111
          $region110: #{gcn_learn_forward.1} parent=106 // pred_region
            %v2927 = vld [vmem:[#allocation5] sm:$0xff]
            %v2928 = vld [vmem:[#allocation5 + $0x8] sm:$0xff]
            %v2929 = vld [vmem:[#allocation5 + $0x10] sm:$0xff]
            %v2930 = vld [vmem:[#allocation5 + $0x18] sm:$0xff]
            %v2931 = vld [vmem:[#allocation5 + $0x20] sm:$0xff]
            %v2932 = vld [vmem:[#allocation5 + $0x28] sm:$0xff]
            %v2933 = vld [vmem:[#allocation5 + $0x30] sm:$0xff]
            %v2934 = vld [vmem:[#allocation5 + $0x38] sm:$0xff]
            %v2935 = vld [vmem:[#allocation5 + $0x40] sm:$0xff]
            %v2936 = vld [vmem:[#allocation5 + $0x48] sm:$0xff]
            %v2937 = vld [vmem:[#allocation5 + $0x50] sm:$0xff]
            %v2938 = vld [vmem:[#allocation5 + $0x58] sm:$0xff]
            %v2939 = vld [vmem:[#allocation5 + $0x60] sm:$0xff]
            %v2940 = vld [vmem:[#allocation5 + $0x68] sm:$0xff]
            %v2941 = vld [vmem:[#allocation5 + $0x70] sm:$0xff]
            %v2942 = vld [vmem:[#allocation5 + $0x78] sm:$0xff]
            %v2943 = vld [vmem:[#allocation5 + $0x80] sm:$0xff]
            %v2944 = vld [vmem:[#allocation5 + $0x88] sm:$0xff]
            %v2945 = vld [vmem:[#allocation5 + $0x90] sm:$0xff]
            %v2946 = vld [vmem:[#allocation5 + $0x98] sm:$0xff]
            %v2947 = vld [vmem:[#allocation5 + $0xa0] sm:$0xff]
            %v2948 = vld [vmem:[#allocation5 + $0xa8] sm:$0xff]
            %v2949 = vld [vmem:[#allocation5 + $0xb0] sm:$0xff]
            %v2950 = vld [vmem:[#allocation5 + $0xb8] sm:$0xff]
            %v2951 = vld [vmem:[#allocation5 + $0xc0] sm:$0xff]
            %v2952 = vld [vmem:[#allocation5 + $0xc8] sm:$0xff]
            %v2953 = vld [vmem:[#allocation5 + $0xd0] sm:$0xff]
            %v2954 = vld [vmem:[#allocation5 + $0xd8] sm:$0xff]
            %v2955 = vld [vmem:[#allocation5 + $0xe0] sm:$0xff]
            %v2956 = vld [vmem:[#allocation5 + $0xe8] sm:$0xff]
            %v2957 = vld [vmem:[#allocation5 + $0xf0] sm:$0xff]
            %v2958 = vld [vmem:[#allocation5 + $0xf8] sm:$0xff]
            %v2959 = vld [vmem:[%s3] sm:$0x1]
            %v2961 = vperm.slane %v2959, 0
            %v2963 = vadd.f32 %v2927, %v2961
            %v2964 = vadd.f32 %v2928, %v2961
            %v2965 = vadd.f32 %v2929, %v2961
            %v2966 = vadd.f32 %v2930, %v2961
            %v2967 = vadd.f32 %v2931, %v2961
            %v2968 = vadd.f32 %v2932, %v2961
            %v2969 = vadd.f32 %v2933, %v2961
            %v2970 = vadd.f32 %v2934, %v2961
            %v2971 = vadd.f32 %v2935, %v2961
            %v2972 = vadd.f32 %v2936, %v2961
            %v2973 = vadd.f32 %v2937, %v2961
            %v2974 = vadd.f32 %v2938, %v2961
            %v2975 = vadd.f32 %v2939, %v2961
            %v2976 = vadd.f32 %v2940, %v2961
            %v2977 = vadd.f32 %v2941, %v2961
            %v2978 = vadd.f32 %v2942, %v2961
            %v2979 = vadd.f32 %v2943, %v2961
            %v2980 = vadd.f32 %v2944, %v2961
            %v2981 = vadd.f32 %v2945, %v2961
            %v2982 = vadd.f32 %v2946, %v2961
            %v2983 = vadd.f32 %v2947, %v2961
            %v2984 = vadd.f32 %v2948, %v2961
            %v2985 = vadd.f32 %v2949, %v2961
            %v2986 = vadd.f32 %v2950, %v2961
            %v2987 = vadd.f32 %v2951, %v2961
            %v2988 = vadd.f32 %v2952, %v2961
            %v2989 = vadd.f32 %v2953, %v2961
            %v2990 = vadd.f32 %v2954, %v2961
            %v2991 = vadd.f32 %v2955, %v2961
            %v2992 = vadd.f32 %v2956, %v2961
            %v2993 = vadd.f32 %v2957, %v2961
            %v2994 = vadd.f32 %v2958, %v2961
            %v2995 = vmax.f32 %v2963, 0.0
            %v2996 = vmax.f32 %v2964, 0.0
            %v2997 = vmax.f32 %v2965, 0.0
            %v2998 = vmax.f32 %v2966, 0.0
            %v2999 = vmax.f32 %v2967, 0.0
            %v3000 = vmax.f32 %v2968, 0.0
            %v3001 = vmax.f32 %v2969, 0.0
            %v3002 = vmax.f32 %v2970, 0.0
            %v3003 = vmax.f32 %v2971, 0.0
            %v3004 = vmax.f32 %v2972, 0.0
            %v3005 = vmax.f32 %v2973, 0.0
            %v3006 = vmax.f32 %v2974, 0.0
            %v3007 = vmax.f32 %v2975, 0.0
            %v3008 = vmax.f32 %v2976, 0.0
            %v3009 = vmax.f32 %v2977, 0.0
            %v3010 = vmax.f32 %v2978, 0.0
            %v3011 = vmax.f32 %v2979, 0.0
            %v3012 = vmax.f32 %v2980, 0.0
            %v3013 = vmax.f32 %v2981, 0.0
            %v3014 = vmax.f32 %v2982, 0.0
            %v3015 = vmax.f32 %v2983, 0.0
            %v3016 = vmax.f32 %v2984, 0.0
            %v3017 = vmax.f32 %v2985, 0.0
            %v3018 = vmax.f32 %v2986, 0.0
            %v3019 = vmax.f32 %v2987, 0.0
            %v3020 = vmax.f32 %v2988, 0.0
            %v3021 = vmax.f32 %v2989, 0.0
            %v3022 = vmax.f32 %v2990, 0.0
            %v3023 = vmax.f32 %v2991, 0.0
            %v3024 = vmax.f32 %v2992, 0.0
            %v3025 = vmax.f32 %v2993, 0.0
            %v3026 = vmax.f32 %v2994, 0.0
            %s3027 = scalar_lea.vmem [#allocation3], %s567
            %3028 = vst.msk [vmem:[%s3027] sm:$0xff] %vm2886, %v2995
            %3029 = vst.msk [vmem:[%s3027 + $0x8] sm:$0xff] %vm2886, %v2996
            %3030 = vst.msk [vmem:[%s3027 + $0x10] sm:$0xff] %vm2886, %v2997
            %3031 = vst.msk [vmem:[%s3027 + $0x18] sm:$0xff] %vm2886, %v2998
            %3032 = vst.msk [vmem:[%s3027 + $0x20] sm:$0xff] %vm2886, %v2999
            %3033 = vst.msk [vmem:[%s3027 + $0x28] sm:$0xff] %vm2886, %v3000
            %3034 = vst.msk [vmem:[%s3027 + $0x30] sm:$0xff] %vm2886, %v3001
            %3035 = vst.msk [vmem:[%s3027 + $0x38] sm:$0xff] %vm2886, %v3002
            %3036 = vst.msk [vmem:[%s3027 + $0x40] sm:$0xff] %vm2886, %v3003
            %3037 = vst.msk [vmem:[%s3027 + $0x48] sm:$0xff] %vm2886, %v3004
            %3038 = vst.msk [vmem:[%s3027 + $0x50] sm:$0xff] %vm2886, %v3005
            %3039 = vst.msk [vmem:[%s3027 + $0x58] sm:$0xff] %vm2886, %v3006
            %3040 = vst.msk [vmem:[%s3027 + $0x60] sm:$0xff] %vm2886, %v3007
            %3041 = vst.msk [vmem:[%s3027 + $0x68] sm:$0xff] %vm2886, %v3008
            %3042 = vst.msk [vmem:[%s3027 + $0x70] sm:$0xff] %vm2886, %v3009
            %3043 = vst.msk [vmem:[%s3027 + $0x78] sm:$0xff] %vm2886, %v3010
            %3044 = vst.msk [vmem:[%s3027 + $0x80] sm:$0xff] %vm2886, %v3011
            %3045 = vst.msk [vmem:[%s3027 + $0x88] sm:$0xff] %vm2886, %v3012
            %3046 = vst.msk [vmem:[%s3027 + $0x90] sm:$0xff] %vm2886, %v3013
            %3047 = vst.msk [vmem:[%s3027 + $0x98] sm:$0xff] %vm2886, %v3014
            %3048 = vst.msk [vmem:[%s3027 + $0xa0] sm:$0xff] %vm2886, %v3015
            %3049 = vst.msk [vmem:[%s3027 + $0xa8] sm:$0xff] %vm2886, %v3016
            %3050 = vst.msk [vmem:[%s3027 + $0xb0] sm:$0xff] %vm2886, %v3017
            %3051 = vst.msk [vmem:[%s3027 + $0xb8] sm:$0xff] %vm2886, %v3018
            %3052 = vst.msk [vmem:[%s3027 + $0xc0] sm:$0xff] %vm2886, %v3019
            %3053 = vst.msk [vmem:[%s3027 + $0xc8] sm:$0xff] %vm2886, %v3020
            %3054 = vst.msk [vmem:[%s3027 + $0xd0] sm:$0xff] %vm2886, %v3021
            %3055 = vst.msk [vmem:[%s3027 + $0xd8] sm:$0xff] %vm2886, %v3022
            %3056 = vst.msk [vmem:[%s3027 + $0xe0] sm:$0xff] %vm2886, %v3023
            %3057 = vst.msk [vmem:[%s3027 + $0xe8] sm:$0xff] %vm2886, %v3024
            %3058 = vst.msk [vmem:[%s3027 + $0xf0] sm:$0xff] %vm2886, %v3025
            %3059 = vst.msk [vmem:[%s3027 + $0xf8] sm:$0xff] %vm2886, %v3026
          $region111: #{gcn_learn_forward.1} parent=106 // pred_fallthru
            _
          %p3060 = scmp.eq.s32.totalorder %s27, 1
          // Predicated region
          $region112: #{gcn_learn_forward.1} parent=106 // pred_check
            %p3061 = pneg %p3060
          $region113: #{gcn_learn_forward.1} parent=106 // pred_check_branch
            %3063 = sbr.rel (%p3061) target = $region115
          $region114: #{gcn_learn_forward.1} parent=106 // pred_region
            %v3064 = vld [vmem:[#allocation5] sm:$0xff]
            %v3065 = vld [vmem:[#allocation5 + $0x8] sm:$0xff]
            %v3066 = vld [vmem:[#allocation5 + $0x10] sm:$0xff]
            %v3067 = vld [vmem:[#allocation5 + $0x18] sm:$0xff]
            %v3068 = vld [vmem:[#allocation5 + $0x20] sm:$0xff]
            %v3069 = vld [vmem:[#allocation5 + $0x28] sm:$0xff]
            %v3070 = vld [vmem:[#allocation5 + $0x30] sm:$0xff]
            %v3071 = vld [vmem:[#allocation5 + $0x38] sm:$0xff]
            %v3072 = vld [vmem:[#allocation5 + $0x40] sm:$0xff]
            %v3073 = vld [vmem:[#allocation5 + $0x48] sm:$0xff]
            %v3074 = vld [vmem:[#allocation5 + $0x50] sm:$0xff]
            %v3075 = vld [vmem:[#allocation5 + $0x58] sm:$0xff]
            %v3076 = vld [vmem:[#allocation5 + $0x60] sm:$0xff]
            %v3077 = vld [vmem:[#allocation5 + $0x68] sm:$0xff]
            %v3078 = vld [vmem:[#allocation5 + $0x70] sm:$0xff]
            %v3079 = vld [vmem:[#allocation5 + $0x78] sm:$0xff]
            %v3080 = vld [vmem:[#allocation5 + $0x80] sm:$0xff]
            %v3081 = vld [vmem:[#allocation5 + $0x88] sm:$0xff]
            %v3082 = vld [vmem:[#allocation5 + $0x90] sm:$0xff]
            %v3083 = vld [vmem:[#allocation5 + $0x98] sm:$0xff]
            %v3084 = vld [vmem:[#allocation5 + $0xa0] sm:$0xff]
            %v3085 = vld [vmem:[#allocation5 + $0xa8] sm:$0xff]
            %v3086 = vld [vmem:[#allocation5 + $0xb0] sm:$0xff]
            %v3087 = vld [vmem:[#allocation5 + $0xb8] sm:$0xff]
            %v3088 = vld [vmem:[#allocation5 + $0xc0] sm:$0xff]
            %v3089 = vld [vmem:[#allocation5 + $0xc8] sm:$0xff]
            %v3090 = vld [vmem:[#allocation5 + $0xd0] sm:$0xff]
            %v3091 = vld [vmem:[#allocation5 + $0xd8] sm:$0xff]
            %v3092 = vld [vmem:[#allocation5 + $0xe0] sm:$0xff]
            %v3093 = vld [vmem:[#allocation5 + $0xe8] sm:$0xff]
            %v3094 = vld [vmem:[#allocation5 + $0xf0] sm:$0xff]
            %v3095 = vld [vmem:[#allocation5 + $0xf8] sm:$0xff]
            %v3096 = vld [vmem:[%s5] sm:$0x1]
            %v3098 = vperm.slane %v3096, 0
            %v3100 = vadd.f32 %v3064, %v3098
            %v3101 = vadd.f32 %v3065, %v3098
            %v3102 = vadd.f32 %v3066, %v3098
            %v3103 = vadd.f32 %v3067, %v3098
            %v3104 = vadd.f32 %v3068, %v3098
            %v3105 = vadd.f32 %v3069, %v3098
            %v3106 = vadd.f32 %v3070, %v3098
            %v3107 = vadd.f32 %v3071, %v3098
            %v3108 = vadd.f32 %v3072, %v3098
            %v3109 = vadd.f32 %v3073, %v3098
            %v3110 = vadd.f32 %v3074, %v3098
            %v3111 = vadd.f32 %v3075, %v3098
            %v3112 = vadd.f32 %v3076, %v3098
            %v3113 = vadd.f32 %v3077, %v3098
            %v3114 = vadd.f32 %v3078, %v3098
            %v3115 = vadd.f32 %v3079, %v3098
            %v3116 = vadd.f32 %v3080, %v3098
            %v3117 = vadd.f32 %v3081, %v3098
            %v3118 = vadd.f32 %v3082, %v3098
            %v3119 = vadd.f32 %v3083, %v3098
            %v3120 = vadd.f32 %v3084, %v3098
            %v3121 = vadd.f32 %v3085, %v3098
            %v3122 = vadd.f32 %v3086, %v3098
            %v3123 = vadd.f32 %v3087, %v3098
            %v3124 = vadd.f32 %v3088, %v3098
            %v3125 = vadd.f32 %v3089, %v3098
            %v3126 = vadd.f32 %v3090, %v3098
            %v3127 = vadd.f32 %v3091, %v3098
            %v3128 = vadd.f32 %v3092, %v3098
            %v3129 = vadd.f32 %v3093, %v3098
            %v3130 = vadd.f32 %v3094, %v3098
            %v3131 = vadd.f32 %v3095, %v3098
            %v3132 = vmax.f32 %v3100, 0.0
            %v3133 = vmax.f32 %v3101, 0.0
            %v3134 = vmax.f32 %v3102, 0.0
            %v3135 = vmax.f32 %v3103, 0.0
            %v3136 = vmax.f32 %v3104, 0.0
            %v3137 = vmax.f32 %v3105, 0.0
            %v3138 = vmax.f32 %v3106, 0.0
            %v3139 = vmax.f32 %v3107, 0.0
            %v3140 = vmax.f32 %v3108, 0.0
            %v3141 = vmax.f32 %v3109, 0.0
            %v3142 = vmax.f32 %v3110, 0.0
            %v3143 = vmax.f32 %v3111, 0.0
            %v3144 = vmax.f32 %v3112, 0.0
            %v3145 = vmax.f32 %v3113, 0.0
            %v3146 = vmax.f32 %v3114, 0.0
            %v3147 = vmax.f32 %v3115, 0.0
            %v3148 = vmax.f32 %v3116, 0.0
            %v3149 = vmax.f32 %v3117, 0.0
            %v3150 = vmax.f32 %v3118, 0.0
            %v3151 = vmax.f32 %v3119, 0.0
            %v3152 = vmax.f32 %v3120, 0.0
            %v3153 = vmax.f32 %v3121, 0.0
            %v3154 = vmax.f32 %v3122, 0.0
            %v3155 = vmax.f32 %v3123, 0.0
            %v3156 = vmax.f32 %v3124, 0.0
            %v3157 = vmax.f32 %v3125, 0.0
            %v3158 = vmax.f32 %v3126, 0.0
            %v3159 = vmax.f32 %v3127, 0.0
            %v3160 = vmax.f32 %v3128, 0.0
            %v3161 = vmax.f32 %v3129, 0.0
            %v3162 = vmax.f32 %v3130, 0.0
            %v3163 = vmax.f32 %v3131, 0.0
            %s3164 = scalar_lea.vmem [#allocation4], %s567
            %3165 = vst.msk [vmem:[%s3164] sm:$0xff] %vm2886, %v3132
            %3166 = vst.msk [vmem:[%s3164 + $0x8] sm:$0xff] %vm2886, %v3133
            %3167 = vst.msk [vmem:[%s3164 + $0x10] sm:$0xff] %vm2886, %v3134
            %3168 = vst.msk [vmem:[%s3164 + $0x18] sm:$0xff] %vm2886, %v3135
            %3169 = vst.msk [vmem:[%s3164 + $0x20] sm:$0xff] %vm2886, %v3136
            %3170 = vst.msk [vmem:[%s3164 + $0x28] sm:$0xff] %vm2886, %v3137
            %3171 = vst.msk [vmem:[%s3164 + $0x30] sm:$0xff] %vm2886, %v3138
            %3172 = vst.msk [vmem:[%s3164 + $0x38] sm:$0xff] %vm2886, %v3139
            %3173 = vst.msk [vmem:[%s3164 + $0x40] sm:$0xff] %vm2886, %v3140
            %3174 = vst.msk [vmem:[%s3164 + $0x48] sm:$0xff] %vm2886, %v3141
            %3175 = vst.msk [vmem:[%s3164 + $0x50] sm:$0xff] %vm2886, %v3142
            %3176 = vst.msk [vmem:[%s3164 + $0x58] sm:$0xff] %vm2886, %v3143
            %3177 = vst.msk [vmem:[%s3164 + $0x60] sm:$0xff] %vm2886, %v3144
            %3178 = vst.msk [vmem:[%s3164 + $0x68] sm:$0xff] %vm2886, %v3145
            %3179 = vst.msk [vmem:[%s3164 + $0x70] sm:$0xff] %vm2886, %v3146
            %3180 = vst.msk [vmem:[%s3164 + $0x78] sm:$0xff] %vm2886, %v3147
            %3181 = vst.msk [vmem:[%s3164 + $0x80] sm:$0xff] %vm2886, %v3148
            %3182 = vst.msk [vmem:[%s3164 + $0x88] sm:$0xff] %vm2886, %v3149
            %3183 = vst.msk [vmem:[%s3164 + $0x90] sm:$0xff] %vm2886, %v3150
            %3184 = vst.msk [vmem:[%s3164 + $0x98] sm:$0xff] %vm2886, %v3151
            %3185 = vst.msk [vmem:[%s3164 + $0xa0] sm:$0xff] %vm2886, %v3152
            %3186 = vst.msk [vmem:[%s3164 + $0xa8] sm:$0xff] %vm2886, %v3153
            %3187 = vst.msk [vmem:[%s3164 + $0xb0] sm:$0xff] %vm2886, %v3154
            %3188 = vst.msk [vmem:[%s3164 + $0xb8] sm:$0xff] %vm2886, %v3155
            %3189 = vst.msk [vmem:[%s3164 + $0xc0] sm:$0xff] %vm2886, %v3156
            %3190 = vst.msk [vmem:[%s3164 + $0xc8] sm:$0xff] %vm2886, %v3157
            %3191 = vst.msk [vmem:[%s3164 + $0xd0] sm:$0xff] %vm2886, %v3158
            %3192 = vst.msk [vmem:[%s3164 + $0xd8] sm:$0xff] %vm2886, %v3159
            %3193 = vst.msk [vmem:[%s3164 + $0xe0] sm:$0xff] %vm2886, %v3160
            %3194 = vst.msk [vmem:[%s3164 + $0xe8] sm:$0xff] %vm2886, %v3161
            %3195 = vst.msk [vmem:[%s3164 + $0xf0] sm:$0xff] %vm2886, %v3162
            %3196 = vst.msk [vmem:[%s3164 + $0xf8] sm:$0xff] %vm2886, %v3163
          $region115: #{gcn_learn_forward.1} parent=106 // pred_fallthru
            _
        $region107: #{gcn_learn_forward.1} parent=82 // pred_fallthru
          _
        %p3197 = scmp.eq.s32.totalorder %s27, 1
        %p3198 = scmp.eq.s32.totalorder %s28, 3
        %p3199 = pnand %p3197, %p3198
        %p3200 = pneg %p3199
        %p3201 = pnand %p3200, %p2919
        %p3202 = pneg %p3201
        // Predicated region
        $region116: #{gcn_learn_forward.1} parent=82 // pred_check
          _
        $region117: #{gcn_learn_forward.1} parent=82 // pred_check_branch
          %3204 = sbr.rel (%p3201) target = $region119
        $region118: #{gcn_learn_forward.1} parent=82 // pred_region
          %v3205 = vld [vmem:[#allocation4] sm:$0xff]
          %v3206 = vld [vmem:[#allocation4 + $0x8] sm:$0xff]
          %v3207 = vld [vmem:[#allocation4 + $0x10] sm:$0xff]
          %v3208 = vld [vmem:[#allocation4 + $0x18] sm:$0xff]
          %v3209 = vld [vmem:[#allocation4 + $0x20] sm:$0xff]
          %v3210 = vld [vmem:[#allocation4 + $0x28] sm:$0xff]
          %v3211 = vld [vmem:[#allocation4 + $0x30] sm:$0xff]
          %v3212 = vld [vmem:[#allocation4 + $0x38] sm:$0xff]
          %v3213 = vld [vmem:[#allocation4 + $0x40] sm:$0xff]
          %v3214 = vld [vmem:[#allocation4 + $0x48] sm:$0xff]
          %v3215 = vld [vmem:[#allocation4 + $0x50] sm:$0xff]
          %v3216 = vld [vmem:[#allocation4 + $0x58] sm:$0xff]
          %v3217 = vld [vmem:[#allocation4 + $0x60] sm:$0xff]
          %v3218 = vld [vmem:[#allocation4 + $0x68] sm:$0xff]
          %v3219 = vld [vmem:[#allocation4 + $0x70] sm:$0xff]
          %v3220 = vld [vmem:[#allocation4 + $0x78] sm:$0xff]
          %v3221 = vld [vmem:[#allocation4 + $0x80] sm:$0xff]
          %v3222 = vld [vmem:[#allocation4 + $0x88] sm:$0xff]
          %v3223 = vld [vmem:[#allocation4 + $0x90] sm:$0xff]
          %v3224 = vld [vmem:[#allocation4 + $0x98] sm:$0xff]
          %v3225 = vld [vmem:[#allocation4 + $0xa0] sm:$0xff]
          %v3226 = vld [vmem:[#allocation4 + $0xa8] sm:$0xff]
          %v3227 = vld [vmem:[#allocation4 + $0xb0] sm:$0xff]
          %v3228 = vld [vmem:[#allocation4 + $0xb8] sm:$0xff]
          %v3229 = vld [vmem:[#allocation4 + $0xc0] sm:$0xff]
          %v3230 = vld [vmem:[#allocation4 + $0xc8] sm:$0xff]
          %v3231 = vld [vmem:[#allocation4 + $0xd0] sm:$0xff]
          %v3232 = vld [vmem:[#allocation4 + $0xd8] sm:$0xff]
          %v3233 = vld [vmem:[#allocation4 + $0xe0] sm:$0xff]
          %v3234 = vld [vmem:[#allocation4 + $0xe8] sm:$0xff]
          %v3235 = vld [vmem:[#allocation4 + $0xf0] sm:$0xff]
          %v3236 = vld [vmem:[#allocation4 + $0xf8] sm:$0xff]
          %v3237 = vld [vmem:[#allocation4 + $0x100] sm:$0xff]
          %v3238 = vld [vmem:[#allocation4 + $0x108] sm:$0xff]
          %v3239 = vld [vmem:[#allocation4 + $0x110] sm:$0xff]
          %v3240 = vld [vmem:[#allocation4 + $0x118] sm:$0xff]
          %v3241 = vld [vmem:[#allocation4 + $0x120] sm:$0xff]
          %v3242 = vld [vmem:[#allocation4 + $0x128] sm:$0xff]
          %v3243 = vld [vmem:[#allocation4 + $0x130] sm:$0xff]
          %v3244 = vld [vmem:[#allocation4 + $0x138] sm:$0xff]
          %v3245 = vld [vmem:[#allocation4 + $0x140] sm:$0xff]
          %v3246 = vld [vmem:[#allocation4 + $0x148] sm:$0xff]
          %v3247 = vld [vmem:[#allocation4 + $0x150] sm:$0xff]
          %v3248 = vld [vmem:[#allocation4 + $0x158] sm:$0xff]
          %v3249 = vld [vmem:[#allocation4 + $0x160] sm:$0xff]
          %v3250 = vld [vmem:[#allocation4 + $0x168] sm:$0xff]
          %v3251 = vld [vmem:[#allocation4 + $0x170] sm:$0xff]
          %v3252 = vld [vmem:[#allocation4 + $0x178] sm:$0xff]
          %v3253 = vld [vmem:[#allocation4 + $0x180] sm:$0xff]
          %v3254 = vld [vmem:[#allocation4 + $0x188] sm:$0xff]
          %v3255 = vld [vmem:[#allocation4 + $0x190] sm:$0xff]
          %v3256 = vld [vmem:[#allocation4 + $0x198] sm:$0xff]
          %v3257 = vld [vmem:[#allocation4 + $0x1a0] sm:$0xff]
          %v3258 = vld [vmem:[#allocation4 + $0x1a8] sm:$0xff]
          %v3259 = vld [vmem:[#allocation4 + $0x1b0] sm:$0xff]
          %v3260 = vld [vmem:[#allocation4 + $0x1b8] sm:$0xff]
          %v3261 = vld [vmem:[#allocation4 + $0x1c0] sm:$0xff]
          %v3262 = vld [vmem:[#allocation4 + $0x1c8] sm:$0xff]
          %v3263 = vld [vmem:[#allocation4 + $0x1d0] sm:$0xff]
          %v3264 = vld [vmem:[#allocation4 + $0x1d8] sm:$0xff]
          %v3265 = vld [vmem:[#allocation4 + $0x1e0] sm:$0xff]
          %v3266 = vld [vmem:[#allocation4 + $0x1e8] sm:$0xff]
          %v3267 = vld [vmem:[#allocation4 + $0x1f0] sm:$0xff]
          %v3268 = vld [vmem:[#allocation4 + $0x1f8] sm:$0xff]
          %v3269 = vld [vmem:[#allocation4 + $0x200] sm:$0xff]
          %v3270 = vld [vmem:[#allocation4 + $0x208] sm:$0xff]
          %v3271 = vld [vmem:[#allocation4 + $0x210] sm:$0xff]
          %v3272 = vld [vmem:[#allocation4 + $0x218] sm:$0xff]
          %v3273 = vld [vmem:[#allocation4 + $0x220] sm:$0xff]
          %v3274 = vld [vmem:[#allocation4 + $0x228] sm:$0xff]
          %v3275 = vld [vmem:[#allocation4 + $0x230] sm:$0xff]
          %v3276 = vld [vmem:[#allocation4 + $0x238] sm:$0xff]
          %v3277 = vld [vmem:[#allocation4 + $0x240] sm:$0xff]
          %v3278 = vld [vmem:[#allocation4 + $0x248] sm:$0xff]
          %v3279 = vld [vmem:[#allocation4 + $0x250] sm:$0xff]
          %v3280 = vld [vmem:[#allocation4 + $0x258] sm:$0xff]
          %v3281 = vld [vmem:[#allocation4 + $0x260] sm:$0xff]
          %v3282 = vld [vmem:[#allocation4 + $0x268] sm:$0xff]
          %v3283 = vld [vmem:[#allocation4 + $0x270] sm:$0xff]
          %v3284 = vld [vmem:[#allocation4 + $0x278] sm:$0xff]
          %v3285 = vld [vmem:[#allocation4 + $0x280] sm:$0xff]
          %v3286 = vld [vmem:[#allocation4 + $0x288] sm:$0xff]
          %v3287 = vld [vmem:[#allocation4 + $0x290] sm:$0xff]
          %v3288 = vld [vmem:[#allocation4 + $0x298] sm:$0xff]
          %v3289 = vld [vmem:[#allocation4 + $0x2a0] sm:$0xff]
          %v3290 = vld [vmem:[#allocation4 + $0x2a8] sm:$0xff]
          %v3291 = vld [vmem:[#allocation4 + $0x2b0] sm:$0xff]
          %v3292 = vld [vmem:[#allocation4 + $0x2b8] sm:$0xff]
          %v3293 = vld [vmem:[#allocation4 + $0x2c0] sm:$0xff]
          %v3294 = vld [vmem:[#allocation4 + $0x2c8] sm:$0xff]
          %v3295 = vld [vmem:[#allocation4 + $0x2d0] sm:$0xff]
          %v3296 = vld [vmem:[#allocation4 + $0x2d8] sm:$0xff]
          %v3297 = vld [vmem:[#allocation4 + $0x2e0] sm:$0xff]
          %v3298 = vld [vmem:[#allocation4 + $0x2e8] sm:$0xff]
          %v3299 = vld [vmem:[#allocation4 + $0x2f0] sm:$0xff]
          %v3300 = vld [vmem:[#allocation4 + $0x2f8] sm:$0xff]
          %v3301 = vld [vmem:[#allocation4 + $0x300] sm:$0xff]
          %v3302 = vld [vmem:[#allocation4 + $0x308] sm:$0xff]
          %v3303 = vld [vmem:[#allocation4 + $0x310] sm:$0xff]
          %v3304 = vld [vmem:[#allocation4 + $0x318] sm:$0xff]
          %v3305 = vld [vmem:[#allocation4 + $0x320] sm:$0xff]
          %v3306 = vld [vmem:[#allocation4 + $0x328] sm:$0xff]
          %v3307 = vld [vmem:[#allocation4 + $0x330] sm:$0xff]
          %v3308 = vld [vmem:[#allocation4 + $0x338] sm:$0xff]
          %v3309 = vld [vmem:[#allocation4 + $0x340] sm:$0xff]
          %v3310 = vld [vmem:[#allocation4 + $0x348] sm:$0xff]
          %v3311 = vld [vmem:[#allocation4 + $0x350] sm:$0xff]
          %v3312 = vld [vmem:[#allocation4 + $0x358] sm:$0xff]
          %v3313 = vld [vmem:[#allocation4 + $0x360] sm:$0xff]
          %v3314 = vld [vmem:[#allocation4 + $0x368] sm:$0xff]
          %v3315 = vld [vmem:[#allocation4 + $0x370] sm:$0xff]
          %v3316 = vld [vmem:[#allocation4 + $0x378] sm:$0xff]
          %v3317 = vld [vmem:[#allocation4 + $0x380] sm:$0xff]
          %v3318 = vld [vmem:[#allocation4 + $0x388] sm:$0xff]
          %v3319 = vld [vmem:[#allocation4 + $0x390] sm:$0xff]
          %v3320 = vld [vmem:[#allocation4 + $0x398] sm:$0xff]
          %v3321 = vld [vmem:[#allocation4 + $0x3a0] sm:$0xff]
          %v3322 = vld [vmem:[#allocation4 + $0x3a8] sm:$0xff]
          %v3323 = vld [vmem:[#allocation4 + $0x3b0] sm:$0xff]
          %v3324 = vld [vmem:[#allocation4 + $0x3b8] sm:$0xff]
          %v3325 = vld [vmem:[#allocation4 + $0x3c0] sm:$0xff]
          %v3326 = vld [vmem:[#allocation4 + $0x3c8] sm:$0xff]
          %v3327 = vld [vmem:[#allocation4 + $0x3d0] sm:$0xff]
          %v3328 = vld [vmem:[#allocation4 + $0x3d8] sm:$0xff]
          %v3329 = vld [vmem:[#allocation4 + $0x3e0] sm:$0xff]
          %v3330 = vld [vmem:[#allocation4 + $0x3e8] sm:$0xff]
          %v3331 = vld [vmem:[#allocation4 + $0x3f0] sm:$0xff]
          %v3332 = vld [vmem:[#allocation4 + $0x3f8] sm:$0xff]
          %v3333 = vld [vmem:[%s6] sm:$0xff]
          %v3334 = vld [vmem:[%s6 + $0x8] sm:$0xff]
          %v3335 = vld [vmem:[%s6 + $0x10] sm:$0xff]
          %v3336 = vld [vmem:[%s6 + $0x18] sm:$0xff]
          %v3337 = vld [vmem:[%s6 + $0x20] sm:$0xff]
          %v3338 = vld [vmem:[%s6 + $0x28] sm:$0xff]
          %v3339 = vld [vmem:[%s6 + $0x30] sm:$0xff]
          %v3340 = vld [vmem:[%s6 + $0x38] sm:$0xff]
          %v3341 = vld [vmem:[%s6 + $0x40] sm:$0xff]
          %v3342 = vld [vmem:[%s6 + $0x48] sm:$0xff]
          %v3343 = vld [vmem:[%s6 + $0x50] sm:$0xff]
          %v3344 = vld [vmem:[%s6 + $0x58] sm:$0xff]
          %v3345 = vld [vmem:[%s6 + $0x60] sm:$0xff]
          %v3346 = vld [vmem:[%s6 + $0x68] sm:$0xff]
          %v3347 = vld [vmem:[%s6 + $0x70] sm:$0xff]
          %v3348 = vld [vmem:[%s6 + $0x78] sm:$0xff]
          %3349 = vmatpush.msra.mxu0 %v3220
          %3350 = vmatpush.msra.mxu0 %v3219
          %3351 = vmatpush.msra.mxu0 %v3218
          %3352 = vmatpush.msra.mxu0 %v3217
          %3353 = vmatpush.msra.mxu0 %v3216
          %3354 = vmatpush.msra.mxu0 %v3215
          %3355 = vmatpush.msra.mxu0 %v3214
          %3356 = vmatpush.msra.mxu0 %v3213
          %3357 = vmatpush.msra.mxu0 %v3212
          %3358 = vmatpush.msra.mxu0 %v3211
          %3359 = vmatpush.msra.mxu0 %v3210
          %3360 = vmatpush.msra.mxu0 %v3209
          %3361 = vmatpush.msra.mxu0 %v3208
          %3362 = vmatpush.msra.mxu0 %v3207
          %3363 = vmatpush.msra.mxu0 %v3206
          %3364 = vmatpush.msra.mxu0 %v3205
          %3365 = vmatmul.f32.gmra.mxu0 %v3333
          %v3366 = vpop.f32.mrf.mxu0
          %v3367 = vadd.f32 0.0, %v3366
          %3368 = vmatmul.f32.gmra.mxu0 %v3341
          %v3369 = vpop.f32.mrf.mxu0
          %v3370 = vadd.f32 0.0, %v3369
          %3371 = vdwg.mxu0
          %3372 = vmatpush.msra.mxu0 %v3236
          %3373 = vmatpush.msra.mxu0 %v3235
          %3374 = vmatpush.msra.mxu0 %v3234
          %3375 = vmatpush.msra.mxu0 %v3233
          %3376 = vmatpush.msra.mxu0 %v3232
          %3377 = vmatpush.msra.mxu0 %v3231
          %3378 = vmatpush.msra.mxu0 %v3230
          %3379 = vmatpush.msra.mxu0 %v3229
          %3380 = vmatpush.msra.mxu0 %v3228
          %3381 = vmatpush.msra.mxu0 %v3227
          %3382 = vmatpush.msra.mxu0 %v3226
          %3383 = vmatpush.msra.mxu0 %v3225
          %3384 = vmatpush.msra.mxu0 %v3224
          %3385 = vmatpush.msra.mxu0 %v3223
          %3386 = vmatpush.msra.mxu0 %v3222
          %3387 = vmatpush.msra.mxu0 %v3221
          %3388 = vmatmul.f32.gmra.mxu0 %v3334
          %v3389 = vpop.f32.mrf.mxu0
          %v3390 = vadd.f32 %v3367, %v3389
          %3391 = vmatmul.f32.gmra.mxu0 %v3342
          %v3392 = vpop.f32.mrf.mxu0
          %v3393 = vadd.f32 %v3370, %v3392
          %3394 = vdwg.mxu0
          %3395 = vmatpush.msra.mxu0 %v3252
          %3396 = vmatpush.msra.mxu0 %v3251
          %3397 = vmatpush.msra.mxu0 %v3250
          %3398 = vmatpush.msra.mxu0 %v3249
          %3399 = vmatpush.msra.mxu0 %v3248
          %3400 = vmatpush.msra.mxu0 %v3247
          %3401 = vmatpush.msra.mxu0 %v3246
          %3402 = vmatpush.msra.mxu0 %v3245
          %3403 = vmatpush.msra.mxu0 %v3244
          %3404 = vmatpush.msra.mxu0 %v3243
          %3405 = vmatpush.msra.mxu0 %v3242
          %3406 = vmatpush.msra.mxu0 %v3241
          %3407 = vmatpush.msra.mxu0 %v3240
          %3408 = vmatpush.msra.mxu0 %v3239
          %3409 = vmatpush.msra.mxu0 %v3238
          %3410 = vmatpush.msra.mxu0 %v3237
          %3411 = vmatmul.f32.gmra.mxu0 %v3335
          %v3412 = vpop.f32.mrf.mxu0
          %v3413 = vadd.f32 %v3390, %v3412
          %3414 = vmatmul.f32.gmra.mxu0 %v3343
          %v3415 = vpop.f32.mrf.mxu0
          %v3416 = vadd.f32 %v3393, %v3415
          %3417 = vdwg.mxu0
          %3418 = vmatpush.msra.mxu0 %v3268
          %3419 = vmatpush.msra.mxu0 %v3267
          %3420 = vmatpush.msra.mxu0 %v3266
          %3421 = vmatpush.msra.mxu0 %v3265
          %3422 = vmatpush.msra.mxu0 %v3264
          %3423 = vmatpush.msra.mxu0 %v3263
          %3424 = vmatpush.msra.mxu0 %v3262
          %3425 = vmatpush.msra.mxu0 %v3261
          %3426 = vmatpush.msra.mxu0 %v3260
          %3427 = vmatpush.msra.mxu0 %v3259
          %3428 = vmatpush.msra.mxu0 %v3258
          %3429 = vmatpush.msra.mxu0 %v3257
          %3430 = vmatpush.msra.mxu0 %v3256
          %3431 = vmatpush.msra.mxu0 %v3255
          %3432 = vmatpush.msra.mxu0 %v3254
          %3433 = vmatpush.msra.mxu0 %v3253
          %3434 = vmatmul.f32.gmra.mxu0 %v3336
          %v3435 = vpop.f32.mrf.mxu0
          %v3436 = vadd.f32 %v3413, %v3435
          %3437 = vmatmul.f32.gmra.mxu0 %v3344
          %v3438 = vpop.f32.mrf.mxu0
          %v3439 = vadd.f32 %v3416, %v3438
          %3440 = vdwg.mxu0
          %3441 = vmatpush.msra.mxu0 %v3284
          %3442 = vmatpush.msra.mxu0 %v3283
          %3443 = vmatpush.msra.mxu0 %v3282
          %3444 = vmatpush.msra.mxu0 %v3281
          %3445 = vmatpush.msra.mxu0 %v3280
          %3446 = vmatpush.msra.mxu0 %v3279
          %3447 = vmatpush.msra.mxu0 %v3278
          %3448 = vmatpush.msra.mxu0 %v3277
          %3449 = vmatpush.msra.mxu0 %v3276
          %3450 = vmatpush.msra.mxu0 %v3275
          %3451 = vmatpush.msra.mxu0 %v3274
          %3452 = vmatpush.msra.mxu0 %v3273
          %3453 = vmatpush.msra.mxu0 %v3272
          %3454 = vmatpush.msra.mxu0 %v3271
          %3455 = vmatpush.msra.mxu0 %v3270
          %3456 = vmatpush.msra.mxu0 %v3269
          %3457 = vmatmul.f32.gmra.mxu0 %v3337
          %v3458 = vpop.f32.mrf.mxu0
          %v3459 = vadd.f32 %v3436, %v3458
          %3460 = vmatmul.f32.gmra.mxu0 %v3345
          %v3461 = vpop.f32.mrf.mxu0
          %v3462 = vadd.f32 %v3439, %v3461
          %3463 = vdwg.mxu0
          %3464 = vmatpush.msra.mxu0 %v3300
          %3465 = vmatpush.msra.mxu0 %v3299
          %3466 = vmatpush.msra.mxu0 %v3298
          %3467 = vmatpush.msra.mxu0 %v3297
          %3468 = vmatpush.msra.mxu0 %v3296
          %3469 = vmatpush.msra.mxu0 %v3295
          %3470 = vmatpush.msra.mxu0 %v3294
          %3471 = vmatpush.msra.mxu0 %v3293
          %3472 = vmatpush.msra.mxu0 %v3292
          %3473 = vmatpush.msra.mxu0 %v3291
          %3474 = vmatpush.msra.mxu0 %v3290
          %3475 = vmatpush.msra.mxu0 %v3289
          %3476 = vmatpush.msra.mxu0 %v3288
          %3477 = vmatpush.msra.mxu0 %v3287
          %3478 = vmatpush.msra.mxu0 %v3286
          %3479 = vmatpush.msra.mxu0 %v3285
          %3480 = vmatmul.f32.gmra.mxu0 %v3338
          %v3481 = vpop.f32.mrf.mxu0
          %v3482 = vadd.f32 %v3459, %v3481
          %3483 = vmatmul.f32.gmra.mxu0 %v3346
          %v3484 = vpop.f32.mrf.mxu0
          %v3485 = vadd.f32 %v3462, %v3484
          %3486 = vdwg.mxu0
          %3487 = vmatpush.msra.mxu0 %v3316
          %3488 = vmatpush.msra.mxu0 %v3315
          %3489 = vmatpush.msra.mxu0 %v3314
          %3490 = vmatpush.msra.mxu0 %v3313
          %3491 = vmatpush.msra.mxu0 %v3312
          %3492 = vmatpush.msra.mxu0 %v3311
          %3493 = vmatpush.msra.mxu0 %v3310
          %3494 = vmatpush.msra.mxu0 %v3309
          %3495 = vmatpush.msra.mxu0 %v3308
          %3496 = vmatpush.msra.mxu0 %v3307
          %3497 = vmatpush.msra.mxu0 %v3306
          %3498 = vmatpush.msra.mxu0 %v3305
          %3499 = vmatpush.msra.mxu0 %v3304
          %3500 = vmatpush.msra.mxu0 %v3303
          %3501 = vmatpush.msra.mxu0 %v3302
          %3502 = vmatpush.msra.mxu0 %v3301
          %3503 = vmatmul.f32.gmra.mxu0 %v3339
          %v3504 = vpop.f32.mrf.mxu0
          %v3505 = vadd.f32 %v3482, %v3504
          %3506 = vmatmul.f32.gmra.mxu0 %v3347
          %v3507 = vpop.f32.mrf.mxu0
          %v3508 = vadd.f32 %v3485, %v3507
          %3509 = vdwg.mxu0
          %3510 = vmatpush.msra.mxu0 %v3332
          %3511 = vmatpush.msra.mxu0 %v3331
          %3512 = vmatpush.msra.mxu0 %v3330
          %3513 = vmatpush.msra.mxu0 %v3329
          %3514 = vmatpush.msra.mxu0 %v3328
          %3515 = vmatpush.msra.mxu0 %v3327
          %3516 = vmatpush.msra.mxu0 %v3326
          %3517 = vmatpush.msra.mxu0 %v3325
          %3518 = vmatpush.msra.mxu0 %v3324
          %3519 = vmatpush.msra.mxu0 %v3323
          %3520 = vmatpush.msra.mxu0 %v3322
          %3521 = vmatpush.msra.mxu0 %v3321
          %3522 = vmatpush.msra.mxu0 %v3320
          %3523 = vmatpush.msra.mxu0 %v3319
          %3524 = vmatpush.msra.mxu0 %v3318
          %3525 = vmatpush.msra.mxu0 %v3317
          %3526 = vmatmul.f32.gmra.mxu0 %v3340
          %v3527 = vpop.f32.mrf.mxu0
          %v3528 = vadd.f32 %v3505, %v3527
          %3529 = vmatmul.f32.gmra.mxu0 %v3348
          %v3530 = vpop.f32.mrf.mxu0
          %v3531 = vadd.f32 %v3508, %v3530
          %3532 = vdwg.mxu0
          %v3533 = vld [vmem:[%s8] sm:$0xff]
          %v3534 = vld [vmem:[%s8 + $0x8] sm:$0xff]
          %3536 = vset.pattern.permute.xlu0 0
          %3537 = vperm.xlu0 %3536, %v3533
          %v3538 = vpop.permute.xlu0 %3537
          %3541 = vset.pattern.permute.xlu0 0
          %3542 = vperm.xlu0 %3541, %v3534
          %v3543 = vpop.permute.xlu0 %3542
          %v3545 = vmul.f32 %v3528, %v3538
          %v3546 = vmul.f32 %v3531, %v3543
          %v3547 = vld [vmem:[%s7] sm:$0xff]
          %v3548 = vld [vmem:[%s7 + $0x8] sm:$0xff]
          %v3549 = vld [vmem:[%s7 + $0x10] sm:$0xff]
          %v3550 = vld [vmem:[%s7 + $0x18] sm:$0xff]
          %v3551 = vld [vmem:[%s7 + $0x20] sm:$0xff]
          %v3552 = vld [vmem:[%s7 + $0x28] sm:$0xff]
          %v3553 = vld [vmem:[%s7 + $0x30] sm:$0xff]
          %v3554 = vld [vmem:[%s7 + $0x38] sm:$0xff]
          %v3555 = vld [vmem:[%s7 + $0x40] sm:$0xff]
          %v3556 = vld [vmem:[%s7 + $0x48] sm:$0xff]
          %v3557 = vld [vmem:[%s7 + $0x50] sm:$0xff]
          %v3558 = vld [vmem:[%s7 + $0x58] sm:$0xff]
          %v3559 = vld [vmem:[%s7 + $0x60] sm:$0xff]
          %v3560 = vld [vmem:[%s7 + $0x68] sm:$0xff]
          %v3561 = vld [vmem:[%s7 + $0x70] sm:$0xff]
          %v3562 = vld [vmem:[%s7 + $0x78] sm:$0xff]
          %v3563 = vld [vmem:[%s7 + $0x80] sm:$0xff]
          %v3564 = vld [vmem:[%s7 + $0x88] sm:$0xff]
          %v3565 = vld [vmem:[%s7 + $0x90] sm:$0xff]
          %v3566 = vld [vmem:[%s7 + $0x98] sm:$0xff]
          %v3567 = vld [vmem:[%s7 + $0xa0] sm:$0xff]
          %v3568 = vld [vmem:[%s7 + $0xa8] sm:$0xff]
          %v3569 = vld [vmem:[%s7 + $0xb0] sm:$0xff]
          %v3570 = vld [vmem:[%s7 + $0xb8] sm:$0xff]
          %v3571 = vld [vmem:[%s7 + $0xc0] sm:$0xff]
          %v3572 = vld [vmem:[%s7 + $0xc8] sm:$0xff]
          %v3573 = vld [vmem:[%s7 + $0xd0] sm:$0xff]
          %v3574 = vld [vmem:[%s7 + $0xd8] sm:$0xff]
          %v3575 = vld [vmem:[%s7 + $0xe0] sm:$0xff]
          %v3576 = vld [vmem:[%s7 + $0xe8] sm:$0xff]
          %v3577 = vld [vmem:[%s7 + $0xf0] sm:$0xff]
          %v3578 = vld [vmem:[%s7 + $0xf8] sm:$0xff]
          %v3579 = vld [vmem:[%s7 + $0x100] sm:$0xff]
          %v3580 = vld [vmem:[%s7 + $0x108] sm:$0xff]
          %v3581 = vld [vmem:[%s7 + $0x110] sm:$0xff]
          %v3582 = vld [vmem:[%s7 + $0x118] sm:$0xff]
          %v3583 = vld [vmem:[%s7 + $0x120] sm:$0xff]
          %v3584 = vld [vmem:[%s7 + $0x128] sm:$0xff]
          %v3585 = vld [vmem:[%s7 + $0x130] sm:$0xff]
          %v3586 = vld [vmem:[%s7 + $0x138] sm:$0xff]
          %v3587 = vld [vmem:[%s7 + $0x140] sm:$0xff]
          %v3588 = vld [vmem:[%s7 + $0x148] sm:$0xff]
          %v3589 = vld [vmem:[%s7 + $0x150] sm:$0xff]
          %v3590 = vld [vmem:[%s7 + $0x158] sm:$0xff]
          %v3591 = vld [vmem:[%s7 + $0x160] sm:$0xff]
          %v3592 = vld [vmem:[%s7 + $0x168] sm:$0xff]
          %v3593 = vld [vmem:[%s7 + $0x170] sm:$0xff]
          %v3594 = vld [vmem:[%s7 + $0x178] sm:$0xff]
          %v3595 = vld [vmem:[%s7 + $0x180] sm:$0xff]
          %v3596 = vld [vmem:[%s7 + $0x188] sm:$0xff]
          %v3597 = vld [vmem:[%s7 + $0x190] sm:$0xff]
          %v3598 = vld [vmem:[%s7 + $0x198] sm:$0xff]
          %v3599 = vld [vmem:[%s7 + $0x1a0] sm:$0xff]
          %v3600 = vld [vmem:[%s7 + $0x1a8] sm:$0xff]
          %v3601 = vld [vmem:[%s7 + $0x1b0] sm:$0xff]
          %v3602 = vld [vmem:[%s7 + $0x1b8] sm:$0xff]
          %v3603 = vld [vmem:[%s7 + $0x1c0] sm:$0xff]
          %v3604 = vld [vmem:[%s7 + $0x1c8] sm:$0xff]
          %v3605 = vld [vmem:[%s7 + $0x1d0] sm:$0xff]
          %v3606 = vld [vmem:[%s7 + $0x1d8] sm:$0xff]
          %v3607 = vld [vmem:[%s7 + $0x1e0] sm:$0xff]
          %v3608 = vld [vmem:[%s7 + $0x1e8] sm:$0xff]
          %v3609 = vld [vmem:[%s7 + $0x1f0] sm:$0xff]
          %v3610 = vld [vmem:[%s7 + $0x1f8] sm:$0xff]
          %v3611 = vld [vmem:[%s7 + $0x200] sm:$0xff]
          %v3612 = vld [vmem:[%s7 + $0x208] sm:$0xff]
          %v3613 = vld [vmem:[%s7 + $0x210] sm:$0xff]
          %v3614 = vld [vmem:[%s7 + $0x218] sm:$0xff]
          %v3615 = vld [vmem:[%s7 + $0x220] sm:$0xff]
          %v3616 = vld [vmem:[%s7 + $0x228] sm:$0xff]
          %v3617 = vld [vmem:[%s7 + $0x230] sm:$0xff]
          %v3618 = vld [vmem:[%s7 + $0x238] sm:$0xff]
          %v3619 = vld [vmem:[%s7 + $0x240] sm:$0xff]
          %v3620 = vld [vmem:[%s7 + $0x248] sm:$0xff]
          %v3621 = vld [vmem:[%s7 + $0x250] sm:$0xff]
          %v3622 = vld [vmem:[%s7 + $0x258] sm:$0xff]
          %v3623 = vld [vmem:[%s7 + $0x260] sm:$0xff]
          %v3624 = vld [vmem:[%s7 + $0x268] sm:$0xff]
          %v3625 = vld [vmem:[%s7 + $0x270] sm:$0xff]
          %v3626 = vld [vmem:[%s7 + $0x278] sm:$0xff]
          %v3627 = vld [vmem:[%s7 + $0x280] sm:$0xff]
          %v3628 = vld [vmem:[%s7 + $0x288] sm:$0xff]
          %v3629 = vld [vmem:[%s7 + $0x290] sm:$0xff]
          %v3630 = vld [vmem:[%s7 + $0x298] sm:$0xff]
          %v3631 = vld [vmem:[%s7 + $0x2a0] sm:$0xff]
          %v3632 = vld [vmem:[%s7 + $0x2a8] sm:$0xff]
          %v3633 = vld [vmem:[%s7 + $0x2b0] sm:$0xff]
          %v3634 = vld [vmem:[%s7 + $0x2b8] sm:$0xff]
          %v3635 = vld [vmem:[%s7 + $0x2c0] sm:$0xff]
          %v3636 = vld [vmem:[%s7 + $0x2c8] sm:$0xff]
          %v3637 = vld [vmem:[%s7 + $0x2d0] sm:$0xff]
          %v3638 = vld [vmem:[%s7 + $0x2d8] sm:$0xff]
          %v3639 = vld [vmem:[%s7 + $0x2e0] sm:$0xff]
          %v3640 = vld [vmem:[%s7 + $0x2e8] sm:$0xff]
          %v3641 = vld [vmem:[%s7 + $0x2f0] sm:$0xff]
          %v3642 = vld [vmem:[%s7 + $0x2f8] sm:$0xff]
          %v3643 = vld [vmem:[%s7 + $0x300] sm:$0xff]
          %v3644 = vld [vmem:[%s7 + $0x308] sm:$0xff]
          %v3645 = vld [vmem:[%s7 + $0x310] sm:$0xff]
          %v3646 = vld [vmem:[%s7 + $0x318] sm:$0xff]
          %v3647 = vld [vmem:[%s7 + $0x320] sm:$0xff]
          %v3648 = vld [vmem:[%s7 + $0x328] sm:$0xff]
          %v3649 = vld [vmem:[%s7 + $0x330] sm:$0xff]
          %v3650 = vld [vmem:[%s7 + $0x338] sm:$0xff]
          %v3651 = vld [vmem:[%s7 + $0x340] sm:$0xff]
          %v3652 = vld [vmem:[%s7 + $0x348] sm:$0xff]
          %v3653 = vld [vmem:[%s7 + $0x350] sm:$0xff]
          %v3654 = vld [vmem:[%s7 + $0x358] sm:$0xff]
          %v3655 = vld [vmem:[%s7 + $0x360] sm:$0xff]
          %v3656 = vld [vmem:[%s7 + $0x368] sm:$0xff]
          %v3657 = vld [vmem:[%s7 + $0x370] sm:$0xff]
          %v3658 = vld [vmem:[%s7 + $0x378] sm:$0xff]
          %v3659 = vld [vmem:[%s7 + $0x380] sm:$0xff]
          %v3660 = vld [vmem:[%s7 + $0x388] sm:$0xff]
          %v3661 = vld [vmem:[%s7 + $0x390] sm:$0xff]
          %v3662 = vld [vmem:[%s7 + $0x398] sm:$0xff]
          %v3663 = vld [vmem:[%s7 + $0x3a0] sm:$0xff]
          %v3664 = vld [vmem:[%s7 + $0x3a8] sm:$0xff]
          %v3665 = vld [vmem:[%s7 + $0x3b0] sm:$0xff]
          %v3666 = vld [vmem:[%s7 + $0x3b8] sm:$0xff]
          %v3667 = vld [vmem:[%s7 + $0x3c0] sm:$0xff]
          %v3668 = vld [vmem:[%s7 + $0x3c8] sm:$0xff]
          %v3669 = vld [vmem:[%s7 + $0x3d0] sm:$0xff]
          %v3670 = vld [vmem:[%s7 + $0x3d8] sm:$0xff]
          %v3671 = vld [vmem:[%s7 + $0x3e0] sm:$0xff]
          %v3672 = vld [vmem:[%s7 + $0x3e8] sm:$0xff]
          %v3673 = vld [vmem:[%s7 + $0x3f0] sm:$0xff]
          %v3674 = vld [vmem:[%s7 + $0x3f8] sm:$0xff]
          loop: start=0, step=1, limit=16
          $region120: #{gcn_learn_forward.1} parent=118 // loop_pre_header
            _
          $region121: #{gcn_learn_forward.1} parent=118 // loop_header
            %s3676 = sphi 0, %s3680
            %p3677 = scmp.ge.s32.totalorder %s3676, 16
          $region122: #{gcn_learn_forward.1} parent=118 // loop_header_branch
            %3679 = sbr.rel (%p3677) target = $region126
          $region123: #{gcn_learn_forward.1} parent=118 // loop_body
            %v3681 = vstv %s3676
            %vm3682 = vcmp.eq.s32.totalorder %v3547, %v3681
            %vm3683 = vcmp.eq.s32.totalorder %v3548, %v3681
            %vm3684 = vcmp.eq.s32.totalorder %v3549, %v3681
            %vm3685 = vcmp.eq.s32.totalorder %v3550, %v3681
            %vm3686 = vcmp.eq.s32.totalorder %v3551, %v3681
            %vm3687 = vcmp.eq.s32.totalorder %v3552, %v3681
            %vm3688 = vcmp.eq.s32.totalorder %v3553, %v3681
            %vm3689 = vcmp.eq.s32.totalorder %v3554, %v3681
            %vm3690 = vcmp.eq.s32.totalorder %v3555, %v3681
            %vm3691 = vcmp.eq.s32.totalorder %v3556, %v3681
            %vm3692 = vcmp.eq.s32.totalorder %v3557, %v3681
            %vm3693 = vcmp.eq.s32.totalorder %v3558, %v3681
            %vm3694 = vcmp.eq.s32.totalorder %v3559, %v3681
            %vm3695 = vcmp.eq.s32.totalorder %v3560, %v3681
            %vm3696 = vcmp.eq.s32.totalorder %v3561, %v3681
            %vm3697 = vcmp.eq.s32.totalorder %v3562, %v3681
            %vm3698 = vcmp.eq.s32.totalorder %v3563, %v3681
            %vm3699 = vcmp.eq.s32.totalorder %v3564, %v3681
            %vm3700 = vcmp.eq.s32.totalorder %v3565, %v3681
            %vm3701 = vcmp.eq.s32.totalorder %v3566, %v3681
            %vm3702 = vcmp.eq.s32.totalorder %v3567, %v3681
            %vm3703 = vcmp.eq.s32.totalorder %v3568, %v3681
            %vm3704 = vcmp.eq.s32.totalorder %v3569, %v3681
            %vm3705 = vcmp.eq.s32.totalorder %v3570, %v3681
            %vm3706 = vcmp.eq.s32.totalorder %v3571, %v3681
            %vm3707 = vcmp.eq.s32.totalorder %v3572, %v3681
            %vm3708 = vcmp.eq.s32.totalorder %v3573, %v3681
            %vm3709 = vcmp.eq.s32.totalorder %v3574, %v3681
            %vm3710 = vcmp.eq.s32.totalorder %v3575, %v3681
            %vm3711 = vcmp.eq.s32.totalorder %v3576, %v3681
            %vm3712 = vcmp.eq.s32.totalorder %v3577, %v3681
            %vm3713 = vcmp.eq.s32.totalorder %v3578, %v3681
            %vm3714 = vcmp.eq.s32.totalorder %v3579, %v3681
            %vm3715 = vcmp.eq.s32.totalorder %v3580, %v3681
            %vm3716 = vcmp.eq.s32.totalorder %v3581, %v3681
            %vm3717 = vcmp.eq.s32.totalorder %v3582, %v3681
            %vm3718 = vcmp.eq.s32.totalorder %v3583, %v3681
            %vm3719 = vcmp.eq.s32.totalorder %v3584, %v3681
            %vm3720 = vcmp.eq.s32.totalorder %v3585, %v3681
            %vm3721 = vcmp.eq.s32.totalorder %v3586, %v3681
            %vm3722 = vcmp.eq.s32.totalorder %v3587, %v3681
            %vm3723 = vcmp.eq.s32.totalorder %v3588, %v3681
            %vm3724 = vcmp.eq.s32.totalorder %v3589, %v3681
            %vm3725 = vcmp.eq.s32.totalorder %v3590, %v3681
            %vm3726 = vcmp.eq.s32.totalorder %v3591, %v3681
            %vm3727 = vcmp.eq.s32.totalorder %v3592, %v3681
            %vm3728 = vcmp.eq.s32.totalorder %v3593, %v3681
            %vm3729 = vcmp.eq.s32.totalorder %v3594, %v3681
            %vm3730 = vcmp.eq.s32.totalorder %v3595, %v3681
            %vm3731 = vcmp.eq.s32.totalorder %v3596, %v3681
            %vm3732 = vcmp.eq.s32.totalorder %v3597, %v3681
            %vm3733 = vcmp.eq.s32.totalorder %v3598, %v3681
            %vm3734 = vcmp.eq.s32.totalorder %v3599, %v3681
            %vm3735 = vcmp.eq.s32.totalorder %v3600, %v3681
            %vm3736 = vcmp.eq.s32.totalorder %v3601, %v3681
            %vm3737 = vcmp.eq.s32.totalorder %v3602, %v3681
            %vm3738 = vcmp.eq.s32.totalorder %v3603, %v3681
            %vm3739 = vcmp.eq.s32.totalorder %v3604, %v3681
            %vm3740 = vcmp.eq.s32.totalorder %v3605, %v3681
            %vm3741 = vcmp.eq.s32.totalorder %v3606, %v3681
            %vm3742 = vcmp.eq.s32.totalorder %v3607, %v3681
            %vm3743 = vcmp.eq.s32.totalorder %v3608, %v3681
            %vm3744 = vcmp.eq.s32.totalorder %v3609, %v3681
            %vm3745 = vcmp.eq.s32.totalorder %v3610, %v3681
            %vm3746 = vcmp.eq.s32.totalorder %v3611, %v3681
            %vm3747 = vcmp.eq.s32.totalorder %v3612, %v3681
            %vm3748 = vcmp.eq.s32.totalorder %v3613, %v3681
            %vm3749 = vcmp.eq.s32.totalorder %v3614, %v3681
            %vm3750 = vcmp.eq.s32.totalorder %v3615, %v3681
            %vm3751 = vcmp.eq.s32.totalorder %v3616, %v3681
            %vm3752 = vcmp.eq.s32.totalorder %v3617, %v3681
            %vm3753 = vcmp.eq.s32.totalorder %v3618, %v3681
            %vm3754 = vcmp.eq.s32.totalorder %v3619, %v3681
            %vm3755 = vcmp.eq.s32.totalorder %v3620, %v3681
            %vm3756 = vcmp.eq.s32.totalorder %v3621, %v3681
            %vm3757 = vcmp.eq.s32.totalorder %v3622, %v3681
            %vm3758 = vcmp.eq.s32.totalorder %v3623, %v3681
            %vm3759 = vcmp.eq.s32.totalorder %v3624, %v3681
            %vm3760 = vcmp.eq.s32.totalorder %v3625, %v3681
            %vm3761 = vcmp.eq.s32.totalorder %v3626, %v3681
            %vm3762 = vcmp.eq.s32.totalorder %v3627, %v3681
            %vm3763 = vcmp.eq.s32.totalorder %v3628, %v3681
            %vm3764 = vcmp.eq.s32.totalorder %v3629, %v3681
            %vm3765 = vcmp.eq.s32.totalorder %v3630, %v3681
            %vm3766 = vcmp.eq.s32.totalorder %v3631, %v3681
            %vm3767 = vcmp.eq.s32.totalorder %v3632, %v3681
            %vm3768 = vcmp.eq.s32.totalorder %v3633, %v3681
            %vm3769 = vcmp.eq.s32.totalorder %v3634, %v3681
            %vm3770 = vcmp.eq.s32.totalorder %v3635, %v3681
            %vm3771 = vcmp.eq.s32.totalorder %v3636, %v3681
            %vm3772 = vcmp.eq.s32.totalorder %v3637, %v3681
            %vm3773 = vcmp.eq.s32.totalorder %v3638, %v3681
            %vm3774 = vcmp.eq.s32.totalorder %v3639, %v3681
            %vm3775 = vcmp.eq.s32.totalorder %v3640, %v3681
            %vm3776 = vcmp.eq.s32.totalorder %v3641, %v3681
            %vm3777 = vcmp.eq.s32.totalorder %v3642, %v3681
            %vm3778 = vcmp.eq.s32.totalorder %v3643, %v3681
            %vm3779 = vcmp.eq.s32.totalorder %v3644, %v3681
            %vm3780 = vcmp.eq.s32.totalorder %v3645, %v3681
            %vm3781 = vcmp.eq.s32.totalorder %v3646, %v3681
            %vm3782 = vcmp.eq.s32.totalorder %v3647, %v3681
            %vm3783 = vcmp.eq.s32.totalorder %v3648, %v3681
            %vm3784 = vcmp.eq.s32.totalorder %v3649, %v3681
            %vm3785 = vcmp.eq.s32.totalorder %v3650, %v3681
            %vm3786 = vcmp.eq.s32.totalorder %v3651, %v3681
            %vm3787 = vcmp.eq.s32.totalorder %v3652, %v3681
            %vm3788 = vcmp.eq.s32.totalorder %v3653, %v3681
            %vm3789 = vcmp.eq.s32.totalorder %v3654, %v3681
            %vm3790 = vcmp.eq.s32.totalorder %v3655, %v3681
            %vm3791 = vcmp.eq.s32.totalorder %v3656, %v3681
            %vm3792 = vcmp.eq.s32.totalorder %v3657, %v3681
            %vm3793 = vcmp.eq.s32.totalorder %v3658, %v3681
            %vm3794 = vcmp.eq.s32.totalorder %v3659, %v3681
            %vm3795 = vcmp.eq.s32.totalorder %v3660, %v3681
            %vm3796 = vcmp.eq.s32.totalorder %v3661, %v3681
            %vm3797 = vcmp.eq.s32.totalorder %v3662, %v3681
            %vm3798 = vcmp.eq.s32.totalorder %v3663, %v3681
            %vm3799 = vcmp.eq.s32.totalorder %v3664, %v3681
            %vm3800 = vcmp.eq.s32.totalorder %v3665, %v3681
            %vm3801 = vcmp.eq.s32.totalorder %v3666, %v3681
            %vm3802 = vcmp.eq.s32.totalorder %v3667, %v3681
            %vm3803 = vcmp.eq.s32.totalorder %v3668, %v3681
            %vm3804 = vcmp.eq.s32.totalorder %v3669, %v3681
            %vm3805 = vcmp.eq.s32.totalorder %v3670, %v3681
            %vm3806 = vcmp.eq.s32.totalorder %v3671, %v3681
            %vm3807 = vcmp.eq.s32.totalorder %v3672, %v3681
            %vm3808 = vcmp.eq.s32.totalorder %v3673, %v3681
            %vm3809 = vcmp.eq.s32.totalorder %v3674, %v3681
            %v3810 = vsel %vm3682, 1, 0
            %v3811 = vsel %vm3683, 1, 0
            %v3812 = vsel %vm3684, 1, 0
            %v3813 = vsel %vm3685, 1, 0
            %v3814 = vsel %vm3686, 1, 0
            %v3815 = vsel %vm3687, 1, 0
            %v3816 = vsel %vm3688, 1, 0
            %v3817 = vsel %vm3689, 1, 0
            %v3818 = vsel %vm3690, 1, 0
            %v3819 = vsel %vm3691, 1, 0
            %v3820 = vsel %vm3692, 1, 0
            %v3821 = vsel %vm3693, 1, 0
            %v3822 = vsel %vm3694, 1, 0
            %v3823 = vsel %vm3695, 1, 0
            %v3824 = vsel %vm3696, 1, 0
            %v3825 = vsel %vm3697, 1, 0
            %v3826 = vsel %vm3698, 1, 0
            %v3827 = vsel %vm3699, 1, 0
            %v3828 = vsel %vm3700, 1, 0
            %v3829 = vsel %vm3701, 1, 0
            %v3830 = vsel %vm3702, 1, 0
            %v3831 = vsel %vm3703, 1, 0
            %v3832 = vsel %vm3704, 1, 0
            %v3833 = vsel %vm3705, 1, 0
            %v3834 = vsel %vm3706, 1, 0
            %v3835 = vsel %vm3707, 1, 0
            %v3836 = vsel %vm3708, 1, 0
            %v3837 = vsel %vm3709, 1, 0
            %v3838 = vsel %vm3710, 1, 0
            %v3839 = vsel %vm3711, 1, 0
            %v3840 = vsel %vm3712, 1, 0
            %v3841 = vsel %vm3713, 1, 0
            %v3842 = vsel %vm3714, 1, 0
            %v3843 = vsel %vm3715, 1, 0
            %v3844 = vsel %vm3716, 1, 0
            %v3845 = vsel %vm3717, 1, 0
            %v3846 = vsel %vm3718, 1, 0
            %v3847 = vsel %vm3719, 1, 0
            %v3848 = vsel %vm3720, 1, 0
            %v3849 = vsel %vm3721, 1, 0
            %v3850 = vsel %vm3722, 1, 0
            %v3851 = vsel %vm3723, 1, 0
            %v3852 = vsel %vm3724, 1, 0
            %v3853 = vsel %vm3725, 1, 0
            %v3854 = vsel %vm3726, 1, 0
            %v3855 = vsel %vm3727, 1, 0
            %v3856 = vsel %vm3728, 1, 0
            %v3857 = vsel %vm3729, 1, 0
            %v3858 = vsel %vm3730, 1, 0
            %v3859 = vsel %vm3731, 1, 0
            %v3860 = vsel %vm3732, 1, 0
            %v3861 = vsel %vm3733, 1, 0
            %v3862 = vsel %vm3734, 1, 0
            %v3863 = vsel %vm3735, 1, 0
            %v3864 = vsel %vm3736, 1, 0
            %v3865 = vsel %vm3737, 1, 0
            %v3866 = vsel %vm3738, 1, 0
            %v3867 = vsel %vm3739, 1, 0
            %v3868 = vsel %vm3740, 1, 0
            %v3869 = vsel %vm3741, 1, 0
            %v3870 = vsel %vm3742, 1, 0
            %v3871 = vsel %vm3743, 1, 0
            %v3872 = vsel %vm3744, 1, 0
            %v3873 = vsel %vm3745, 1, 0
            %v3874 = vsel %vm3746, 1, 0
            %v3875 = vsel %vm3747, 1, 0
            %v3876 = vsel %vm3748, 1, 0
            %v3877 = vsel %vm3749, 1, 0
            %v3878 = vsel %vm3750, 1, 0
            %v3879 = vsel %vm3751, 1, 0
            %v3880 = vsel %vm3752, 1, 0
            %v3881 = vsel %vm3753, 1, 0
            %v3882 = vsel %vm3754, 1, 0
            %v3883 = vsel %vm3755, 1, 0
            %v3884 = vsel %vm3756, 1, 0
            %v3885 = vsel %vm3757, 1, 0
            %v3886 = vsel %vm3758, 1, 0
            %v3887 = vsel %vm3759, 1, 0
            %v3888 = vsel %vm3760, 1, 0
            %v3889 = vsel %vm3761, 1, 0
            %v3890 = vsel %vm3762, 1, 0
            %v3891 = vsel %vm3763, 1, 0
            %v3892 = vsel %vm3764, 1, 0
            %v3893 = vsel %vm3765, 1, 0
            %v3894 = vsel %vm3766, 1, 0
            %v3895 = vsel %vm3767, 1, 0
            %v3896 = vsel %vm3768, 1, 0
            %v3897 = vsel %vm3769, 1, 0
            %v3898 = vsel %vm3770, 1, 0
            %v3899 = vsel %vm3771, 1, 0
            %v3900 = vsel %vm3772, 1, 0
            %v3901 = vsel %vm3773, 1, 0
            %v3902 = vsel %vm3774, 1, 0
            %v3903 = vsel %vm3775, 1, 0
            %v3904 = vsel %vm3776, 1, 0
            %v3905 = vsel %vm3777, 1, 0
            %v3906 = vsel %vm3778, 1, 0
            %v3907 = vsel %vm3779, 1, 0
            %v3908 = vsel %vm3780, 1, 0
            %v3909 = vsel %vm3781, 1, 0
            %v3910 = vsel %vm3782, 1, 0
            %v3911 = vsel %vm3783, 1, 0
            %v3912 = vsel %vm3784, 1, 0
            %v3913 = vsel %vm3785, 1, 0
            %v3914 = vsel %vm3786, 1, 0
            %v3915 = vsel %vm3787, 1, 0
            %v3916 = vsel %vm3788, 1, 0
            %v3917 = vsel %vm3789, 1, 0
            %v3918 = vsel %vm3790, 1, 0
            %v3919 = vsel %vm3791, 1, 0
            %v3920 = vsel %vm3792, 1, 0
            %v3921 = vsel %vm3793, 1, 0
            %v3922 = vsel %vm3794, 1, 0
            %v3923 = vsel %vm3795, 1, 0
            %v3924 = vsel %vm3796, 1, 0
            %v3925 = vsel %vm3797, 1, 0
            %v3926 = vsel %vm3798, 1, 0
            %v3927 = vsel %vm3799, 1, 0
            %v3928 = vsel %vm3800, 1, 0
            %v3929 = vsel %vm3801, 1, 0
            %v3930 = vsel %vm3802, 1, 0
            %v3931 = vsel %vm3803, 1, 0
            %v3932 = vsel %vm3804, 1, 0
            %v3933 = vsel %vm3805, 1, 0
            %v3934 = vsel %vm3806, 1, 0
            %v3935 = vsel %vm3807, 1, 0
            %v3936 = vsel %vm3808, 1, 0
            %v3937 = vsel %vm3809, 1, 0
            %3938 = vset.pattern.permute.xlu0 0
            %3939 = vperm.xlu0 %3938, %v3810
            %v3940 = vpop.permute.xlu0 %3939
            %3941 = vset.pattern.permute.xlu0 0
            %3942 = vperm.xlu0 %3941, %v3811
            %v3943 = vpop.permute.xlu0 %3942
            %3944 = vset.pattern.permute.xlu0 0
            %3945 = vperm.xlu0 %3944, %v3812
            %v3946 = vpop.permute.xlu0 %3945
            %3947 = vset.pattern.permute.xlu0 0
            %3948 = vperm.xlu0 %3947, %v3813
            %v3949 = vpop.permute.xlu0 %3948
            %3950 = vset.pattern.permute.xlu0 0
            %3951 = vperm.xlu0 %3950, %v3814
            %v3952 = vpop.permute.xlu0 %3951
            %3953 = vset.pattern.permute.xlu0 0
            %3954 = vperm.xlu0 %3953, %v3815
            %v3955 = vpop.permute.xlu0 %3954
            %3956 = vset.pattern.permute.xlu0 0
            %3957 = vperm.xlu0 %3956, %v3816
            %v3958 = vpop.permute.xlu0 %3957
            %3959 = vset.pattern.permute.xlu0 0
            %3960 = vperm.xlu0 %3959, %v3817
            %v3961 = vpop.permute.xlu0 %3960
            %3962 = vset.pattern.permute.xlu0 0
            %3963 = vperm.xlu0 %3962, %v3818
            %v3964 = vpop.permute.xlu0 %3963
            %3965 = vset.pattern.permute.xlu0 0
            %3966 = vperm.xlu0 %3965, %v3819
            %v3967 = vpop.permute.xlu0 %3966
            %3968 = vset.pattern.permute.xlu0 0
            %3969 = vperm.xlu0 %3968, %v3820
            %v3970 = vpop.permute.xlu0 %3969
            %3971 = vset.pattern.permute.xlu0 0
            %3972 = vperm.xlu0 %3971, %v3821
            %v3973 = vpop.permute.xlu0 %3972
            %3974 = vset.pattern.permute.xlu0 0
            %3975 = vperm.xlu0 %3974, %v3822
            %v3976 = vpop.permute.xlu0 %3975
            %3977 = vset.pattern.permute.xlu0 0
            %3978 = vperm.xlu0 %3977, %v3823
            %v3979 = vpop.permute.xlu0 %3978
            %3980 = vset.pattern.permute.xlu0 0
            %3981 = vperm.xlu0 %3980, %v3824
            %v3982 = vpop.permute.xlu0 %3981
            %3983 = vset.pattern.permute.xlu0 0
            %3984 = vperm.xlu0 %3983, %v3825
            %v3985 = vpop.permute.xlu0 %3984
            %3986 = vset.pattern.permute.xlu0 0
            %3987 = vperm.xlu0 %3986, %v3826
            %v3988 = vpop.permute.xlu0 %3987
            %3989 = vset.pattern.permute.xlu0 0
            %3990 = vperm.xlu0 %3989, %v3827
            %v3991 = vpop.permute.xlu0 %3990
            %3992 = vset.pattern.permute.xlu0 0
            %3993 = vperm.xlu0 %3992, %v3828
            %v3994 = vpop.permute.xlu0 %3993
            %3995 = vset.pattern.permute.xlu0 0
            %3996 = vperm.xlu0 %3995, %v3829
            %v3997 = vpop.permute.xlu0 %3996
            %3998 = vset.pattern.permute.xlu0 0
            %3999 = vperm.xlu0 %3998, %v3830
            %v4000 = vpop.permute.xlu0 %3999
            %4001 = vset.pattern.permute.xlu0 0
            %4002 = vperm.xlu0 %4001, %v3831
            %v4003 = vpop.permute.xlu0 %4002
            %4004 = vset.pattern.permute.xlu0 0
            %4005 = vperm.xlu0 %4004, %v3832
            %v4006 = vpop.permute.xlu0 %4005
            %4007 = vset.pattern.permute.xlu0 0
            %4008 = vperm.xlu0 %4007, %v3833
            %v4009 = vpop.permute.xlu0 %4008
            %4010 = vset.pattern.permute.xlu0 0
            %4011 = vperm.xlu0 %4010, %v3834
            %v4012 = vpop.permute.xlu0 %4011
            %4013 = vset.pattern.permute.xlu0 0
            %4014 = vperm.xlu0 %4013, %v3835
            %v4015 = vpop.permute.xlu0 %4014
            %4016 = vset.pattern.permute.xlu0 0
            %4017 = vperm.xlu0 %4016, %v3836
            %v4018 = vpop.permute.xlu0 %4017
            %4019 = vset.pattern.permute.xlu0 0
            %4020 = vperm.xlu0 %4019, %v3837
            %v4021 = vpop.permute.xlu0 %4020
            %4022 = vset.pattern.permute.xlu0 0
            %4023 = vperm.xlu0 %4022, %v3838
            %v4024 = vpop.permute.xlu0 %4023
            %4025 = vset.pattern.permute.xlu0 0
            %4026 = vperm.xlu0 %4025, %v3839
            %v4027 = vpop.permute.xlu0 %4026
            %4028 = vset.pattern.permute.xlu0 0
            %4029 = vperm.xlu0 %4028, %v3840
            %v4030 = vpop.permute.xlu0 %4029
            %4031 = vset.pattern.permute.xlu0 0
            %4032 = vperm.xlu0 %4031, %v3841
            %v4033 = vpop.permute.xlu0 %4032
            %4034 = vset.pattern.permute.xlu0 0
            %4035 = vperm.xlu0 %4034, %v3842
            %v4036 = vpop.permute.xlu0 %4035
            %4037 = vset.pattern.permute.xlu0 0
            %4038 = vperm.xlu0 %4037, %v3843
            %v4039 = vpop.permute.xlu0 %4038
            %4040 = vset.pattern.permute.xlu0 0
            %4041 = vperm.xlu0 %4040, %v3844
            %v4042 = vpop.permute.xlu0 %4041
            %4043 = vset.pattern.permute.xlu0 0
            %4044 = vperm.xlu0 %4043, %v3845
            %v4045 = vpop.permute.xlu0 %4044
            %4046 = vset.pattern.permute.xlu0 0
            %4047 = vperm.xlu0 %4046, %v3846
            %v4048 = vpop.permute.xlu0 %4047
            %4049 = vset.pattern.permute.xlu0 0
            %4050 = vperm.xlu0 %4049, %v3847
            %v4051 = vpop.permute.xlu0 %4050
            %4052 = vset.pattern.permute.xlu0 0
            %4053 = vperm.xlu0 %4052, %v3848
            %v4054 = vpop.permute.xlu0 %4053
            %4055 = vset.pattern.permute.xlu0 0
            %4056 = vperm.xlu0 %4055, %v3849
            %v4057 = vpop.permute.xlu0 %4056
            %4058 = vset.pattern.permute.xlu0 0
            %4059 = vperm.xlu0 %4058, %v3850
            %v4060 = vpop.permute.xlu0 %4059
            %4061 = vset.pattern.permute.xlu0 0
            %4062 = vperm.xlu0 %4061, %v3851
            %v4063 = vpop.permute.xlu0 %4062
            %4064 = vset.pattern.permute.xlu0 0
            %4065 = vperm.xlu0 %4064, %v3852
            %v4066 = vpop.permute.xlu0 %4065
            %4067 = vset.pattern.permute.xlu0 0
            %4068 = vperm.xlu0 %4067, %v3853
            %v4069 = vpop.permute.xlu0 %4068
            %4070 = vset.pattern.permute.xlu0 0
            %4071 = vperm.xlu0 %4070, %v3854
            %v4072 = vpop.permute.xlu0 %4071
            %4073 = vset.pattern.permute.xlu0 0
            %4074 = vperm.xlu0 %4073, %v3855
            %v4075 = vpop.permute.xlu0 %4074
            %4076 = vset.pattern.permute.xlu0 0
            %4077 = vperm.xlu0 %4076, %v3856
            %v4078 = vpop.permute.xlu0 %4077
            %4079 = vset.pattern.permute.xlu0 0
            %4080 = vperm.xlu0 %4079, %v3857
            %v4081 = vpop.permute.xlu0 %4080
            %4082 = vset.pattern.permute.xlu0 0
            %4083 = vperm.xlu0 %4082, %v3858
            %v4084 = vpop.permute.xlu0 %4083
            %4085 = vset.pattern.permute.xlu0 0
            %4086 = vperm.xlu0 %4085, %v3859
            %v4087 = vpop.permute.xlu0 %4086
            %4088 = vset.pattern.permute.xlu0 0
            %4089 = vperm.xlu0 %4088, %v3860
            %v4090 = vpop.permute.xlu0 %4089
            %4091 = vset.pattern.permute.xlu0 0
            %4092 = vperm.xlu0 %4091, %v3861
            %v4093 = vpop.permute.xlu0 %4092
            %4094 = vset.pattern.permute.xlu0 0
            %4095 = vperm.xlu0 %4094, %v3862
            %v4096 = vpop.permute.xlu0 %4095
            %4097 = vset.pattern.permute.xlu0 0
            %4098 = vperm.xlu0 %4097, %v3863
            %v4099 = vpop.permute.xlu0 %4098
            %4100 = vset.pattern.permute.xlu0 0
            %4101 = vperm.xlu0 %4100, %v3864
            %v4102 = vpop.permute.xlu0 %4101
            %4103 = vset.pattern.permute.xlu0 0
            %4104 = vperm.xlu0 %4103, %v3865
            %v4105 = vpop.permute.xlu0 %4104
            %4106 = vset.pattern.permute.xlu0 0
            %4107 = vperm.xlu0 %4106, %v3866
            %v4108 = vpop.permute.xlu0 %4107
            %4109 = vset.pattern.permute.xlu0 0
            %4110 = vperm.xlu0 %4109, %v3867
            %v4111 = vpop.permute.xlu0 %4110
            %4112 = vset.pattern.permute.xlu0 0
            %4113 = vperm.xlu0 %4112, %v3868
            %v4114 = vpop.permute.xlu0 %4113
            %4115 = vset.pattern.permute.xlu0 0
            %4116 = vperm.xlu0 %4115, %v3869
            %v4117 = vpop.permute.xlu0 %4116
            %4118 = vset.pattern.permute.xlu0 0
            %4119 = vperm.xlu0 %4118, %v3870
            %v4120 = vpop.permute.xlu0 %4119
            %4121 = vset.pattern.permute.xlu0 0
            %4122 = vperm.xlu0 %4121, %v3871
            %v4123 = vpop.permute.xlu0 %4122
            %4124 = vset.pattern.permute.xlu0 0
            %4125 = vperm.xlu0 %4124, %v3872
            %v4126 = vpop.permute.xlu0 %4125
            %4127 = vset.pattern.permute.xlu0 0
            %4128 = vperm.xlu0 %4127, %v3873
            %v4129 = vpop.permute.xlu0 %4128
            %4130 = vset.pattern.permute.xlu0 0
            %4131 = vperm.xlu0 %4130, %v3874
            %v4132 = vpop.permute.xlu0 %4131
            %4133 = vset.pattern.permute.xlu0 0
            %4134 = vperm.xlu0 %4133, %v3875
            %v4135 = vpop.permute.xlu0 %4134
            %4136 = vset.pattern.permute.xlu0 0
            %4137 = vperm.xlu0 %4136, %v3876
            %v4138 = vpop.permute.xlu0 %4137
            %4139 = vset.pattern.permute.xlu0 0
            %4140 = vperm.xlu0 %4139, %v3877
            %v4141 = vpop.permute.xlu0 %4140
            %4142 = vset.pattern.permute.xlu0 0
            %4143 = vperm.xlu0 %4142, %v3878
            %v4144 = vpop.permute.xlu0 %4143
            %4145 = vset.pattern.permute.xlu0 0
            %4146 = vperm.xlu0 %4145, %v3879
            %v4147 = vpop.permute.xlu0 %4146
            %4148 = vset.pattern.permute.xlu0 0
            %4149 = vperm.xlu0 %4148, %v3880
            %v4150 = vpop.permute.xlu0 %4149
            %4151 = vset.pattern.permute.xlu0 0
            %4152 = vperm.xlu0 %4151, %v3881
            %v4153 = vpop.permute.xlu0 %4152
            %4154 = vset.pattern.permute.xlu0 0
            %4155 = vperm.xlu0 %4154, %v3882
            %v4156 = vpop.permute.xlu0 %4155
            %4157 = vset.pattern.permute.xlu0 0
            %4158 = vperm.xlu0 %4157, %v3883
            %v4159 = vpop.permute.xlu0 %4158
            %4160 = vset.pattern.permute.xlu0 0
            %4161 = vperm.xlu0 %4160, %v3884
            %v4162 = vpop.permute.xlu0 %4161
            %4163 = vset.pattern.permute.xlu0 0
            %4164 = vperm.xlu0 %4163, %v3885
            %v4165 = vpop.permute.xlu0 %4164
            %4166 = vset.pattern.permute.xlu0 0
            %4167 = vperm.xlu0 %4166, %v3886
            %v4168 = vpop.permute.xlu0 %4167
            %4169 = vset.pattern.permute.xlu0 0
            %4170 = vperm.xlu0 %4169, %v3887
            %v4171 = vpop.permute.xlu0 %4170
            %4172 = vset.pattern.permute.xlu0 0
            %4173 = vperm.xlu0 %4172, %v3888
            %v4174 = vpop.permute.xlu0 %4173
            %4175 = vset.pattern.permute.xlu0 0
            %4176 = vperm.xlu0 %4175, %v3889
            %v4177 = vpop.permute.xlu0 %4176
            %4178 = vset.pattern.permute.xlu0 0
            %4179 = vperm.xlu0 %4178, %v3890
            %v4180 = vpop.permute.xlu0 %4179
            %4181 = vset.pattern.permute.xlu0 0
            %4182 = vperm.xlu0 %4181, %v3891
            %v4183 = vpop.permute.xlu0 %4182
            %4184 = vset.pattern.permute.xlu0 0
            %4185 = vperm.xlu0 %4184, %v3892
            %v4186 = vpop.permute.xlu0 %4185
            %4187 = vset.pattern.permute.xlu0 0
            %4188 = vperm.xlu0 %4187, %v3893
            %v4189 = vpop.permute.xlu0 %4188
            %4190 = vset.pattern.permute.xlu0 0
            %4191 = vperm.xlu0 %4190, %v3894
            %v4192 = vpop.permute.xlu0 %4191
            %4193 = vset.pattern.permute.xlu0 0
            %4194 = vperm.xlu0 %4193, %v3895
            %v4195 = vpop.permute.xlu0 %4194
            %4196 = vset.pattern.permute.xlu0 0
            %4197 = vperm.xlu0 %4196, %v3896
            %v4198 = vpop.permute.xlu0 %4197
            %4199 = vset.pattern.permute.xlu0 0
            %4200 = vperm.xlu0 %4199, %v3897
            %v4201 = vpop.permute.xlu0 %4200
            %4202 = vset.pattern.permute.xlu0 0
            %4203 = vperm.xlu0 %4202, %v3898
            %v4204 = vpop.permute.xlu0 %4203
            %4205 = vset.pattern.permute.xlu0 0
            %4206 = vperm.xlu0 %4205, %v3899
            %v4207 = vpop.permute.xlu0 %4206
            %4208 = vset.pattern.permute.xlu0 0
            %4209 = vperm.xlu0 %4208, %v3900
            %v4210 = vpop.permute.xlu0 %4209
            %4211 = vset.pattern.permute.xlu0 0
            %4212 = vperm.xlu0 %4211, %v3901
            %v4213 = vpop.permute.xlu0 %4212
            %4214 = vset.pattern.permute.xlu0 0
            %4215 = vperm.xlu0 %4214, %v3902
            %v4216 = vpop.permute.xlu0 %4215
            %4217 = vset.pattern.permute.xlu0 0
            %4218 = vperm.xlu0 %4217, %v3903
            %v4219 = vpop.permute.xlu0 %4218
            %4220 = vset.pattern.permute.xlu0 0
            %4221 = vperm.xlu0 %4220, %v3904
            %v4222 = vpop.permute.xlu0 %4221
            %4223 = vset.pattern.permute.xlu0 0
            %4224 = vperm.xlu0 %4223, %v3905
            %v4225 = vpop.permute.xlu0 %4224
            %4226 = vset.pattern.permute.xlu0 0
            %4227 = vperm.xlu0 %4226, %v3906
            %v4228 = vpop.permute.xlu0 %4227
            %4229 = vset.pattern.permute.xlu0 0
            %4230 = vperm.xlu0 %4229, %v3907
            %v4231 = vpop.permute.xlu0 %4230
            %4232 = vset.pattern.permute.xlu0 0
            %4233 = vperm.xlu0 %4232, %v3908
            %v4234 = vpop.permute.xlu0 %4233
            %4235 = vset.pattern.permute.xlu0 0
            %4236 = vperm.xlu0 %4235, %v3909
            %v4237 = vpop.permute.xlu0 %4236
            %4238 = vset.pattern.permute.xlu0 0
            %4239 = vperm.xlu0 %4238, %v3910
            %v4240 = vpop.permute.xlu0 %4239
            %4241 = vset.pattern.permute.xlu0 0
            %4242 = vperm.xlu0 %4241, %v3911
            %v4243 = vpop.permute.xlu0 %4242
            %4244 = vset.pattern.permute.xlu0 0
            %4245 = vperm.xlu0 %4244, %v3912
            %v4246 = vpop.permute.xlu0 %4245
            %4247 = vset.pattern.permute.xlu0 0
            %4248 = vperm.xlu0 %4247, %v3913
            %v4249 = vpop.permute.xlu0 %4248
            %4250 = vset.pattern.permute.xlu0 0
            %4251 = vperm.xlu0 %4250, %v3914
            %v4252 = vpop.permute.xlu0 %4251
            %4253 = vset.pattern.permute.xlu0 0
            %4254 = vperm.xlu0 %4253, %v3915
            %v4255 = vpop.permute.xlu0 %4254
            %4256 = vset.pattern.permute.xlu0 0
            %4257 = vperm.xlu0 %4256, %v3916
            %v4258 = vpop.permute.xlu0 %4257
            %4259 = vset.pattern.permute.xlu0 0
            %4260 = vperm.xlu0 %4259, %v3917
            %v4261 = vpop.permute.xlu0 %4260
            %4262 = vset.pattern.permute.xlu0 0
            %4263 = vperm.xlu0 %4262, %v3918
            %v4264 = vpop.permute.xlu0 %4263
            %4265 = vset.pattern.permute.xlu0 0
            %4266 = vperm.xlu0 %4265, %v3919
            %v4267 = vpop.permute.xlu0 %4266
            %4268 = vset.pattern.permute.xlu0 0
            %4269 = vperm.xlu0 %4268, %v3920
            %v4270 = vpop.permute.xlu0 %4269
            %4271 = vset.pattern.permute.xlu0 0
            %4272 = vperm.xlu0 %4271, %v3921
            %v4273 = vpop.permute.xlu0 %4272
            %4274 = vset.pattern.permute.xlu0 0
            %4275 = vperm.xlu0 %4274, %v3922
            %v4276 = vpop.permute.xlu0 %4275
            %4277 = vset.pattern.permute.xlu0 0
            %4278 = vperm.xlu0 %4277, %v3923
            %v4279 = vpop.permute.xlu0 %4278
            %4280 = vset.pattern.permute.xlu0 0
            %4281 = vperm.xlu0 %4280, %v3924
            %v4282 = vpop.permute.xlu0 %4281
            %4283 = vset.pattern.permute.xlu0 0
            %4284 = vperm.xlu0 %4283, %v3925
            %v4285 = vpop.permute.xlu0 %4284
            %4286 = vset.pattern.permute.xlu0 0
            %4287 = vperm.xlu0 %4286, %v3926
            %v4288 = vpop.permute.xlu0 %4287
            %4289 = vset.pattern.permute.xlu0 0
            %4290 = vperm.xlu0 %4289, %v3927
            %v4291 = vpop.permute.xlu0 %4290
            %4292 = vset.pattern.permute.xlu0 0
            %4293 = vperm.xlu0 %4292, %v3928
            %v4294 = vpop.permute.xlu0 %4293
            %4295 = vset.pattern.permute.xlu0 0
            %4296 = vperm.xlu0 %4295, %v3929
            %v4297 = vpop.permute.xlu0 %4296
            %4298 = vset.pattern.permute.xlu0 0
            %4299 = vperm.xlu0 %4298, %v3930
            %v4300 = vpop.permute.xlu0 %4299
            %4301 = vset.pattern.permute.xlu0 0
            %4302 = vperm.xlu0 %4301, %v3931
            %v4303 = vpop.permute.xlu0 %4302
            %4304 = vset.pattern.permute.xlu0 0
            %4305 = vperm.xlu0 %4304, %v3932
            %v4306 = vpop.permute.xlu0 %4305
            %4307 = vset.pattern.permute.xlu0 0
            %4308 = vperm.xlu0 %4307, %v3933
            %v4309 = vpop.permute.xlu0 %4308
            %4310 = vset.pattern.permute.xlu0 0
            %4311 = vperm.xlu0 %4310, %v3934
            %v4312 = vpop.permute.xlu0 %4311
            %4313 = vset.pattern.permute.xlu0 0
            %4314 = vperm.xlu0 %4313, %v3935
            %v4315 = vpop.permute.xlu0 %4314
            %4316 = vset.pattern.permute.xlu0 0
            %4317 = vperm.xlu0 %4316, %v3936
            %v4318 = vpop.permute.xlu0 %4317
            %4319 = vset.pattern.permute.xlu0 0
            %4320 = vperm.xlu0 %4319, %v3937
            %v4321 = vpop.permute.xlu0 %4320
            %vm4322 = vcmp.eq.s32.totalorder %v3940, 1
            %vm4323 = vcmp.eq.s32.totalorder %v3943, 1
            %vm4324 = vcmp.eq.s32.totalorder %v3946, 1
            %vm4325 = vcmp.eq.s32.totalorder %v3949, 1
            %vm4326 = vcmp.eq.s32.totalorder %v3952, 1
            %vm4327 = vcmp.eq.s32.totalorder %v3955, 1
            %vm4328 = vcmp.eq.s32.totalorder %v3958, 1
            %vm4329 = vcmp.eq.s32.totalorder %v3961, 1
            %vm4330 = vcmp.eq.s32.totalorder %v3964, 1
            %vm4331 = vcmp.eq.s32.totalorder %v3967, 1
            %vm4332 = vcmp.eq.s32.totalorder %v3970, 1
            %vm4333 = vcmp.eq.s32.totalorder %v3973, 1
            %vm4334 = vcmp.eq.s32.totalorder %v3976, 1
            %vm4335 = vcmp.eq.s32.totalorder %v3979, 1
            %vm4336 = vcmp.eq.s32.totalorder %v3982, 1
            %vm4337 = vcmp.eq.s32.totalorder %v3985, 1
            %vm4338 = vcmp.eq.s32.totalorder %v3988, 1
            %vm4339 = vcmp.eq.s32.totalorder %v3991, 1
            %vm4340 = vcmp.eq.s32.totalorder %v3994, 1
            %vm4341 = vcmp.eq.s32.totalorder %v3997, 1
            %vm4342 = vcmp.eq.s32.totalorder %v4000, 1
            %vm4343 = vcmp.eq.s32.totalorder %v4003, 1
            %vm4344 = vcmp.eq.s32.totalorder %v4006, 1
            %vm4345 = vcmp.eq.s32.totalorder %v4009, 1
            %vm4346 = vcmp.eq.s32.totalorder %v4012, 1
            %vm4347 = vcmp.eq.s32.totalorder %v4015, 1
            %vm4348 = vcmp.eq.s32.totalorder %v4018, 1
            %vm4349 = vcmp.eq.s32.totalorder %v4021, 1
            %vm4350 = vcmp.eq.s32.totalorder %v4024, 1
            %vm4351 = vcmp.eq.s32.totalorder %v4027, 1
            %vm4352 = vcmp.eq.s32.totalorder %v4030, 1
            %vm4353 = vcmp.eq.s32.totalorder %v4033, 1
            %vm4354 = vcmp.eq.s32.totalorder %v4036, 1
            %vm4355 = vcmp.eq.s32.totalorder %v4039, 1
            %vm4356 = vcmp.eq.s32.totalorder %v4042, 1
            %vm4357 = vcmp.eq.s32.totalorder %v4045, 1
            %vm4358 = vcmp.eq.s32.totalorder %v4048, 1
            %vm4359 = vcmp.eq.s32.totalorder %v4051, 1
            %vm4360 = vcmp.eq.s32.totalorder %v4054, 1
            %vm4361 = vcmp.eq.s32.totalorder %v4057, 1
            %vm4362 = vcmp.eq.s32.totalorder %v4060, 1
            %vm4363 = vcmp.eq.s32.totalorder %v4063, 1
            %vm4364 = vcmp.eq.s32.totalorder %v4066, 1
            %vm4365 = vcmp.eq.s32.totalorder %v4069, 1
            %vm4366 = vcmp.eq.s32.totalorder %v4072, 1
            %vm4367 = vcmp.eq.s32.totalorder %v4075, 1
            %vm4368 = vcmp.eq.s32.totalorder %v4078, 1
            %vm4369 = vcmp.eq.s32.totalorder %v4081, 1
            %vm4370 = vcmp.eq.s32.totalorder %v4084, 1
            %vm4371 = vcmp.eq.s32.totalorder %v4087, 1
            %vm4372 = vcmp.eq.s32.totalorder %v4090, 1
            %vm4373 = vcmp.eq.s32.totalorder %v4093, 1
            %vm4374 = vcmp.eq.s32.totalorder %v4096, 1
            %vm4375 = vcmp.eq.s32.totalorder %v4099, 1
            %vm4376 = vcmp.eq.s32.totalorder %v4102, 1
            %vm4377 = vcmp.eq.s32.totalorder %v4105, 1
            %vm4378 = vcmp.eq.s32.totalorder %v4108, 1
            %vm4379 = vcmp.eq.s32.totalorder %v4111, 1
            %vm4380 = vcmp.eq.s32.totalorder %v4114, 1
            %vm4381 = vcmp.eq.s32.totalorder %v4117, 1
            %vm4382 = vcmp.eq.s32.totalorder %v4120, 1
            %vm4383 = vcmp.eq.s32.totalorder %v4123, 1
            %vm4384 = vcmp.eq.s32.totalorder %v4126, 1
            %vm4385 = vcmp.eq.s32.totalorder %v4129, 1
            %vm4386 = vcmp.eq.s32.totalorder %v4132, 1
            %vm4387 = vcmp.eq.s32.totalorder %v4135, 1
            %vm4388 = vcmp.eq.s32.totalorder %v4138, 1
            %vm4389 = vcmp.eq.s32.totalorder %v4141, 1
            %vm4390 = vcmp.eq.s32.totalorder %v4144, 1
            %vm4391 = vcmp.eq.s32.totalorder %v4147, 1
            %vm4392 = vcmp.eq.s32.totalorder %v4150, 1
            %vm4393 = vcmp.eq.s32.totalorder %v4153, 1
            %vm4394 = vcmp.eq.s32.totalorder %v4156, 1
            %vm4395 = vcmp.eq.s32.totalorder %v4159, 1
            %vm4396 = vcmp.eq.s32.totalorder %v4162, 1
            %vm4397 = vcmp.eq.s32.totalorder %v4165, 1
            %vm4398 = vcmp.eq.s32.totalorder %v4168, 1
            %vm4399 = vcmp.eq.s32.totalorder %v4171, 1
            %vm4400 = vcmp.eq.s32.totalorder %v4174, 1
            %vm4401 = vcmp.eq.s32.totalorder %v4177, 1
            %vm4402 = vcmp.eq.s32.totalorder %v4180, 1
            %vm4403 = vcmp.eq.s32.totalorder %v4183, 1
            %vm4404 = vcmp.eq.s32.totalorder %v4186, 1
            %vm4405 = vcmp.eq.s32.totalorder %v4189, 1
            %vm4406 = vcmp.eq.s32.totalorder %v4192, 1
            %vm4407 = vcmp.eq.s32.totalorder %v4195, 1
            %vm4408 = vcmp.eq.s32.totalorder %v4198, 1
            %vm4409 = vcmp.eq.s32.totalorder %v4201, 1
            %vm4410 = vcmp.eq.s32.totalorder %v4204, 1
            %vm4411 = vcmp.eq.s32.totalorder %v4207, 1
            %vm4412 = vcmp.eq.s32.totalorder %v4210, 1
            %vm4413 = vcmp.eq.s32.totalorder %v4213, 1
            %vm4414 = vcmp.eq.s32.totalorder %v4216, 1
            %vm4415 = vcmp.eq.s32.totalorder %v4219, 1
            %vm4416 = vcmp.eq.s32.totalorder %v4222, 1
            %vm4417 = vcmp.eq.s32.totalorder %v4225, 1
            %vm4418 = vcmp.eq.s32.totalorder %v4228, 1
            %vm4419 = vcmp.eq.s32.totalorder %v4231, 1
            %vm4420 = vcmp.eq.s32.totalorder %v4234, 1
            %vm4421 = vcmp.eq.s32.totalorder %v4237, 1
            %vm4422 = vcmp.eq.s32.totalorder %v4240, 1
            %vm4423 = vcmp.eq.s32.totalorder %v4243, 1
            %vm4424 = vcmp.eq.s32.totalorder %v4246, 1
            %vm4425 = vcmp.eq.s32.totalorder %v4249, 1
            %vm4426 = vcmp.eq.s32.totalorder %v4252, 1
            %vm4427 = vcmp.eq.s32.totalorder %v4255, 1
            %vm4428 = vcmp.eq.s32.totalorder %v4258, 1
            %vm4429 = vcmp.eq.s32.totalorder %v4261, 1
            %vm4430 = vcmp.eq.s32.totalorder %v4264, 1
            %vm4431 = vcmp.eq.s32.totalorder %v4267, 1
            %vm4432 = vcmp.eq.s32.totalorder %v4270, 1
            %vm4433 = vcmp.eq.s32.totalorder %v4273, 1
            %vm4434 = vcmp.eq.s32.totalorder %v4276, 1
            %vm4435 = vcmp.eq.s32.totalorder %v4279, 1
            %vm4436 = vcmp.eq.s32.totalorder %v4282, 1
            %vm4437 = vcmp.eq.s32.totalorder %v4285, 1
            %vm4438 = vcmp.eq.s32.totalorder %v4288, 1
            %vm4439 = vcmp.eq.s32.totalorder %v4291, 1
            %vm4440 = vcmp.eq.s32.totalorder %v4294, 1
            %vm4441 = vcmp.eq.s32.totalorder %v4297, 1
            %vm4442 = vcmp.eq.s32.totalorder %v4300, 1
            %vm4443 = vcmp.eq.s32.totalorder %v4303, 1
            %vm4444 = vcmp.eq.s32.totalorder %v4306, 1
            %vm4445 = vcmp.eq.s32.totalorder %v4309, 1
            %vm4446 = vcmp.eq.s32.totalorder %v4312, 1
            %vm4447 = vcmp.eq.s32.totalorder %v4315, 1
            %vm4448 = vcmp.eq.s32.totalorder %v4318, 1
            %vm4449 = vcmp.eq.s32.totalorder %v4321, 1
            %v4450 = vsel %vm4322, %v3205, 0.0
            %v4451 = vsel %vm4323, %v3206, 0.0
            %v4452 = vsel %vm4324, %v3207, 0.0
            %v4453 = vsel %vm4325, %v3208, 0.0
            %v4454 = vsel %vm4326, %v3209, 0.0
            %v4455 = vsel %vm4327, %v3210, 0.0
            %v4456 = vsel %vm4328, %v3211, 0.0
            %v4457 = vsel %vm4329, %v3212, 0.0
            %v4458 = vsel %vm4330, %v3213, 0.0
            %v4459 = vsel %vm4331, %v3214, 0.0
            %v4460 = vsel %vm4332, %v3215, 0.0
            %v4461 = vsel %vm4333, %v3216, 0.0
            %v4462 = vsel %vm4334, %v3217, 0.0
            %v4463 = vsel %vm4335, %v3218, 0.0
            %v4464 = vsel %vm4336, %v3219, 0.0
            %v4465 = vsel %vm4337, %v3220, 0.0
            %v4466 = vsel %vm4338, %v3221, 0.0
            %v4467 = vsel %vm4339, %v3222, 0.0
            %v4468 = vsel %vm4340, %v3223, 0.0
            %v4469 = vsel %vm4341, %v3224, 0.0
            %v4470 = vsel %vm4342, %v3225, 0.0
            %v4471 = vsel %vm4343, %v3226, 0.0
            %v4472 = vsel %vm4344, %v3227, 0.0
            %v4473 = vsel %vm4345, %v3228, 0.0
            %v4474 = vsel %vm4346, %v3229, 0.0
            %v4475 = vsel %vm4347, %v3230, 0.0
            %v4476 = vsel %vm4348, %v3231, 0.0
            %v4477 = vsel %vm4349, %v3232, 0.0
            %v4478 = vsel %vm4350, %v3233, 0.0
            %v4479 = vsel %vm4351, %v3234, 0.0
            %v4480 = vsel %vm4352, %v3235, 0.0
            %v4481 = vsel %vm4353, %v3236, 0.0
            %v4482 = vsel %vm4354, %v3237, 0.0
            %v4483 = vsel %vm4355, %v3238, 0.0
            %v4484 = vsel %vm4356, %v3239, 0.0
            %v4485 = vsel %vm4357, %v3240, 0.0
            %v4486 = vsel %vm4358, %v3241, 0.0
            %v4487 = vsel %vm4359, %v3242, 0.0
            %v4488 = vsel %vm4360, %v3243, 0.0
            %v4489 = vsel %vm4361, %v3244, 0.0
            %v4490 = vsel %vm4362, %v3245, 0.0
            %v4491 = vsel %vm4363, %v3246, 0.0
            %v4492 = vsel %vm4364, %v3247, 0.0
            %v4493 = vsel %vm4365, %v3248, 0.0
            %v4494 = vsel %vm4366, %v3249, 0.0
            %v4495 = vsel %vm4367, %v3250, 0.0
            %v4496 = vsel %vm4368, %v3251, 0.0
            %v4497 = vsel %vm4369, %v3252, 0.0
            %v4498 = vsel %vm4370, %v3253, 0.0
            %v4499 = vsel %vm4371, %v3254, 0.0
            %v4500 = vsel %vm4372, %v3255, 0.0
            %v4501 = vsel %vm4373, %v3256, 0.0
            %v4502 = vsel %vm4374, %v3257, 0.0
            %v4503 = vsel %vm4375, %v3258, 0.0
            %v4504 = vsel %vm4376, %v3259, 0.0
            %v4505 = vsel %vm4377, %v3260, 0.0
            %v4506 = vsel %vm4378, %v3261, 0.0
            %v4507 = vsel %vm4379, %v3262, 0.0
            %v4508 = vsel %vm4380, %v3263, 0.0
            %v4509 = vsel %vm4381, %v3264, 0.0
            %v4510 = vsel %vm4382, %v3265, 0.0
            %v4511 = vsel %vm4383, %v3266, 0.0
            %v4512 = vsel %vm4384, %v3267, 0.0
            %v4513 = vsel %vm4385, %v3268, 0.0
            %v4514 = vsel %vm4386, %v3269, 0.0
            %v4515 = vsel %vm4387, %v3270, 0.0
            %v4516 = vsel %vm4388, %v3271, 0.0
            %v4517 = vsel %vm4389, %v3272, 0.0
            %v4518 = vsel %vm4390, %v3273, 0.0
            %v4519 = vsel %vm4391, %v3274, 0.0
            %v4520 = vsel %vm4392, %v3275, 0.0
            %v4521 = vsel %vm4393, %v3276, 0.0
            %v4522 = vsel %vm4394, %v3277, 0.0
            %v4523 = vsel %vm4395, %v3278, 0.0
            %v4524 = vsel %vm4396, %v3279, 0.0
            %v4525 = vsel %vm4397, %v3280, 0.0
            %v4526 = vsel %vm4398, %v3281, 0.0
            %v4527 = vsel %vm4399, %v3282, 0.0
            %v4528 = vsel %vm4400, %v3283, 0.0
            %v4529 = vsel %vm4401, %v3284, 0.0
            %v4530 = vsel %vm4402, %v3285, 0.0
            %v4531 = vsel %vm4403, %v3286, 0.0
            %v4532 = vsel %vm4404, %v3287, 0.0
            %v4533 = vsel %vm4405, %v3288, 0.0
            %v4534 = vsel %vm4406, %v3289, 0.0
            %v4535 = vsel %vm4407, %v3290, 0.0
            %v4536 = vsel %vm4408, %v3291, 0.0
            %v4537 = vsel %vm4409, %v3292, 0.0
            %v4538 = vsel %vm4410, %v3293, 0.0
            %v4539 = vsel %vm4411, %v3294, 0.0
            %v4540 = vsel %vm4412, %v3295, 0.0
            %v4541 = vsel %vm4413, %v3296, 0.0
            %v4542 = vsel %vm4414, %v3297, 0.0
            %v4543 = vsel %vm4415, %v3298, 0.0
            %v4544 = vsel %vm4416, %v3299, 0.0
            %v4545 = vsel %vm4417, %v3300, 0.0
            %v4546 = vsel %vm4418, %v3301, 0.0
            %v4547 = vsel %vm4419, %v3302, 0.0
            %v4548 = vsel %vm4420, %v3303, 0.0
            %v4549 = vsel %vm4421, %v3304, 0.0
            %v4550 = vsel %vm4422, %v3305, 0.0
            %v4551 = vsel %vm4423, %v3306, 0.0
            %v4552 = vsel %vm4424, %v3307, 0.0
            %v4553 = vsel %vm4425, %v3308, 0.0
            %v4554 = vsel %vm4426, %v3309, 0.0
            %v4555 = vsel %vm4427, %v3310, 0.0
            %v4556 = vsel %vm4428, %v3311, 0.0
            %v4557 = vsel %vm4429, %v3312, 0.0
            %v4558 = vsel %vm4430, %v3313, 0.0
            %v4559 = vsel %vm4431, %v3314, 0.0
            %v4560 = vsel %vm4432, %v3315, 0.0
            %v4561 = vsel %vm4433, %v3316, 0.0
            %v4562 = vsel %vm4434, %v3317, 0.0
            %v4563 = vsel %vm4435, %v3318, 0.0
            %v4564 = vsel %vm4436, %v3319, 0.0
            %v4565 = vsel %vm4437, %v3320, 0.0
            %v4566 = vsel %vm4438, %v3321, 0.0
            %v4567 = vsel %vm4439, %v3322, 0.0
            %v4568 = vsel %vm4440, %v3323, 0.0
            %v4569 = vsel %vm4441, %v3324, 0.0
            %v4570 = vsel %vm4442, %v3325, 0.0
            %v4571 = vsel %vm4443, %v3326, 0.0
            %v4572 = vsel %vm4444, %v3327, 0.0
            %v4573 = vsel %vm4445, %v3328, 0.0
            %v4574 = vsel %vm4446, %v3329, 0.0
            %v4575 = vsel %vm4447, %v3330, 0.0
            %v4576 = vsel %vm4448, %v3331, 0.0
            %v4577 = vsel %vm4449, %v3332, 0.0
            %v4578 = vsel %vm2886, %v4450, -inf
            %v4579 = vsel %vm2886, %v4451, -inf
            %v4580 = vsel %vm2886, %v4452, -inf
            %v4581 = vsel %vm2886, %v4453, -inf
            %v4582 = vsel %vm2886, %v4454, -inf
            %v4583 = vmax.f32 %v4578, %v4582
            %v4584 = vsel %vm2886, %v4455, -inf
            %v4585 = vmax.f32 %v4579, %v4584
            %v4586 = vsel %vm2886, %v4456, -inf
            %v4587 = vmax.f32 %v4580, %v4586
            %v4588 = vsel %vm2886, %v4457, -inf
            %v4589 = vmax.f32 %v4581, %v4588
            %v4590 = vsel %vm2886, %v4458, -inf
            %v4591 = vmax.f32 %v4583, %v4590
            %v4592 = vsel %vm2886, %v4459, -inf
            %v4593 = vmax.f32 %v4585, %v4592
            %v4594 = vsel %vm2886, %v4460, -inf
            %v4595 = vmax.f32 %v4587, %v4594
            %v4596 = vsel %vm2886, %v4461, -inf
            %v4597 = vmax.f32 %v4589, %v4596
            %v4598 = vsel %vm2886, %v4462, -inf
            %v4599 = vmax.f32 %v4591, %v4598
            %v4600 = vsel %vm2886, %v4463, -inf
            %v4601 = vmax.f32 %v4593, %v4600
            %v4602 = vsel %vm2886, %v4464, -inf
            %v4603 = vmax.f32 %v4595, %v4602
            %v4604 = vsel %vm2886, %v4465, -inf
            %v4605 = vmax.f32 %v4597, %v4604
            %v4606 = vsel %vm2886, %v4466, -inf
            %v4607 = vmax.f32 %v4599, %v4606
            %v4608 = vsel %vm2886, %v4467, -inf
            %v4609 = vmax.f32 %v4601, %v4608
            %v4610 = vsel %vm2886, %v4468, -inf
            %v4611 = vmax.f32 %v4603, %v4610
            %v4612 = vsel %vm2886, %v4469, -inf
            %v4613 = vmax.f32 %v4605, %v4612
            %v4614 = vsel %vm2886, %v4470, -inf
            %v4615 = vmax.f32 %v4607, %v4614
            %v4616 = vsel %vm2886, %v4471, -inf
            %v4617 = vmax.f32 %v4609, %v4616
            %v4618 = vsel %vm2886, %v4472, -inf
            %v4619 = vmax.f32 %v4611, %v4618
            %v4620 = vsel %vm2886, %v4473, -inf
            %v4621 = vmax.f32 %v4613, %v4620
            %v4622 = vsel %vm2886, %v4474, -inf
            %v4623 = vmax.f32 %v4615, %v4622
            %v4624 = vsel %vm2886, %v4475, -inf
            %v4625 = vmax.f32 %v4617, %v4624
            %v4626 = vsel %vm2886, %v4476, -inf
            %v4627 = vmax.f32 %v4619, %v4626
            %v4628 = vsel %vm2886, %v4477, -inf
            %v4629 = vmax.f32 %v4621, %v4628
            %v4630 = vsel %vm2886, %v4478, -inf
            %v4631 = vmax.f32 %v4623, %v4630
            %v4632 = vsel %vm2886, %v4479, -inf
            %v4633 = vmax.f32 %v4625, %v4632
            %v4634 = vsel %vm2886, %v4480, -inf
            %v4635 = vmax.f32 %v4627, %v4634
            %v4636 = vsel %vm2886, %v4481, -inf
            %v4637 = vmax.f32 %v4629, %v4636
            %v4638 = vsel %vm2886, %v4482, -inf
            %v4639 = vmax.f32 %v4631, %v4638
            %v4640 = vsel %vm2886, %v4483, -inf
            %v4641 = vmax.f32 %v4633, %v4640
            %v4642 = vsel %vm2886, %v4484, -inf
            %v4643 = vmax.f32 %v4635, %v4642
            %v4644 = vsel %vm2886, %v4485, -inf
            %v4645 = vmax.f32 %v4637, %v4644
            %v4646 = vsel %vm2886, %v4486, -inf
            %v4647 = vmax.f32 %v4639, %v4646
            %v4648 = vsel %vm2886, %v4487, -inf
            %v4649 = vmax.f32 %v4641, %v4648
            %v4650 = vsel %vm2886, %v4488, -inf
            %v4651 = vmax.f32 %v4643, %v4650
            %v4652 = vsel %vm2886, %v4489, -inf
            %v4653 = vmax.f32 %v4645, %v4652
            %v4654 = vsel %vm2886, %v4490, -inf
            %v4655 = vmax.f32 %v4647, %v4654
            %v4656 = vsel %vm2886, %v4491, -inf
            %v4657 = vmax.f32 %v4649, %v4656
            %v4658 = vsel %vm2886, %v4492, -inf
            %v4659 = vmax.f32 %v4651, %v4658
            %v4660 = vsel %vm2886, %v4493, -inf
            %v4661 = vmax.f32 %v4653, %v4660
            %v4662 = vsel %vm2886, %v4494, -inf
            %v4663 = vmax.f32 %v4655, %v4662
            %v4664 = vsel %vm2886, %v4495, -inf
            %v4665 = vmax.f32 %v4657, %v4664
            %v4666 = vsel %vm2886, %v4496, -inf
            %v4667 = vmax.f32 %v4659, %v4666
            %v4668 = vsel %vm2886, %v4497, -inf
            %v4669 = vmax.f32 %v4661, %v4668
            %v4670 = vsel %vm2886, %v4498, -inf
            %v4671 = vmax.f32 %v4663, %v4670
            %v4672 = vsel %vm2886, %v4499, -inf
            %v4673 = vmax.f32 %v4665, %v4672
            %v4674 = vsel %vm2886, %v4500, -inf
            %v4675 = vmax.f32 %v4667, %v4674
            %v4676 = vsel %vm2886, %v4501, -inf
            %v4677 = vmax.f32 %v4669, %v4676
            %v4678 = vsel %vm2886, %v4502, -inf
            %v4679 = vmax.f32 %v4671, %v4678
            %v4680 = vsel %vm2886, %v4503, -inf
            %v4681 = vmax.f32 %v4673, %v4680
            %v4682 = vsel %vm2886, %v4504, -inf
            %v4683 = vmax.f32 %v4675, %v4682
            %v4684 = vsel %vm2886, %v4505, -inf
            %v4685 = vmax.f32 %v4677, %v4684
            %v4686 = vsel %vm2886, %v4506, -inf
            %v4687 = vmax.f32 %v4679, %v4686
            %v4688 = vsel %vm2886, %v4507, -inf
            %v4689 = vmax.f32 %v4681, %v4688
            %v4690 = vsel %vm2886, %v4508, -inf
            %v4691 = vmax.f32 %v4683, %v4690
            %v4692 = vsel %vm2886, %v4509, -inf
            %v4693 = vmax.f32 %v4685, %v4692
            %v4694 = vsel %vm2886, %v4510, -inf
            %v4695 = vmax.f32 %v4687, %v4694
            %v4696 = vsel %vm2886, %v4511, -inf
            %v4697 = vmax.f32 %v4689, %v4696
            %v4698 = vsel %vm2886, %v4512, -inf
            %v4699 = vmax.f32 %v4691, %v4698
            %v4700 = vsel %vm2886, %v4513, -inf
            %v4701 = vmax.f32 %v4693, %v4700
            %v4702 = vsel %vm2886, %v4514, -inf
            %v4703 = vmax.f32 %v4695, %v4702
            %v4704 = vsel %vm2886, %v4515, -inf
            %v4705 = vmax.f32 %v4697, %v4704
            %v4706 = vsel %vm2886, %v4516, -inf
            %v4707 = vmax.f32 %v4699, %v4706
            %v4708 = vsel %vm2886, %v4517, -inf
            %v4709 = vmax.f32 %v4701, %v4708
            %v4710 = vsel %vm2886, %v4518, -inf
            %v4711 = vmax.f32 %v4703, %v4710
            %v4712 = vsel %vm2886, %v4519, -inf
            %v4713 = vmax.f32 %v4705, %v4712
            %v4714 = vsel %vm2886, %v4520, -inf
            %v4715 = vmax.f32 %v4707, %v4714
            %v4716 = vsel %vm2886, %v4521, -inf
            %v4717 = vmax.f32 %v4709, %v4716
            %v4718 = vsel %vm2886, %v4522, -inf
            %v4719 = vmax.f32 %v4711, %v4718
            %v4720 = vsel %vm2886, %v4523, -inf
            %v4721 = vmax.f32 %v4713, %v4720
            %v4722 = vsel %vm2886, %v4524, -inf
            %v4723 = vmax.f32 %v4715, %v4722
            %v4724 = vsel %vm2886, %v4525, -inf
            %v4725 = vmax.f32 %v4717, %v4724
            %v4726 = vsel %vm2886, %v4526, -inf
            %v4727 = vmax.f32 %v4719, %v4726
            %v4728 = vsel %vm2886, %v4527, -inf
            %v4729 = vmax.f32 %v4721, %v4728
            %v4730 = vsel %vm2886, %v4528, -inf
            %v4731 = vmax.f32 %v4723, %v4730
            %v4732 = vsel %vm2886, %v4529, -inf
            %v4733 = vmax.f32 %v4725, %v4732
            %v4734 = vsel %vm2886, %v4530, -inf
            %v4735 = vmax.f32 %v4727, %v4734
            %v4736 = vsel %vm2886, %v4531, -inf
            %v4737 = vmax.f32 %v4729, %v4736
            %v4738 = vsel %vm2886, %v4532, -inf
            %v4739 = vmax.f32 %v4731, %v4738
            %v4740 = vsel %vm2886, %v4533, -inf
            %v4741 = vmax.f32 %v4733, %v4740
            %v4742 = vsel %vm2886, %v4534, -inf
            %v4743 = vmax.f32 %v4735, %v4742
            %v4744 = vsel %vm2886, %v4535, -inf
            %v4745 = vmax.f32 %v4737, %v4744
            %v4746 = vsel %vm2886, %v4536, -inf
            %v4747 = vmax.f32 %v4739, %v4746
            %v4748 = vsel %vm2886, %v4537, -inf
            %v4749 = vmax.f32 %v4741, %v4748
            %v4750 = vsel %vm2886, %v4538, -inf
            %v4751 = vmax.f32 %v4743, %v4750
            %v4752 = vsel %vm2886, %v4539, -inf
            %v4753 = vmax.f32 %v4745, %v4752
            %v4754 = vsel %vm2886, %v4540, -inf
            %v4755 = vmax.f32 %v4747, %v4754
            %v4756 = vsel %vm2886, %v4541, -inf
            %v4757 = vmax.f32 %v4749, %v4756
            %v4758 = vsel %vm2886, %v4542, -inf
            %v4759 = vmax.f32 %v4751, %v4758
            %v4760 = vsel %vm2886, %v4543, -inf
            %v4761 = vmax.f32 %v4753, %v4760
            %v4762 = vsel %vm2886, %v4544, -inf
            %v4763 = vmax.f32 %v4755, %v4762
            %v4764 = vsel %vm2886, %v4545, -inf
            %v4765 = vmax.f32 %v4757, %v4764
            %v4766 = vsel %vm2886, %v4546, -inf
            %v4767 = vmax.f32 %v4759, %v4766
            %v4768 = vsel %vm2886, %v4547, -inf
            %v4769 = vmax.f32 %v4761, %v4768
            %v4770 = vsel %vm2886, %v4548, -inf
            %v4771 = vmax.f32 %v4763, %v4770
            %v4772 = vsel %vm2886, %v4549, -inf
            %v4773 = vmax.f32 %v4765, %v4772
            %v4774 = vsel %vm2886, %v4550, -inf
            %v4775 = vmax.f32 %v4767, %v4774
            %v4776 = vsel %vm2886, %v4551, -inf
            %v4777 = vmax.f32 %v4769, %v4776
            %v4778 = vsel %vm2886, %v4552, -inf
            %v4779 = vmax.f32 %v4771, %v4778
            %v4780 = vsel %vm2886, %v4553, -inf
            %v4781 = vmax.f32 %v4773, %v4780
            %v4782 = vsel %vm2886, %v4554, -inf
            %v4783 = vmax.f32 %v4775, %v4782
            %v4784 = vsel %vm2886, %v4555, -inf
            %v4785 = vmax.f32 %v4777, %v4784
            %v4786 = vsel %vm2886, %v4556, -inf
            %v4787 = vmax.f32 %v4779, %v4786
            %v4788 = vsel %vm2886, %v4557, -inf
            %v4789 = vmax.f32 %v4781, %v4788
            %v4790 = vsel %vm2886, %v4558, -inf
            %v4791 = vmax.f32 %v4783, %v4790
            %v4792 = vsel %vm2886, %v4559, -inf
            %v4793 = vmax.f32 %v4785, %v4792
            %v4794 = vsel %vm2886, %v4560, -inf
            %v4795 = vmax.f32 %v4787, %v4794
            %v4796 = vsel %vm2886, %v4561, -inf
            %v4797 = vmax.f32 %v4789, %v4796
            %v4798 = vsel %vm2886, %v4562, -inf
            %v4799 = vmax.f32 %v4791, %v4798
            %v4800 = vsel %vm2886, %v4563, -inf
            %v4801 = vmax.f32 %v4793, %v4800
            %v4802 = vsel %vm2886, %v4564, -inf
            %v4803 = vmax.f32 %v4795, %v4802
            %v4804 = vsel %vm2886, %v4565, -inf
            %v4805 = vmax.f32 %v4797, %v4804
            %v4806 = vsel %vm2886, %v4566, -inf
            %v4807 = vmax.f32 %v4799, %v4806
            %v4808 = vsel %vm2886, %v4567, -inf
            %v4809 = vmax.f32 %v4801, %v4808
            %v4810 = vsel %vm2886, %v4568, -inf
            %v4811 = vmax.f32 %v4803, %v4810
            %v4812 = vsel %vm2886, %v4569, -inf
            %v4813 = vmax.f32 %v4805, %v4812
            %v4814 = vsel %vm2886, %v4570, -inf
            %v4815 = vmax.f32 %v4807, %v4814
            %v4816 = vsel %vm2886, %v4571, -inf
            %v4817 = vmax.f32 %v4809, %v4816
            %v4818 = vsel %vm2886, %v4572, -inf
            %v4819 = vmax.f32 %v4811, %v4818
            %v4820 = vsel %vm2886, %v4573, -inf
            %v4821 = vmax.f32 %v4813, %v4820
            %v4822 = vsel %vm2886, %v4574, -inf
            %v4823 = vmax.f32 %v4815, %v4822
            %v4824 = vsel %vm2886, %v4575, -inf
            %v4825 = vmax.f32 %v4817, %v4824
            %v4826 = vsel %vm2886, %v4576, -inf
            %v4827 = vmax.f32 %v4819, %v4826
            %v4828 = vsel %vm2886, %v4577, -inf
            %v4829 = vmax.f32 %v4821, %v4828
            %v4830 = vmax.f32 %v4823, %v4825
            %v4831 = vmax.f32 %v4827, %v4829
            %v4832 = vmax.f32 %v4830, %v4831
            %v4833 = vrot.slane %v4832, 4
            %v4834 = vmax.f32 %v4832, %v4833
            %v4835 = vrot.slane %v4834, 2
            %v4836 = vmax.f32 %v4834, %v4835
            %v4837 = vrot.slane %v4836, 1
            %v4838 = vmax.f32 %v4836, %v4837
            %s4839 = scalar_lea.vmem [#allocation6], %s3676
            %vm4840 = vcmask 57344
            %4841 = vst.msk [vmem:[%s4839] sm:$0x1] %vm4840, %v4838
          $region124: #{gcn_learn_forward.1} parent=118 // loop_footer
            %s3680 = sadd.s32 1, %s3676
          $region125: #{gcn_learn_forward.1} parent=118 // loop_footer_branch
            %3675 = sbr.rel target = $region121
          $region126: #{gcn_learn_forward.1} parent=118 // loop_exit
            _
          %v4842 = vld [vmem:[%s9] sm:$0xff]
          %v4843 = vld [vmem:[%s9 + $0x8] sm:$0xff]
          %v4844 = vld [vmem:[#allocation6] sm:$0xff]
          %v4845 = vld [vmem:[#allocation6 + $0x8] sm:$0xff]
          %v4847 = vsel %vm2886, %v3545, 0
          %v4850 = vsel %vm2886, %v3546, 0
          %4852 = vmatpush.msra.mxu0 0.0
          %4853 = vmatpush.msra.mxu0 0.0
          %4854 = vmatpush.msra.mxu0 0.0
          %4855 = vmatpush.msra.mxu0 0.0
          %4856 = vmatpush.msra.mxu0 0.0
          %4857 = vmatpush.msra.mxu0 0.0
          %4858 = vmatpush.msra.mxu0 0.0
          %4859 = vmatpush.msra.mxu0 0.0
          %4860 = vmatpush.msra.mxu0 0.0
          %4861 = vmatpush.msra.mxu0 0.0
          %4862 = vmatpush.msra.mxu0 0.0
          %4863 = vmatpush.msra.mxu0 0.0
          %4864 = vmatpush.msra.mxu0 0.0
          %4865 = vmatpush.msra.mxu0 0.0
          %4866 = vmatpush.msra.mxu0 0.0
          %4867 = vmatpush.msra.mxu0 %v4843
          %4868 = vmatmul.f32.gmra.mxu0 %v4847
          %v4869 = vpop.f32.mrf.mxu0
          %v4870 = vadd.f32 0.0, %v4869
          %4871 = vmatmul.f32.gmra.mxu0 %v4850
          %v4872 = vpop.f32.mrf.mxu0
          %v4873 = vadd.f32 0.0, %v4872
          %4874 = vdwg.mxu0
          %v4876 = vsel %vm2886, %v4844, 0
          %v4879 = vsel %vm2886, %v4845, 0
          %4881 = vmatpush.msra.mxu0 0.0
          %4882 = vmatpush.msra.mxu0 0.0
          %4883 = vmatpush.msra.mxu0 0.0
          %4884 = vmatpush.msra.mxu0 0.0
          %4885 = vmatpush.msra.mxu0 0.0
          %4886 = vmatpush.msra.mxu0 0.0
          %4887 = vmatpush.msra.mxu0 0.0
          %4888 = vmatpush.msra.mxu0 0.0
          %4889 = vmatpush.msra.mxu0 0.0
          %4890 = vmatpush.msra.mxu0 0.0
          %4891 = vmatpush.msra.mxu0 0.0
          %4892 = vmatpush.msra.mxu0 0.0
          %4893 = vmatpush.msra.mxu0 0.0
          %4894 = vmatpush.msra.mxu0 0.0
          %4895 = vmatpush.msra.mxu0 0.0
          %4896 = vmatpush.msra.mxu0 %v4842
          %4897 = vmatmul.f32.gmra.mxu0 %v4876
          %v4898 = vpop.f32.mrf.mxu0
          %v4899 = vadd.f32 %v4870, %v4898
          %4900 = vmatmul.f32.gmra.mxu0 %v4879
          %v4901 = vpop.f32.mrf.mxu0
          %v4902 = vadd.f32 %v4873, %v4901
          %4903 = vdwg.mxu0
          %v4904 = vld [vmem:[%s10] sm:$0x1]
          %v4906 = vperm.slane %v4904, 0
          %v4908 = vadd.f32 %v4899, %v4906
          %v4909 = vadd.f32 %v4902, %v4906
          %vm4910 = vcmask 15360
          %4911 = vst.msk [vmem:[%s11] sm:$0xff] %vm4910, %v4908
          %4912 = vst.msk [vmem:[%s11 + $0x8] sm:$0xff] %vm4910, %v4909
        $region119: #{gcn_learn_forward.1} parent=82 // pred_fallthru
          _
        // Predicated region
        $region127: #{gcn_learn_forward.1} parent=82 // pred_check
          %p4913 = pneg %p297
        $region128: #{gcn_learn_forward.1} parent=82 // pred_check_branch
          %4915 = sbr.rel (%p4913) target = $region130
        $region129: #{gcn_learn_forward.1} parent=82 // pred_region
          _
        $region130: #{gcn_learn_forward.1} parent=82 // pred_fallthru
          _
        // Predicated region
        $region131: #{gcn_learn_forward.1} parent=82 // pred_check
          %p4916 = pneg %p297
        $region132: #{gcn_learn_forward.1} parent=82 // pred_check_branch
          %4918 = sbr.rel (%p4916) target = $region134
        $region133: #{gcn_learn_forward.1} parent=82 // pred_region
          _
        $region134: #{gcn_learn_forward.1} parent=82 // pred_fallthru
          _
      $region83: #{gcn_learn_forward.1} parent=5 // pred_fallthru
        _
      %p4919 = scmp.le.s32.totalorder 2, %s17
      // Predicated region
      $region135: #{gcn_learn_forward.1} parent=5 // pred_check
        %p4920 = pneg %p4919
      $region136: #{gcn_learn_forward.1} parent=5 // pred_check_branch
        %4922 = sbr.rel (%p4920) target = $region138
      $region137: #{gcn_learn_forward.1} parent=5 // pred_region
        %s4923 = ssub.s32 %s17, 2
      $region138: #{gcn_learn_forward.1} parent=5 // pred_fallthru
        _
    $region6: #{gcn_learn_forward.1} parent=1 // loop_footer
      %s21 = sadd.s32 1, %s17
    $region7: #{gcn_learn_forward.1} parent=1 // loop_footer_branch
      %16 = sbr.rel target = $region3
    $region8: #{gcn_learn_forward.1} parent=1 // loop_exit
      _

</llo_original>
